<compile_context>
chip_gen: v7x
topology: tpu7x:2x2x1
jax: 0.10.0
libtpu: 0.0.40
codegen_flags: <defaults>
</compile_context>

<pallas_src>
import functools

import jax
import jax.numpy as jnp
from jax.experimental import pallas as pl
from jax.experimental.pallas import tpu as pltpu

# WFN-style symmetry table (lx, ly, lz) — index by sym type.
SYMETRY_INDEX = [
    (0, 0, 0),                                  # s
    (1, 0, 0), (0, 1, 0), (0, 0, 1),            # p
    (2, 0, 0), (0, 2, 0), (0, 0, 2),            # d (diag)
    (1, 1, 0), (1, 0, 1), (0, 1, 1),            # d (cross)
]

# Point-tile candidates on the lane axis (multiples of 128).  Larger tiles
# amortize the ~600-cycle per-grid-step pipeline overhead and the repeated
# grid-invariant parameter broadcasts; capped so the grid keeps >= 2 steps
# (both v7x TensorCores busy).  TODO(synk): sweep up to 4096 per chip.
_TN_CHOICES = (2048, 1024, 512)


def _pick_tile(n):
    for tn in _TN_CHOICES:
        if pl.cdiv(n, tn) >= 2:
            return tn
    return _TN_CHOICES[-1]


def _density_kernel(coords_ref, prim_ref, a_ref, out_ref, *, use_mxu):
    # coords_ref: (3, TN), prim_ref: (P, 16), a_ref: (P, P) f32/bf16
    # out_ref: (2, TN) — row 0 = density, row 1 = |grad density|
    c = coords_ref[...]                          # (3, TN)
    prim = prim_ref[...]                         # (P, 16)

    cx, cy, cz = prim[:, 0:1], prim[:, 1:2], prim[:, 2:3]
    alpha = prim[:, 3:4]
    ex0, ex1, ex2, ex3 = prim[:, 4:5], prim[:, 5:6], prim[:, 6:7], prim[:, 7:8]
    ey0, ey1, ey2, ey3 = prim[:, 8:9], prim[:, 9:10], prim[:, 10:11], prim[:, 11:12]
    ez0, ez1, ez2, ez3 = prim[:, 12:13], prim[:, 13:14], prim[:, 14:15], prim[:, 15:16]

    # per-primitive distance vector components: (P, TN)
    vx = c[0:1, :] - cx
    vy = c[1:2, :] - cy
    vz = c[2:3, :] - cz
    vx2, vy2, vz2 = vx * vx, vy * vy, vz * vz
    d2 = vx2 + vy2 + vz2

    # pow(v, l) and l*v^(l-1) via one-hot exponent masks (no select chains).
    px = ex0 + ex1 * vx + ex2 * vx2 + ex3 * (vx2 * vx)
    py = ey0 + ey1 * vy + ey2 * vy2 + ey3 * (vy2 * vy)
    pz = ez0 + ez1 * vz + ez2 * vz2 + ez3 * (vz2 * vz)
    dpx = ex1 + 2.0 * ex2 * vx + 3.0 * ex3 * vx2
    dpy = ey1 + 2.0 * ey2 * vy + 3.0 * ey3 * vy2
    dpz = ez1 + 2.0 * ez2 * vz + 3.0 * ez3 * vz2

    g = jnp.exp(-alpha * d2)                     # EUP slot
    pypz = py * pz
    pxpz = px * pz
    pxpy = px * py
    sh = px * pypz
    x = sh * g                                   # (P, TN) == x_buffer tile

    # y = A @ x on the MXU (rides the otherwise-idle vex slot; the VALU is the
    # saturated unit here).  HIGHEST precision keeps the f32 quadratic form
    # accurate despite sign cancellation.  The VPU-MAC branch is only a
    # compile-compatibility fallback.
    if use_mxu:
        a = a_ref[...]
        prec = jax.lax.Precision.HIGHEST if a.dtype == jnp.float32 else None
        y = jnp.dot(a, x.astype(a.dtype), precision=prec,
                    preferred_element_type=jnp.float32)
    else:
        a = a_ref[...].astype(jnp.float32)
        p_dim = x.shape[0]
        y = a[:, 0:1] * x[0:1, :]
        for j in range(1, p_dim):
            y = y + a[:, j:j + 1] * x[j:j + 1, :]

    # density: rho(c) = x^T A x = sum_i x_i * y_i
    dens = jnp.sum(x * y, axis=0, keepdims=True)             # (1, TN)

    # analytic gradient: d(rho)/dc_k = 2 * sum_i y_i * dx_i/dc_k with
    #   dx_i/dc_x = dpx*pypz*g - 2*alpha*vx*x   (reuses x, pypz/pxpz/pxpy)
    two_a = 2.0 * alpha
    dxk = dpx * (pypz * g) - two_a * (vx * x)
    dyk = dpy * (pxpz * g) - two_a * (vy * x)
    dzk = dpz * (pxpy * g) - two_a * (vz * x)
    gx = jnp.sum(y * dxk, axis=0, keepdims=True)
    gy = jnp.sum(y * dyk, axis=0, keepdims=True)
    gz = jnp.sum(y * dzk, axis=0, keepdims=True)
    grad = 2.0 * jnp.sqrt(gx * gx + gy * gy + gz * gz)        # (1, TN)

    out_ref[0:1, :] = dens
    out_ref[1:2, :] = grad


def _resident_spec(shape, single_buffer):
    # Grid-invariant blocks (primitive table, symmetrized A): single-buffer
    # them so their VMEM footprint is not doubled (matters at production P,
    # especially on v7x's 64 MiB VMEM).
    if single_buffer:
        return pl.BlockSpec(shape, lambda t: (0, 0), pipeline_mode=pl.Buffered(1))
    return pl.BlockSpec(shape, lambda t: (0, 0))


def _vmem_limit_bytes(tn, p, a_itemsize, single_buffer):
    nbuf = 1 if single_buffer else 2
    need = 4 * (2 * 3 * tn + 2 * 2 * tn)                 # coords + merged output (double-buffered)
    need += nbuf * (p * p * a_itemsize + p * 16 * 4)     # resident A + primitive table
    need += 4 * 24 * p * tn                              # headroom: live (P, TN) f32 temps / spills
    return int(min(max(2 * need, 8 << 20), 64 << 20))


# TODO(synk): production P.  With Buffered(1) + bf16 A the resident-A approach
# stretches to P ~ 4000-5000 on v5e/v6e (128 MiB VMEM) but only to P ~ 2600 on
# v7x (single-buffered f32 A > ~24-28 MiB of 64 MiB).  Beyond that, add grid
# axes tiling A over row (i) and contraction (k) blocks in multiples of 256
# (128 suffices on v5e), marked "arbitrary" and placed after the point axis,
# accumulate y / dens / gx,gy,gz partials in f32 VMEM scratch, and recompute
# the cheap per-primitive basis x per tile.
def _build_density_call(n_pad, p, tn, a_itemsize, single_buffer, use_mxu):
    cost = pl.CostEstimate(
        flops=int(n_pad) * p * (2 * p + 60),
        transcendentals=int(n_pad) * (p + 1),
        bytes_accessed=int(4 * 5 * n_pad + p * p * a_itemsize + 64 * p),
    )
    kernel = functools.partial(_density_kernel, use_mxu=use_mxu)
    return pl.pallas_call(
        kernel,
        out_shape=jax.ShapeDtypeStruct((2, n_pad), jnp.float32),
        grid_spec=pltpu.PrefetchScalarGridSpec(
            num_scalar_prefetch=0,
            grid=(n_pad // tn,),
            in_specs=[
                pl.BlockSpec((3, tn), lambda t: (0, t)),      # coords tile
                _resident_spec((p, 16), single_buffer),       # primitive table
                _resident_spec((p, p), single_buffer),        # symmetrized A
            ],
            out_specs=pl.BlockSpec((2, tn), lambda t: (0, t)),  # [density; |grad|]
        ),
        compiler_params=pltpu.CompilerParams(
            dimension_semantics=("parallel",),                # v7x: 2 TCs split point tiles
            vmem_limit_bytes=_vmem_limit_bytes(tn, p, a_itemsize, single_buffer)),
        cost_estimate=cost,
    )


# Fast path first; later entries are compile-compatibility fallbacks (e.g. if
# pipeline_mode=Buffered(1) or the tiny-shape MXU matmul is rejected by the
# installed Mosaic version).  The fallback kernel body is numerically exact.
_CONFIGS = (
    dict(single_buffer=True, use_mxu=True),
    dict(single_buffer=False, use_mxu=True),
    dict(single_buffer=False, use_mxu=False),
)


def _density_pallas(coords_t, prim_tbl, a_sym, tn):
    """coords_t: (3, Npad) f32. Returns (2, Npad): [density; |grad density|]."""
    _, n_pad = coords_t.shape
    p = prim_tbl.shape[0]
    a_itemsize = a_sym.dtype.itemsize
    last_err = None
    for cfg in _CONFIGS:
        try:
            call = _build_density_call(n_pad, p, tn, a_itemsize, **cfg)
            return jax.block_until_ready(call(coords_t, prim_tbl, a_sym))
        except Exception as e:                    # fall back to a safer config
            last_err = e
    raise last_err


def density_function_forward(coords, atom_coords, centers, exps, sym, dm,
                             *, mxu_bf16=False):
    """coords: (N, 3) f32. Returns (density (N,), gradient (N,)).

    NOTE: gradient is the exact analytic |grad rho| (what the PyTorch module's
    float32 central difference with dh=1e-8 *approximates*); it will not match
    the degenerate finite-difference output of the reference implementation.
    """
    coords = jnp.asarray(coords, jnp.float32)
    N = coords.shape[0]
    if N == 0:                                    # empty-grid guard
        z = jnp.zeros((0,), jnp.float32)
        return z, z

    # --- glue: primitive parameter table (P, 16) -------------------------------
    centers_arr = jnp.asarray(centers, jnp.int32)
    sym_arr = jnp.asarray(sym, jnp.int32)
    centers_xyz = jnp.asarray(atom_coords, jnp.float32)[centers_arr]     # (P, 3)
    lxyz = jnp.asarray(SYMETRY_INDEX, jnp.int32)[sym_arr]                # (P, 3)
    onehots = [
        (lxyz[:, a:a + 1] == jnp.arange(4, dtype=jnp.int32)[None, :]).astype(jnp.float32)
        for a in range(3)
    ]                                                                    # 3 x (P, 4)
    prim_tbl = jnp.concatenate(
        [centers_xyz, jnp.asarray(exps, jnp.float32)[:, None]] + onehots,
        axis=1)                                                          # (P, 16)

    # --- glue: symmetrized density matrix --------------------------------------
    dm = jnp.asarray(dm, jnp.float32)
    strict_low = jnp.tril(dm, -1)
    a_sym = strict_low + strict_low.T + jnp.diag(jnp.diag(dm))           # (P, P)
    if mxu_bf16:
        # v6e/v7x production-P option: bf16 A halves resident VMEM and rides the
        # fast bf16 MXU; the elementwise pipeline stays in f32.
        a_sym = a_sym.astype(jnp.bfloat16)

    # --- glue: pad points to a tile multiple (single fused pad + transpose) ----
    tn = _pick_tile(N)
    n_pad = pl.cdiv(N, tn) * tn
    coords_t = jnp.pad(coords, ((0, n_pad - N), (0, 0))).T               # (3, n_pad)

    # --- hot path: single fused Pallas kernel (density + analytic gradient) ----
    out = _density_pallas(coords_t, prim_tbl, a_sym, tn)
    return out[0, :N], out[1, :N]


# -------------------------- pure-JAX references --------------------------------

def _density_ref(coords, atom_coords, centers, exps, sym, dm):
    """Pure-JAX reference of calculate_density (faithful double loop)."""
    P = exps.shape[0]
    x_buf = []
    for i in range(P):
        v = coords - atom_coords[centers[i]][None, :]
        d2 = jnp.sum(v ** 2, axis=1)
        lx, ly, lz = SYMETRY_INDEX[sym[i]]
        sh = (v[:, 0] ** lx) * (v[:, 1] ** ly) * (v[:, 2] ** lz)
        x_buf.append(sh * jnp.exp(-exps[i] * d2))
    x = jnp.stack(x_buf)                                                 # (P, N)
    p = jnp.zeros(coords.shape[0], jnp.float32)
    for i in range(P):
        for j in range(i):
            p = p + dm[i, j] * x[i] * x[j] * 2.0
        p = p + dm[i, i] * x[i] * x[i]
    return p


def _gradient_ref(coords, atom_coords, centers, exps, sym, dm):
    """|grad density| via autodiff of the per-point quadratic form."""
    dm = jnp.asarray(dm, jnp.float32)
    strict_low = jnp.tril(dm, -1)
    a_sym = strict_low + strict_low.T + jnp.diag(jnp.diag(dm))
    P = exps.shape[0]

    def point_density(c):
        xs = []
        for i in range(P):
            v = c - atom_coords[centers[i]]
            d2 = jnp.sum(v * v)
            lx, ly, lz = SYMETRY_INDEX[sym[i]]
            sh = (v[0] ** lx) * (v[1] ** ly) * (v[2] ** lz)
            xs.append(sh * jnp.exp(-exps[i] * d2))
        x = jnp.stack(xs)
        return jnp.dot(x, jnp.dot(a_sym, x))

    g = jax.vmap(jax.grad(point_density))(coords)                        # (N, 3)
    return jnp.sqrt(jnp.sum(g * g, axis=1))


if __name__ == "__main__":
    key = jax.random.PRNGKey(0)
    k1, k2, k3, k4 = jax.random.split(key, 4)

    N = 777          # number of evaluation points (exercises padding + 2 grid steps)
    NATOMS = 3
    P = 8            # number of primitives

    coords = jax.random.normal(k1, (N, 3), dtype=jnp.float32)
    atom_coords = jax.random.normal(k2, (NATOMS, 3), dtype=jnp.float32)
    centers = [i % NATOMS for i in range(P)]
    exps = 0.5 + jax.random.uniform(k3, (P,), dtype=jnp.float32) * 1.5
    sym = [i % len(SYMETRY_INDEX) for i in range(P)]
    dm = 0.1 * jax.random.normal(k4, (P, P), dtype=jnp.float32)

    density, gradient = density_function_forward(
        coords, atom_coords, centers, exps, sym, dm)
    density = jax.block_until_ready(density)
    gradient = jax.block_until_ready(gradient)

    # sanity checks against pure-JAX references
    dens_ref = _density_ref(coords, atom_coords, centers, exps, sym, dm)
    grad_ref = _gradient_ref(coords, atom_coords, centers, exps, sym, dm)

    assert density.shape == (N,) and gradient.shape == (N,)
    assert bool(jnp.all(jnp.isfinite(density))) and bool(jnp.all(jnp.isfinite(gradient)))
    assert bool(jnp.allclose(density, dens_ref, rtol=2e-3, atol=1e-5))
    assert bool(jnp.allclose(gradient, grad_ref, rtol=5e-3, atol=1e-3))

    print("KERNEL_OK")
</pallas_src>

<mosaic_0001>
module attributes {stable_mosaic.version = 11 : i64} {
  func.func @_density_kernel(%arg0: i32, %arg1: memref<3x512xf32, #tpu.memory_space<vmem>>, %arg2: memref<8x16xf32, #tpu.memory_space<vmem>>, %arg3: memref<8x8xf32, #tpu.memory_space<vmem>>, %arg4: memref<2x512xf32, #tpu.memory_space<vmem>>) attributes {dimension_semantics = [#tpu.dimension_semantics<parallel>], iteration_bounds = array<i64: 2>, scalar_prefetch = 0 : i64, scratch_operands = 0 : i64, tpu.core_type = #tpu.core_type<tc>, window_params = [{transform_indices = @transform_0, window_bounds = array<i64: 3, 512>}, {pipeline_mode = #tpu.pipeline_mode<synchronous>, transform_indices = @transform_1, window_bounds = array<i64: 8, 16>}, {pipeline_mode = #tpu.pipeline_mode<synchronous>, transform_indices = @transform_2, window_bounds = array<i64: 8, 8>}, {transform_indices = @transform_3, window_bounds = array<i64: 2, 512>}]} {
    %c0 = arith.constant 0 : index
    %c0_0 = arith.constant 0 : index
    %0 = vector.load %arg1[%c0, %c0_0] : memref<3x512xf32, #tpu.memory_space<vmem>>, vector<3x512xf32>
    %c0_1 = arith.constant 0 : index
    %c0_2 = arith.constant 0 : index
    %1 = vector.load %arg2[%c0_1, %c0_2] : memref<8x16xf32, #tpu.memory_space<vmem>>, vector<8x16xf32>
    %2 = vector.extract_strided_slice %1 {offsets = [0, 0], sizes = [8, 1], strides = [1, 1]} : vector<8x16xf32> to vector<8x1xf32>
    %3 = vector.extract_strided_slice %1 {offsets = [0, 1], sizes = [8, 1], strides = [1, 1]} : vector<8x16xf32> to vector<8x1xf32>
    %4 = vector.extract_strided_slice %1 {offsets = [0, 2], sizes = [8, 1], strides = [1, 1]} : vector<8x16xf32> to vector<8x1xf32>
    %5 = vector.extract_strided_slice %1 {offsets = [0, 3], sizes = [8, 1], strides = [1, 1]} : vector<8x16xf32> to vector<8x1xf32>
    %6 = vector.extract_strided_slice %1 {offsets = [0, 4], sizes = [8, 1], strides = [1, 1]} : vector<8x16xf32> to vector<8x1xf32>
    %7 = vector.extract_strided_slice %1 {offsets = [0, 5], sizes = [8, 1], strides = [1, 1]} : vector<8x16xf32> to vector<8x1xf32>
    %8 = vector.extract_strided_slice %1 {offsets = [0, 6], sizes = [8, 1], strides = [1, 1]} : vector<8x16xf32> to vector<8x1xf32>
    %9 = vector.extract_strided_slice %1 {offsets = [0, 7], sizes = [8, 1], strides = [1, 1]} : vector<8x16xf32> to vector<8x1xf32>
    %10 = vector.extract_strided_slice %1 {offsets = [0, 8], sizes = [8, 1], strides = [1, 1]} : vector<8x16xf32> to vector<8x1xf32>
    %11 = vector.extract_strided_slice %1 {offsets = [0, 9], sizes = [8, 1], strides = [1, 1]} : vector<8x16xf32> to vector<8x1xf32>
    %12 = vector.extract_strided_slice %1 {offsets = [0, 10], sizes = [8, 1], strides = [1, 1]} : vector<8x16xf32> to vector<8x1xf32>
    %13 = vector.extract_strided_slice %1 {offsets = [0, 11], sizes = [8, 1], strides = [1, 1]} : vector<8x16xf32> to vector<8x1xf32>
    %14 = vector.extract_strided_slice %1 {offsets = [0, 12], sizes = [8, 1], strides = [1, 1]} : vector<8x16xf32> to vector<8x1xf32>
    %15 = vector.extract_strided_slice %1 {offsets = [0, 13], sizes = [8, 1], strides = [1, 1]} : vector<8x16xf32> to vector<8x1xf32>
    %16 = vector.extract_strided_slice %1 {offsets = [0, 14], sizes = [8, 1], strides = [1, 1]} : vector<8x16xf32> to vector<8x1xf32>
    %17 = vector.extract_strided_slice %1 {offsets = [0, 15], sizes = [8, 1], strides = [1, 1]} : vector<8x16xf32> to vector<8x1xf32>
    %18 = vector.extract_strided_slice %0 {offsets = [0, 0], sizes = [1, 512], strides = [1, 1]} : vector<3x512xf32> to vector<1x512xf32>
    %19 = vector.broadcast %18 : vector<1x512xf32> to vector<8x512xf32>
    %20 = vector.broadcast %2 : vector<8x1xf32> to vector<8x512xf32>
    %21 = arith.subf %19, %20 : vector<8x512xf32>
    %22 = vector.extract_strided_slice %0 {offsets = [1, 0], sizes = [1, 512], strides = [1, 1]} : vector<3x512xf32> to vector<1x512xf32>
    %23 = vector.broadcast %22 : vector<1x512xf32> to vector<8x512xf32>
    %24 = vector.broadcast %3 : vector<8x1xf32> to vector<8x512xf32>
    %25 = arith.subf %23, %24 : vector<8x512xf32>
    %26 = vector.extract_strided_slice %0 {offsets = [2, 0], sizes = [1, 512], strides = [1, 1]} : vector<3x512xf32> to vector<1x512xf32>
    %27 = vector.broadcast %26 : vector<1x512xf32> to vector<8x512xf32>
    %28 = vector.broadcast %4 : vector<8x1xf32> to vector<8x512xf32>
    %29 = arith.subf %27, %28 : vector<8x512xf32>
    %30 = arith.mulf %21, %21 : vector<8x512xf32>
    %31 = arith.mulf %25, %25 : vector<8x512xf32>
    %32 = arith.mulf %29, %29 : vector<8x512xf32>
    %33 = arith.addf %30, %31 : vector<8x512xf32>
    %34 = arith.addf %33, %32 : vector<8x512xf32>
    %35 = vector.broadcast %7 : vector<8x1xf32> to vector<8x512xf32>
    %36 = arith.mulf %35, %21 : vector<8x512xf32>
    %37 = vector.broadcast %6 : vector<8x1xf32> to vector<8x512xf32>
    %38 = arith.addf %37, %36 : vector<8x512xf32>
    %39 = vector.broadcast %8 : vector<8x1xf32> to vector<8x512xf32>
    %40 = arith.mulf %39, %30 : vector<8x512xf32>
    %41 = arith.addf %38, %40 : vector<8x512xf32>
    %42 = arith.mulf %30, %21 : vector<8x512xf32>
    %43 = vector.broadcast %9 : vector<8x1xf32> to vector<8x512xf32>
    %44 = arith.mulf %43, %42 : vector<8x512xf32>
    %45 = arith.addf %41, %44 : vector<8x512xf32>
    %46 = vector.broadcast %11 : vector<8x1xf32> to vector<8x512xf32>
    %47 = arith.mulf %46, %25 : vector<8x512xf32>
    %48 = vector.broadcast %10 : vector<8x1xf32> to vector<8x512xf32>
    %49 = arith.addf %48, %47 : vector<8x512xf32>
    %50 = vector.broadcast %12 : vector<8x1xf32> to vector<8x512xf32>
    %51 = arith.mulf %50, %31 : vector<8x512xf32>
    %52 = arith.addf %49, %51 : vector<8x512xf32>
    %53 = arith.mulf %31, %25 : vector<8x512xf32>
    %54 = vector.broadcast %13 : vector<8x1xf32> to vector<8x512xf32>
    %55 = arith.mulf %54, %53 : vector<8x512xf32>
    %56 = arith.addf %52, %55 : vector<8x512xf32>
    %57 = vector.broadcast %15 : vector<8x1xf32> to vector<8x512xf32>
    %58 = arith.mulf %57, %29 : vector<8x512xf32>
    %59 = vector.broadcast %14 : vector<8x1xf32> to vector<8x512xf32>
    %60 = arith.addf %59, %58 : vector<8x512xf32>
    %61 = vector.broadcast %16 : vector<8x1xf32> to vector<8x512xf32>
    %62 = arith.mulf %61, %32 : vector<8x512xf32>
    %63 = arith.addf %60, %62 : vector<8x512xf32>
    %64 = arith.mulf %32, %29 : vector<8x512xf32>
    %65 = vector.broadcast %17 : vector<8x1xf32> to vector<8x512xf32>
    %66 = arith.mulf %65, %64 : vector<8x512xf32>
    %67 = arith.addf %63, %66 : vector<8x512xf32>
    %cst = arith.constant 2.000000e+00 : f32
    %68 = vector.broadcast %cst : f32 to vector<8x1xf32>
    %69 = arith.mulf %68, %8 : vector<8x1xf32>
    %70 = vector.broadcast %69 : vector<8x1xf32> to vector<8x512xf32>
    %71 = arith.mulf %70, %21 : vector<8x512xf32>
    %72 = vector.broadcast %7 : vector<8x1xf32> to vector<8x512xf32>
    %73 = arith.addf %72, %71 : vector<8x512xf32>
    %cst_3 = arith.constant 3.000000e+00 : f32
    %74 = vector.broadcast %cst_3 : f32 to vector<8x1xf32>
    %75 = arith.mulf %74, %9 : vector<8x1xf32>
    %76 = vector.broadcast %75 : vector<8x1xf32> to vector<8x512xf32>
    %77 = arith.mulf %76, %30 : vector<8x512xf32>
    %78 = arith.addf %73, %77 : vector<8x512xf32>
    %cst_4 = arith.constant 2.000000e+00 : f32
    %79 = vector.broadcast %cst_4 : f32 to vector<8x1xf32>
    %80 = arith.mulf %79, %12 : vector<8x1xf32>
    %81 = vector.broadcast %80 : vector<8x1xf32> to vector<8x512xf32>
    %82 = arith.mulf %81, %25 : vector<8x512xf32>
    %83 = vector.broadcast %11 : vector<8x1xf32> to vector<8x512xf32>
    %84 = arith.addf %83, %82 : vector<8x512xf32>
    %cst_5 = arith.constant 3.000000e+00 : f32
    %85 = vector.broadcast %cst_5 : f32 to vector<8x1xf32>
    %86 = arith.mulf %85, %13 : vector<8x1xf32>
    %87 = vector.broadcast %86 : vector<8x1xf32> to vector<8x512xf32>
    %88 = arith.mulf %87, %31 : vector<8x512xf32>
    %89 = arith.addf %84, %88 : vector<8x512xf32>
    %cst_6 = arith.constant 2.000000e+00 : f32
    %90 = vector.broadcast %cst_6 : f32 to vector<8x1xf32>
    %91 = arith.mulf %90, %16 : vector<8x1xf32>
    %92 = vector.broadcast %91 : vector<8x1xf32> to vector<8x512xf32>
    %93 = arith.mulf %92, %29 : vector<8x512xf32>
    %94 = vector.broadcast %15 : vector<8x1xf32> to vector<8x512xf32>
    %95 = arith.addf %94, %93 : vector<8x512xf32>
    %cst_7 = arith.constant 3.000000e+00 : f32
    %96 = vector.broadcast %cst_7 : f32 to vector<8x1xf32>
    %97 = arith.mulf %96, %17 : vector<8x1xf32>
    %98 = vector.broadcast %97 : vector<8x1xf32> to vector<8x512xf32>
    %99 = arith.mulf %98, %32 : vector<8x512xf32>
    %100 = arith.addf %95, %99 : vector<8x512xf32>
    %cst_8 = arith.constant 0.000000e+00 : f32
    %101 = vector.broadcast %cst_8 : f32 to vector<8x1xf32>
    %102 = arith.subf %101, %5 : vector<8x1xf32>
    %103 = vector.broadcast %102 : vector<8x1xf32> to vector<8x512xf32>
    %104 = arith.mulf %103, %34 : vector<8x512xf32>
    %105 = math.exp %104 : vector<8x512xf32>
    %106 = arith.mulf %56, %67 : vector<8x512xf32>
    %107 = arith.mulf %45, %67 : vector<8x512xf32>
    %108 = arith.mulf %45, %56 : vector<8x512xf32>
    %109 = arith.mulf %45, %106 : vector<8x512xf32>
    %110 = arith.mulf %109, %105 : vector<8x512xf32>
    %c0_9 = arith.constant 0 : index
    %c0_10 = arith.constant 0 : index
    %111 = vector.load %arg3[%c0_9, %c0_10] : memref<8x8xf32, #tpu.memory_space<vmem>>, vector<8x8xf32>
    %cst_11 = arith.constant dense<0.000000e+00> : vector<8x512xf32>
    %112 = tpu.matmul %111, %110, %cst_11 {dimension_numbers = #tpu.dot_dimension_numbers<[1], [0], [0], [1], [0, 0, 1, 1], [], []>, precision = #tpu.contract_precision<fp32>} : vector<8x8xf32>, vector<8x512xf32>, vector<8x512xf32> -> vector<8x512xf32>
    %113 = arith.mulf %110, %112 : vector<8x512xf32>
    %cst_12 = arith.constant dense<0.000000e+00> : vector<512xf32>
    %114 = vector.multi_reduction <add>, %113, %cst_12 [0] : vector<8x512xf32> to vector<512xf32>
    %115 = vector.shape_cast %114 : vector<512xf32> to vector<1x512xf32>
    %cst_13 = arith.constant 2.000000e+00 : f32
    %116 = vector.broadcast %cst_13 : f32 to vector<8x1xf32>
    %117 = arith.mulf %116, %5 : vector<8x1xf32>
    %118 = arith.mulf %106, %105 : vector<8x512xf32>
    %119 = arith.mulf %78, %118 : vector<8x512xf32>
    %120 = arith.mulf %21, %110 : vector<8x512xf32>
    %121 = vector.broadcast %117 : vector<8x1xf32> to vector<8x512xf32>
    %122 = arith.mulf %121, %120 : vector<8x512xf32>
    %123 = arith.subf %119, %122 : vector<8x512xf32>
    %124 = arith.mulf %107, %105 : vector<8x512xf32>
    %125 = arith.mulf %89, %124 : vector<8x512xf32>
    %126 = arith.mulf %25, %110 : vector<8x512xf32>
    %127 = vector.broadcast %117 : vector<8x1xf32> to vector<8x512xf32>
    %128 = arith.mulf %127, %126 : vector<8x512xf32>
    %129 = arith.subf %125, %128 : vector<8x512xf32>
    %130 = arith.mulf %108, %105 : vector<8x512xf32>
    %131 = arith.mulf %100, %130 : vector<8x512xf32>
    %132 = arith.mulf %29, %110 : vector<8x512xf32>
    %133 = vector.broadcast %117 : vector<8x1xf32> to vector<8x512xf32>
    %134 = arith.mulf %133, %132 : vector<8x512xf32>
    %135 = arith.subf %131, %134 : vector<8x512xf32>
    %136 = arith.mulf %112, %123 : vector<8x512xf32>
    %cst_14 = arith.constant dense<0.000000e+00> : vector<512xf32>
    %137 = vector.multi_reduction <add>, %136, %cst_14 [0] : vector<8x512xf32> to vector<512xf32>
    %138 = vector.shape_cast %137 : vector<512xf32> to vector<1x512xf32>
    %139 = arith.mulf %112, %129 : vector<8x512xf32>
    %cst_15 = arith.constant dense<0.000000e+00> : vector<512xf32>
    %140 = vector.multi_reduction <add>, %139, %cst_15 [0] : vector<8x512xf32> to vector<512xf32>
    %141 = vector.shape_cast %140 : vector<512xf32> to vector<1x512xf32>
    %142 = arith.mulf %112, %135 : vector<8x512xf32>
    %cst_16 = arith.constant dense<0.000000e+00> : vector<512xf32>
    %143 = vector.multi_reduction <add>, %142, %cst_16 [0] : vector<8x512xf32> to vector<512xf32>
    %144 = vector.shape_cast %143 : vector<512xf32> to vector<1x512xf32>
    %145 = arith.mulf %138, %138 : vector<1x512xf32>
    %146 = arith.mulf %141, %141 : vector<1x512xf32>
    %147 = arith.addf %145, %146 : vector<1x512xf32>
    %148 = arith.mulf %144, %144 : vector<1x512xf32>
    %149 = arith.addf %147, %148 : vector<1x512xf32>
    %150 = math.sqrt %149 : vector<1x512xf32>
    %cst_17 = arith.constant 2.000000e+00 : f32
    %151 = vector.broadcast %cst_17 : f32 to vector<1x512xf32>
    %152 = arith.mulf %151, %150 : vector<1x512xf32>
    %c0_18 = arith.constant 0 : index
    %c0_19 = arith.constant 0 : index
    %153 = vector.load %arg4[%c0_18, %c0_19] : memref<2x512xf32, #tpu.memory_space<vmem>>, vector<1x512xf32>
    tpu.vector_store %arg4[%c0_18, %c0_19], %115 {strides = array<i32>} : memref<2x512xf32, #tpu.memory_space<vmem>>, vector<1x512xf32>,
    %c1 = arith.constant 1 : index
    %c0_20 = arith.constant 0 : index
    %154 = vector.load %arg4[%c1, %c0_20] : memref<2x512xf32, #tpu.memory_space<vmem>>, vector<1x512xf32>
    tpu.vector_store %arg4[%c1, %c0_20], %152 {strides = array<i32>} : memref<2x512xf32, #tpu.memory_space<vmem>>, vector<1x512xf32>,
    return
  }
  func.func @transform_0(%arg0: i32) -> (i32, i32) {
    %c0_i32 = arith.constant 0 : i32
    %c0_i32_0 = arith.constant 0 : i32
    return %c0_i32, %arg0 : i32, i32
  }
  func.func @transform_1(%arg0: i32) -> (i32, i32) {
    %c0_i32 = arith.constant 0 : i32
    %c0_i32_0 = arith.constant 0 : i32
    %c0_i32_1 = arith.constant 0 : i32
    return %c0_i32, %c0_i32_0 : i32, i32
  }
  func.func @transform_2(%arg0: i32) -> (i32, i32) {
    %c0_i32 = arith.constant 0 : i32
    %c0_i32_0 = arith.constant 0 : i32
    %c0_i32_1 = arith.constant 0 : i32
    return %c0_i32, %c0_i32_0 : i32, i32
  }
  func.func @transform_3(%arg0: i32) -> (i32, i32) {
    %c0_i32 = arith.constant 0 : i32
    %c0_i32_0 = arith.constant 0 : i32
    return %c0_i32, %arg0 : i32, i32
  }
}

module attributes {stable_mosaic.version = 11 : i64} {
  func.func @_density_kernel(%arg0: i32, %arg1: memref<3x512xf32, #tpu.memory_space<vmem>>, %arg2: memref<8x16xf32, #tpu.memory_space<vmem>>, %arg3: memref<8x8xf32, #tpu.memory_space<vmem>>, %arg4: memref<2x512xf32, #tpu.memory_space<vmem>>) attributes {dimension_semantics = [#tpu.dimension_semantics<parallel>], iteration_bounds = array<i64: 2>, scalar_prefetch = 0 : i64, scratch_operands = 0 : i64, tpu.core_type = #tpu.core_type<tc>, window_params = [{transform_indices = @transform_0, window_bounds = array<i64: 3, 512>}, {pipeline_mode = #tpu.pipeline_mode<synchronous>, transform_indices = @transform_1, window_bounds = array<i64: 8, 16>}, {pipeline_mode = #tpu.pipeline_mode<synchronous>, transform_indices = @transform_2, window_bounds = array<i64: 8, 8>}, {transform_indices = @transform_3, window_bounds = array<i64: 2, 512>}]} {
    %c0 = arith.constant 0 : index
    %c0_0 = arith.constant 0 : index
    %0 = vector.load %arg1[%c0, %c0_0] : memref<3x512xf32, #tpu.memory_space<vmem>>, vector<3x512xf32>
    %c0_1 = arith.constant 0 : index
    %c0_2 = arith.constant 0 : index
    %1 = vector.load %arg2[%c0_1, %c0_2] : memref<8x16xf32, #tpu.memory_space<vmem>>, vector<8x16xf32>
    %2 = vector.extract_strided_slice %1 {offsets = [0, 0], sizes = [8, 1], strides = [1, 1]} : vector<8x16xf32> to vector<8x1xf32>
    %3 = vector.extract_strided_slice %1 {offsets = [0, 1], sizes = [8, 1], strides = [1, 1]} : vector<8x16xf32> to vector<8x1xf32>
    %4 = vector.extract_strided_slice %1 {offsets = [0, 2], sizes = [8, 1], strides = [1, 1]} : vector<8x16xf32> to vector<8x1xf32>
    %5 = vector.extract_strided_slice %1 {offsets = [0, 3], sizes = [8, 1], strides = [1, 1]} : vector<8x16xf32> to vector<8x1xf32>
    %6 = vector.extract_strided_slice %1 {offsets = [0, 4], sizes = [8, 1], strides = [1, 1]} : vector<8x16xf32> to vector<8x1xf32>
    %7 = vector.extract_strided_slice %1 {offsets = [0, 5], sizes = [8, 1], strides = [1, 1]} : vector<8x16xf32> to vector<8x1xf32>
    %8 = vector.extract_strided_slice %1 {offsets = [0, 6], sizes = [8, 1], strides = [1, 1]} : vector<8x16xf32> to vector<8x1xf32>
    %9 = vector.extract_strided_slice %1 {offsets = [0, 7], sizes = [8, 1], strides = [1, 1]} : vector<8x16xf32> to vector<8x1xf32>
    %10 = vector.extract_strided_slice %1 {offsets = [0, 8], sizes = [8, 1], strides = [1, 1]} : vector<8x16xf32> to vector<8x1xf32>
    %11 = vector.extract_strided_slice %1 {offsets = [0, 9], sizes = [8, 1], strides = [1, 1]} : vector<8x16xf32> to vector<8x1xf32>
    %12 = vector.extract_strided_slice %1 {offsets = [0, 10], sizes = [8, 1], strides = [1, 1]} : vector<8x16xf32> to vector<8x1xf32>
    %13 = vector.extract_strided_slice %1 {offsets = [0, 11], sizes = [8, 1], strides = [1, 1]} : vector<8x16xf32> to vector<8x1xf32>
    %14 = vector.extract_strided_slice %1 {offsets = [0, 12], sizes = [8, 1], strides = [1, 1]} : vector<8x16xf32> to vector<8x1xf32>
    %15 = vector.extract_strided_slice %1 {offsets = [0, 13], sizes = [8, 1], strides = [1, 1]} : vector<8x16xf32> to vector<8x1xf32>
    %16 = vector.extract_strided_slice %1 {offsets = [0, 14], sizes = [8, 1], strides = [1, 1]} : vector<8x16xf32> to vector<8x1xf32>
    %17 = vector.extract_strided_slice %1 {offsets = [0, 15], sizes = [8, 1], strides = [1, 1]} : vector<8x16xf32> to vector<8x1xf32>
    %18 = vector.extract_strided_slice %0 {offsets = [0, 0], sizes = [1, 512], strides = [1, 1]} : vector<3x512xf32> to vector<1x512xf32>
    %19 = vector.broadcast %18 : vector<1x512xf32> to vector<8x512xf32>
    %20 = vector.broadcast %2 : vector<8x1xf32> to vector<8x512xf32>
    %21 = arith.subf %19, %20 : vector<8x512xf32>
    %22 = vector.extract_strided_slice %0 {offsets = [1, 0], sizes = [1, 512], strides = [1, 1]} : vector<3x512xf32> to vector<1x512xf32>
    %23 = vector.broadcast %22 : vector<1x512xf32> to vector<8x512xf32>
    %24 = vector.broadcast %3 : vector<8x1xf32> to vector<8x512xf32>
    %25 = arith.subf %23, %24 : vector<8x512xf32>
    %26 = vector.extract_strided_slice %0 {offsets = [2, 0], sizes = [1, 512], strides = [1, 1]} : vector<3x512xf32> to vector<1x512xf32>
    %27 = vector.broadcast %26 : vector<1x512xf32> to vector<8x512xf32>
    %28 = vector.broadcast %4 : vector<8x1xf32> to vector<8x512xf32>
    %29 = arith.subf %27, %28 : vector<8x512xf32>
    %30 = arith.mulf %21, %21 : vector<8x512xf32>
    %31 = arith.mulf %25, %25 : vector<8x512xf32>
    %32 = arith.mulf %29, %29 : vector<8x512xf32>
    %33 = arith.addf %30, %31 : vector<8x512xf32>
    %34 = arith.addf %33, %32 : vector<8x512xf32>
    %35 = vector.broadcast %7 : vector<8x1xf32> to vector<8x512xf32>
    %36 = arith.mulf %35, %21 : vector<8x512xf32>
    %37 = vector.broadcast %6 : vector<8x1xf32> to vector<8x512xf32>
    %38 = arith.addf %37, %36 : vector<8x512xf32>
    %39 = vector.broadcast %8 : vector<8x1xf32> to vector<8x512xf32>
    %40 = arith.mulf %39, %30 : vector<8x512xf32>
    %41 = arith.addf %38, %40 : vector<8x512xf32>
    %42 = arith.mulf %30, %21 : vector<8x512xf32>
    %43 = vector.broadcast %9 : vector<8x1xf32> to vector<8x512xf32>
    %44 = arith.mulf %43, %42 : vector<8x512xf32>
    %45 = arith.addf %41, %44 : vector<8x512xf32>
    %46 = vector.broadcast %11 : vector<8x1xf32> to vector<8x512xf32>
    %47 = arith.mulf %46, %25 : vector<8x512xf32>
    %48 = vector.broadcast %10 : vector<8x1xf32> to vector<8x512xf32>
    %49 = arith.addf %48, %47 : vector<8x512xf32>
    %50 = vector.broadcast %12 : vector<8x1xf32> to vector<8x512xf32>
    %51 = arith.mulf %50, %31 : vector<8x512xf32>
    %52 = arith.addf %49, %51 : vector<8x512xf32>
    %53 = arith.mulf %31, %25 : vector<8x512xf32>
    %54 = vector.broadcast %13 : vector<8x1xf32> to vector<8x512xf32>
    %55 = arith.mulf %54, %53 : vector<8x512xf32>
    %56 = arith.addf %52, %55 : vector<8x512xf32>
    %57 = vector.broadcast %15 : vector<8x1xf32> to vector<8x512xf32>
    %58 = arith.mulf %57, %29 : vector<8x512xf32>
    %59 = vector.broadcast %14 : vector<8x1xf32> to vector<8x512xf32>
    %60 = arith.addf %59, %58 : vector<8x512xf32>
    %61 = vector.broadcast %16 : vector<8x1xf32> to vector<8x512xf32>
    %62 = arith.mulf %61, %32 : vector<8x512xf32>
    %63 = arith.addf %60, %62 : vector<8x512xf32>
    %64 = arith.mulf %32, %29 : vector<8x512xf32>
    %65 = vector.broadcast %17 : vector<8x1xf32> to vector<8x512xf32>
    %66 = arith.mulf %65, %64 : vector<8x512xf32>
    %67 = arith.addf %63, %66 : vector<8x512xf32>
    %cst = arith.constant 2.000000e+00 : f32
    %68 = vector.broadcast %cst : f32 to vector<8x1xf32>
    %69 = arith.mulf %68, %8 : vector<8x1xf32>
    %70 = vector.broadcast %69 : vector<8x1xf32> to vector<8x512xf32>
    %71 = arith.mulf %70, %21 : vector<8x512xf32>
    %72 = vector.broadcast %7 : vector<8x1xf32> to vector<8x512xf32>
    %73 = arith.addf %72, %71 : vector<8x512xf32>
    %cst_3 = arith.constant 3.000000e+00 : f32
    %74 = vector.broadcast %cst_3 : f32 to vector<8x1xf32>
    %75 = arith.mulf %74, %9 : vector<8x1xf32>
    %76 = vector.broadcast %75 : vector<8x1xf32> to vector<8x512xf32>
    %77 = arith.mulf %76, %30 : vector<8x512xf32>
    %78 = arith.addf %73, %77 : vector<8x512xf32>
    %cst_4 = arith.constant 2.000000e+00 : f32
    %79 = vector.broadcast %cst_4 : f32 to vector<8x1xf32>
    %80 = arith.mulf %79, %12 : vector<8x1xf32>
    %81 = vector.broadcast %80 : vector<8x1xf32> to vector<8x512xf32>
    %82 = arith.mulf %81, %25 : vector<8x512xf32>
    %83 = vector.broadcast %11 : vector<8x1xf32> to vector<8x512xf32>
    %84 = arith.addf %83, %82 : vector<8x512xf32>
    %cst_5 = arith.constant 3.000000e+00 : f32
    %85 = vector.broadcast %cst_5 : f32 to vector<8x1xf32>
    %86 = arith.mulf %85, %13 : vector<8x1xf32>
    %87 = vector.broadcast %86 : vector<8x1xf32> to vector<8x512xf32>
    %88 = arith.mulf %87, %31 : vector<8x512xf32>
    %89 = arith.addf %84, %88 : vector<8x512xf32>
    %cst_6 = arith.constant 2.000000e+00 : f32
    %90 = vector.broadcast %cst_6 : f32 to vector<8x1xf32>
    %91 = arith.mulf %90, %16 : vector<8x1xf32>
    %92 = vector.broadcast %91 : vector<8x1xf32> to vector<8x512xf32>
    %93 = arith.mulf %92, %29 : vector<8x512xf32>
    %94 = vector.broadcast %15 : vector<8x1xf32> to vector<8x512xf32>
    %95 = arith.addf %94, %93 : vector<8x512xf32>
    %cst_7 = arith.constant 3.000000e+00 : f32
    %96 = vector.broadcast %cst_7 : f32 to vector<8x1xf32>
    %97 = arith.mulf %96, %17 : vector<8x1xf32>
    %98 = vector.broadcast %97 : vector<8x1xf32> to vector<8x512xf32>
    %99 = arith.mulf %98, %32 : vector<8x512xf32>
    %100 = arith.addf %95, %99 : vector<8x512xf32>
    %cst_8 = arith.constant 0.000000e+00 : f32
    %101 = vector.broadcast %cst_8 : f32 to vector<8x1xf32>
    %102 = arith.subf %101, %5 : vector<8x1xf32>
    %103 = vector.broadcast %102 : vector<8x1xf32> to vector<8x512xf32>
    %104 = arith.mulf %103, %34 : vector<8x512xf32>
    %105 = math.exp %104 : vector<8x512xf32>
    %106 = arith.mulf %56, %67 : vector<8x512xf32>
    %107 = arith.mulf %45, %67 : vector<8x512xf32>
    %108 = arith.mulf %45, %56 : vector<8x512xf32>
    %109 = arith.mulf %45, %106 : vector<8x512xf32>
    %110 = arith.mulf %109, %105 : vector<8x512xf32>
    %c0_9 = arith.constant 0 : index
    %c0_10 = arith.constant 0 : index
    %111 = vector.load %arg3[%c0_9, %c0_10] : memref<8x8xf32, #tpu.memory_space<vmem>>, vector<8x8xf32>
    %cst_11 = arith.constant dense<0.000000e+00> : vector<8x512xf32>
    %112 = tpu.matmul %111, %110, %cst_11 {dimension_numbers = #tpu.dot_dimension_numbers<[1], [0], [0], [1], [0, 0, 1, 1], [], []>, precision = #tpu.contract_precision<fp32>} : vector<8x8xf32>, vector<8x512xf32>, vector<8x512xf32> -> vector<8x512xf32>
    %113 = arith.mulf %110, %112 : vector<8x512xf32>
    %cst_12 = arith.constant dense<0.000000e+00> : vector<512xf32>
    %114 = vector.multi_reduction <add>, %113, %cst_12 [0] : vector<8x512xf32> to vector<512xf32>
    %115 = vector.shape_cast %114 : vector<512xf32> to vector<1x512xf32>
    %cst_13 = arith.constant 2.000000e+00 : f32
    %116 = vector.broadcast %cst_13 : f32 to vector<8x1xf32>
    %117 = arith.mulf %116, %5 : vector<8x1xf32>
    %118 = arith.mulf %106, %105 : vector<8x512xf32>
    %119 = arith.mulf %78, %118 : vector<8x512xf32>
    %120 = arith.mulf %21, %110 : vector<8x512xf32>
    %121 = vector.broadcast %117 : vector<8x1xf32> to vector<8x512xf32>
    %122 = arith.mulf %121, %120 : vector<8x512xf32>
    %123 = arith.subf %119, %122 : vector<8x512xf32>
    %124 = arith.mulf %107, %105 : vector<8x512xf32>
    %125 = arith.mulf %89, %124 : vector<8x512xf32>
    %126 = arith.mulf %25, %110 : vector<8x512xf32>
    %127 = vector.broadcast %117 : vector<8x1xf32> to vector<8x512xf32>
    %128 = arith.mulf %127, %126 : vector<8x512xf32>
    %129 = arith.subf %125, %128 : vector<8x512xf32>
    %130 = arith.mulf %108, %105 : vector<8x512xf32>
    %131 = arith.mulf %100, %130 : vector<8x512xf32>
    %132 = arith.mulf %29, %110 : vector<8x512xf32>
    %133 = vector.broadcast %117 : vector<8x1xf32> to vector<8x512xf32>
    %134 = arith.mulf %133, %132 : vector<8x512xf32>
    %135 = arith.subf %131, %134 : vector<8x512xf32>
    %136 = arith.mulf %112, %123 : vector<8x512xf32>
    %cst_14 = arith.constant dense<0.000000e+00> : vector<512xf32>
    %137 = vector.multi_reduction <add>, %136, %cst_14 [0] : vector<8x512xf32> to vector<512xf32>
    %138 = vector.shape_cast %137 : vector<512xf32> to vector<1x512xf32>
    %139 = arith.mulf %112, %129 : vector<8x512xf32>
    %cst_15 = arith.constant dense<0.000000e+00> : vector<512xf32>
    %140 = vector.multi_reduction <add>, %139, %cst_15 [0] : vector<8x512xf32> to vector<512xf32>
    %141 = vector.shape_cast %140 : vector<512xf32> to vector<1x512xf32>
    %142 = arith.mulf %112, %135 : vector<8x512xf32>
    %cst_16 = arith.constant dense<0.000000e+00> : vector<512xf32>
    %143 = vector.multi_reduction <add>, %142, %cst_16 [0] : vector<8x512xf32> to vector<512xf32>
    %144 = vector.shape_cast %143 : vector<512xf32> to vector<1x512xf32>
    %145 = arith.mulf %138, %138 : vector<1x512xf32>
    %146 = arith.mulf %141, %141 : vector<1x512xf32>
    %147 = arith.addf %145, %146 : vector<1x512xf32>
    %148 = arith.mulf %144, %144 : vector<1x512xf32>
    %149 = arith.addf %147, %148 : vector<1x512xf32>
    %150 = math.sqrt %149 : vector<1x512xf32>
    %cst_17 = arith.constant 2.000000e+00 : f32
    %151 = vector.broadcast %cst_17 : f32 to vector<1x512xf32>
    %152 = arith.mulf %151, %150 : vector<1x512xf32>
    %c0_18 = arith.constant 0 : index
    %c0_19 = arith.constant 0 : index
    %153 = vector.load %arg4[%c0_18, %c0_19] : memref<2x512xf32, #tpu.memory_space<vmem>>, vector<1x512xf32>
    tpu.vector_store %arg4[%c0_18, %c0_19], %115 {strides = array<i32>} : memref<2x512xf32, #tpu.memory_space<vmem>>, vector<1x512xf32>,
    %c1 = arith.constant 1 : index
    %c0_20 = arith.constant 0 : index
    %154 = vector.load %arg4[%c1, %c0_20] : memref<2x512xf32, #tpu.memory_space<vmem>>, vector<1x512xf32>
    tpu.vector_store %arg4[%c1, %c0_20], %152 {strides = array<i32>} : memref<2x512xf32, #tpu.memory_space<vmem>>, vector<1x512xf32>,
    return
  }
  func.func @transform_0(%arg0: i32) -> (i32, i32) {
    %c0_i32 = arith.constant 0 : i32
    %c0_i32_0 = arith.constant 0 : i32
    return %c0_i32, %arg0 : i32, i32
  }
  func.func @transform_1(%arg0: i32) -> (i32, i32) {
    %c0_i32 = arith.constant 0 : i32
    %c0_i32_0 = arith.constant 0 : i32
    %c0_i32_1 = arith.constant 0 : i32
    return %c0_i32, %c0_i32_0 : i32, i32
  }
  func.func @transform_2(%arg0: i32) -> (i32, i32) {
    %c0_i32 = arith.constant 0 : i32
    %c0_i32_0 = arith.constant 0 : i32
    %c0_i32_1 = arith.constant 0 : i32
    return %c0_i32, %c0_i32_0 : i32, i32
  }
  func.func @transform_3(%arg0: i32) -> (i32, i32) {
    %c0_i32 = arith.constant 0 : i32
    %c0_i32_0 = arith.constant 0 : i32
    return %c0_i32, %arg0 : i32, i32
  }
}

module attributes {stable_mosaic.version = 11 : i64} {
  func.func @_density_kernel(%arg0: i32, %arg1: memref<3x512xf32, #tpu.memory_space<vmem>>, %arg2: memref<8x16xf32, #tpu.memory_space<vmem>>, %arg3: memref<8x8xf32, #tpu.memory_space<vmem>>, %arg4: memref<2x512xf32, #tpu.memory_space<vmem>>) attributes {dimension_semantics = [#tpu.dimension_semantics<parallel>], iteration_bounds = array<i64: 2>, scalar_prefetch = 0 : i64, scratch_operands = 0 : i64, tpu.core_type = #tpu.core_type<tc>, window_params = [{transform_indices = @transform_0, window_bounds = array<i64: 3, 512>}, {pipeline_mode = #tpu.pipeline_mode<synchronous>, transform_indices = @transform_1, window_bounds = array<i64: 8, 16>}, {pipeline_mode = #tpu.pipeline_mode<synchronous>, transform_indices = @transform_2, window_bounds = array<i64: 8, 8>}, {transform_indices = @transform_3, window_bounds = array<i64: 2, 512>}]} {
    %c0 = arith.constant 0 : index
    %c0_0 = arith.constant 0 : index
    %0 = vector.load %arg1[%c0, %c0_0] : memref<3x512xf32, #tpu.memory_space<vmem>>, vector<3x512xf32>
    %c0_1 = arith.constant 0 : index
    %c0_2 = arith.constant 0 : index
    %1 = vector.load %arg2[%c0_1, %c0_2] : memref<8x16xf32, #tpu.memory_space<vmem>>, vector<8x16xf32>
    %2 = vector.extract_strided_slice %1 {offsets = [0, 0], sizes = [8, 1], strides = [1, 1]} : vector<8x16xf32> to vector<8x1xf32>
    %3 = vector.extract_strided_slice %1 {offsets = [0, 1], sizes = [8, 1], strides = [1, 1]} : vector<8x16xf32> to vector<8x1xf32>
    %4 = vector.extract_strided_slice %1 {offsets = [0, 2], sizes = [8, 1], strides = [1, 1]} : vector<8x16xf32> to vector<8x1xf32>
    %5 = vector.extract_strided_slice %1 {offsets = [0, 3], sizes = [8, 1], strides = [1, 1]} : vector<8x16xf32> to vector<8x1xf32>
    %6 = vector.extract_strided_slice %1 {offsets = [0, 4], sizes = [8, 1], strides = [1, 1]} : vector<8x16xf32> to vector<8x1xf32>
    %7 = vector.extract_strided_slice %1 {offsets = [0, 5], sizes = [8, 1], strides = [1, 1]} : vector<8x16xf32> to vector<8x1xf32>
    %8 = vector.extract_strided_slice %1 {offsets = [0, 6], sizes = [8, 1], strides = [1, 1]} : vector<8x16xf32> to vector<8x1xf32>
    %9 = vector.extract_strided_slice %1 {offsets = [0, 7], sizes = [8, 1], strides = [1, 1]} : vector<8x16xf32> to vector<8x1xf32>
    %10 = vector.extract_strided_slice %1 {offsets = [0, 8], sizes = [8, 1], strides = [1, 1]} : vector<8x16xf32> to vector<8x1xf32>
    %11 = vector.extract_strided_slice %1 {offsets = [0, 9], sizes = [8, 1], strides = [1, 1]} : vector<8x16xf32> to vector<8x1xf32>
    %12 = vector.extract_strided_slice %1 {offsets = [0, 10], sizes = [8, 1], strides = [1, 1]} : vector<8x16xf32> to vector<8x1xf32>
    %13 = vector.extract_strided_slice %1 {offsets = [0, 11], sizes = [8, 1], strides = [1, 1]} : vector<8x16xf32> to vector<8x1xf32>
    %14 = vector.extract_strided_slice %1 {offsets = [0, 12], sizes = [8, 1], strides = [1, 1]} : vector<8x16xf32> to vector<8x1xf32>
    %15 = vector.extract_strided_slice %1 {offsets = [0, 13], sizes = [8, 1], strides = [1, 1]} : vector<8x16xf32> to vector<8x1xf32>
    %16 = vector.extract_strided_slice %1 {offsets = [0, 14], sizes = [8, 1], strides = [1, 1]} : vector<8x16xf32> to vector<8x1xf32>
    %17 = vector.extract_strided_slice %1 {offsets = [0, 15], sizes = [8, 1], strides = [1, 1]} : vector<8x16xf32> to vector<8x1xf32>
    %18 = vector.extract_strided_slice %0 {offsets = [0, 0], sizes = [1, 512], strides = [1, 1]} : vector<3x512xf32> to vector<1x512xf32>
    %19 = vector.broadcast %18 : vector<1x512xf32> to vector<8x512xf32>
    %20 = vector.broadcast %2 : vector<8x1xf32> to vector<8x512xf32>
    %21 = arith.subf %19, %20 : vector<8x512xf32>
    %22 = vector.extract_strided_slice %0 {offsets = [1, 0], sizes = [1, 512], strides = [1, 1]} : vector<3x512xf32> to vector<1x512xf32>
    %23 = vector.broadcast %22 : vector<1x512xf32> to vector<8x512xf32>
    %24 = vector.broadcast %3 : vector<8x1xf32> to vector<8x512xf32>
    %25 = arith.subf %23, %24 : vector<8x512xf32>
    %26 = vector.extract_strided_slice %0 {offsets = [2, 0], sizes = [1, 512], strides = [1, 1]} : vector<3x512xf32> to vector<1x512xf32>
    %27 = vector.broadcast %26 : vector<1x512xf32> to vector<8x512xf32>
    %28 = vector.broadcast %4 : vector<8x1xf32> to vector<8x512xf32>
    %29 = arith.subf %27, %28 : vector<8x512xf32>
    %30 = arith.mulf %21, %21 : vector<8x512xf32>
    %31 = arith.mulf %25, %25 : vector<8x512xf32>
    %32 = arith.mulf %29, %29 : vector<8x512xf32>
    %33 = arith.addf %30, %31 : vector<8x512xf32>
    %34 = arith.addf %33, %32 : vector<8x512xf32>
    %35 = vector.broadcast %7 : vector<8x1xf32> to vector<8x512xf32>
    %36 = arith.mulf %35, %21 : vector<8x512xf32>
    %37 = vector.broadcast %6 : vector<8x1xf32> to vector<8x512xf32>
    %38 = arith.addf %37, %36 : vector<8x512xf32>
    %39 = vector.broadcast %8 : vector<8x1xf32> to vector<8x512xf32>
    %40 = arith.mulf %39, %30 : vector<8x512xf32>
    %41 = arith.addf %38, %40 : vector<8x512xf32>
    %42 = arith.mulf %30, %21 : vector<8x512xf32>
    %43 = vector.broadcast %9 : vector<8x1xf32> to vector<8x512xf32>
    %44 = arith.mulf %43, %42 : vector<8x512xf32>
    %45 = arith.addf %41, %44 : vector<8x512xf32>
    %46 = vector.broadcast %11 : vector<8x1xf32> to vector<8x512xf32>
    %47 = arith.mulf %46, %25 : vector<8x512xf32>
    %48 = vector.broadcast %10 : vector<8x1xf32> to vector<8x512xf32>
    %49 = arith.addf %48, %47 : vector<8x512xf32>
    %50 = vector.broadcast %12 : vector<8x1xf32> to vector<8x512xf32>
    %51 = arith.mulf %50, %31 : vector<8x512xf32>
    %52 = arith.addf %49, %51 : vector<8x512xf32>
    %53 = arith.mulf %31, %25 : vector<8x512xf32>
    %54 = vector.broadcast %13 : vector<8x1xf32> to vector<8x512xf32>
    %55 = arith.mulf %54, %53 : vector<8x512xf32>
    %56 = arith.addf %52, %55 : vector<8x512xf32>
    %57 = vector.broadcast %15 : vector<8x1xf32> to vector<8x512xf32>
    %58 = arith.mulf %57, %29 : vector<8x512xf32>
    %59 = vector.broadcast %14 : vector<8x1xf32> to vector<8x512xf32>
    %60 = arith.addf %59, %58 : vector<8x512xf32>
    %61 = vector.broadcast %16 : vector<8x1xf32> to vector<8x512xf32>
    %62 = arith.mulf %61, %32 : vector<8x512xf32>
    %63 = arith.addf %60, %62 : vector<8x512xf32>
    %64 = arith.mulf %32, %29 : vector<8x512xf32>
    %65 = vector.broadcast %17 : vector<8x1xf32> to vector<8x512xf32>
    %66 = arith.mulf %65, %64 : vector<8x512xf32>
    %67 = arith.addf %63, %66 : vector<8x512xf32>
    %cst = arith.constant 2.000000e+00 : f32
    %68 = vector.broadcast %cst : f32 to vector<8x1xf32>
    %69 = arith.mulf %68, %8 : vector<8x1xf32>
    %70 = vector.broadcast %69 : vector<8x1xf32> to vector<8x512xf32>
    %71 = arith.mulf %70, %21 : vector<8x512xf32>
    %72 = vector.broadcast %7 : vector<8x1xf32> to vector<8x512xf32>
    %73 = arith.addf %72, %71 : vector<8x512xf32>
    %cst_3 = arith.constant 3.000000e+00 : f32
    %74 = vector.broadcast %cst_3 : f32 to vector<8x1xf32>
    %75 = arith.mulf %74, %9 : vector<8x1xf32>
    %76 = vector.broadcast %75 : vector<8x1xf32> to vector<8x512xf32>
    %77 = arith.mulf %76, %30 : vector<8x512xf32>
    %78 = arith.addf %73, %77 : vector<8x512xf32>
    %cst_4 = arith.constant 2.000000e+00 : f32
    %79 = vector.broadcast %cst_4 : f32 to vector<8x1xf32>
    %80 = arith.mulf %79, %12 : vector<8x1xf32>
    %81 = vector.broadcast %80 : vector<8x1xf32> to vector<8x512xf32>
    %82 = arith.mulf %81, %25 : vector<8x512xf32>
    %83 = vector.broadcast %11 : vector<8x1xf32> to vector<8x512xf32>
    %84 = arith.addf %83, %82 : vector<8x512xf32>
    %cst_5 = arith.constant 3.000000e+00 : f32
    %85 = vector.broadcast %cst_5 : f32 to vector<8x1xf32>
    %86 = arith.mulf %85, %13 : vector<8x1xf32>
    %87 = vector.broadcast %86 : vector<8x1xf32> to vector<8x512xf32>
    %88 = arith.mulf %87, %31 : vector<8x512xf32>
    %89 = arith.addf %84, %88 : vector<8x512xf32>
    %cst_6 = arith.constant 2.000000e+00 : f32
    %90 = vector.broadcast %cst_6 : f32 to vector<8x1xf32>
    %91 = arith.mulf %90, %16 : vector<8x1xf32>
    %92 = vector.broadcast %91 : vector<8x1xf32> to vector<8x512xf32>
    %93 = arith.mulf %92, %29 : vector<8x512xf32>
    %94 = vector.broadcast %15 : vector<8x1xf32> to vector<8x512xf32>
    %95 = arith.addf %94, %93 : vector<8x512xf32>
    %cst_7 = arith.constant 3.000000e+00 : f32
    %96 = vector.broadcast %cst_7 : f32 to vector<8x1xf32>
    %97 = arith.mulf %96, %17 : vector<8x1xf32>
    %98 = vector.broadcast %97 : vector<8x1xf32> to vector<8x512xf32>
    %99 = arith.mulf %98, %32 : vector<8x512xf32>
    %100 = arith.addf %95, %99 : vector<8x512xf32>
    %cst_8 = arith.constant 0.000000e+00 : f32
    %101 = vector.broadcast %cst_8 : f32 to vector<8x1xf32>
    %102 = arith.subf %101, %5 : vector<8x1xf32>
    %103 = vector.broadcast %102 : vector<8x1xf32> to vector<8x512xf32>
    %104 = arith.mulf %103, %34 : vector<8x512xf32>
    %105 = math.exp %104 : vector<8x512xf32>
    %106 = arith.mulf %56, %67 : vector<8x512xf32>
    %107 = arith.mulf %45, %67 : vector<8x512xf32>
    %108 = arith.mulf %45, %56 : vector<8x512xf32>
    %109 = arith.mulf %45, %106 : vector<8x512xf32>
    %110 = arith.mulf %109, %105 : vector<8x512xf32>
    %c0_9 = arith.constant 0 : index
    %c0_10 = arith.constant 0 : index
    %111 = vector.load %arg3[%c0_9, %c0_10] : memref<8x8xf32, #tpu.memory_space<vmem>>, vector<8x8xf32>
    %112 = vector.extract_strided_slice %111 {offsets = [0, 0], sizes = [8, 1], strides = [1, 1]} : vector<8x8xf32> to vector<8x1xf32>
    %113 = vector.extract_strided_slice %110 {offsets = [0, 0], sizes = [1, 512], strides = [1, 1]} : vector<8x512xf32> to vector<1x512xf32>
    %114 = vector.broadcast %112 : vector<8x1xf32> to vector<8x512xf32>
    %115 = vector.broadcast %113 : vector<1x512xf32> to vector<8x512xf32>
    %116 = arith.mulf %114, %115 : vector<8x512xf32>
    %117 = vector.extract_strided_slice %111 {offsets = [0, 1], sizes = [8, 1], strides = [1, 1]} : vector<8x8xf32> to vector<8x1xf32>
    %118 = vector.extract_strided_slice %110 {offsets = [1, 0], sizes = [1, 512], strides = [1, 1]} : vector<8x512xf32> to vector<1x512xf32>
    %119 = vector.broadcast %117 : vector<8x1xf32> to vector<8x512xf32>
    %120 = vector.broadcast %118 : vector<1x512xf32> to vector<8x512xf32>
    %121 = arith.mulf %119, %120 : vector<8x512xf32>
    %122 = arith.addf %116, %121 : vector<8x512xf32>
    %123 = vector.extract_strided_slice %111 {offsets = [0, 2], sizes = [8, 1], strides = [1, 1]} : vector<8x8xf32> to vector<8x1xf32>
    %124 = vector.extract_strided_slice %110 {offsets = [2, 0], sizes = [1, 512], strides = [1, 1]} : vector<8x512xf32> to vector<1x512xf32>
    %125 = vector.broadcast %123 : vector<8x1xf32> to vector<8x512xf32>
    %126 = vector.broadcast %124 : vector<1x512xf32> to vector<8x512xf32>
    %127 = arith.mulf %125, %126 : vector<8x512xf32>
    %128 = arith.addf %122, %127 : vector<8x512xf32>
    %129 = vector.extract_strided_slice %111 {offsets = [0, 3], sizes = [8, 1], strides = [1, 1]} : vector<8x8xf32> to vector<8x1xf32>
    %130 = vector.extract_strided_slice %110 {offsets = [3, 0], sizes = [1, 512], strides = [1, 1]} : vector<8x512xf32> to vector<1x512xf32>
    %131 = vector.broadcast %129 : vector<8x1xf32> to vector<8x512xf32>
    %132 = vector.broadcast %130 : vector<1x512xf32> to vector<8x512xf32>
    %133 = arith.mulf %131, %132 : vector<8x512xf32>
    %134 = arith.addf %128, %133 : vector<8x512xf32>
    %135 = vector.extract_strided_slice %111 {offsets = [0, 4], sizes = [8, 1], strides = [1, 1]} : vector<8x8xf32> to vector<8x1xf32>
    %136 = vector.extract_strided_slice %110 {offsets = [4, 0], sizes = [1, 512], strides = [1, 1]} : vector<8x512xf32> to vector<1x512xf32>
    %137 = vector.broadcast %135 : vector<8x1xf32> to vector<8x512xf32>
    %138 = vector.broadcast %136 : vector<1x512xf32> to vector<8x512xf32>
    %139 = arith.mulf %137, %138 : vector<8x512xf32>
    %140 = arith.addf %134, %139 : vector<8x512xf32>
    %141 = vector.extract_strided_slice %111 {offsets = [0, 5], sizes = [8, 1], strides = [1, 1]} : vector<8x8xf32> to vector<8x1xf32>
    %142 = vector.extract_strided_slice %110 {offsets = [5, 0], sizes = [1, 512], strides = [1, 1]} : vector<8x512xf32> to vector<1x512xf32>
    %143 = vector.broadcast %141 : vector<8x1xf32> to vector<8x512xf32>
    %144 = vector.broadcast %142 : vector<1x512xf32> to vector<8x512xf32>
    %145 = arith.mulf %143, %144 : vector<8x512xf32>
    %146 = arith.addf %140, %145 : vector<8x512xf32>
    %147 = vector.extract_strided_slice %111 {offsets = [0, 6], sizes = [8, 1], strides = [1, 1]} : vector<8x8xf32> to vector<8x1xf32>
    %148 = vector.extract_strided_slice %110 {offsets = [6, 0], sizes = [1, 512], strides = [1, 1]} : vector<8x512xf32> to vector<1x512xf32>
    %149 = vector.broadcast %147 : vector<8x1xf32> to vector<8x512xf32>
    %150 = vector.broadcast %148 : vector<1x512xf32> to vector<8x512xf32>
    %151 = arith.mulf %149, %150 : vector<8x512xf32>
    %152 = arith.addf %146, %151 : vector<8x512xf32>
    %153 = vector.extract_strided_slice %111 {offsets = [0, 7], sizes = [8, 1], strides = [1, 1]} : vector<8x8xf32> to vector<8x1xf32>
    %154 = vector.extract_strided_slice %110 {offsets = [7, 0], sizes = [1, 512], strides = [1, 1]} : vector<8x512xf32> to vector<1x512xf32>
    %155 = vector.broadcast %153 : vector<8x1xf32> to vector<8x512xf32>
    %156 = vector.broadcast %154 : vector<1x512xf32> to vector<8x512xf32>
    %157 = arith.mulf %155, %156 : vector<8x512xf32>
    %158 = arith.addf %152, %157 : vector<8x512xf32>
    %159 = arith.mulf %110, %158 : vector<8x512xf32>
    %cst_11 = arith.constant dense<0.000000e+00> : vector<512xf32>
    %160 = vector.multi_reduction <add>, %159, %cst_11 [0] : vector<8x512xf32> to vector<512xf32>
    %161 = vector.shape_cast %160 : vector<512xf32> to vector<1x512xf32>
    %cst_12 = arith.constant 2.000000e+00 : f32
    %162 = vector.broadcast %cst_12 : f32 to vector<8x1xf32>
    %163 = arith.mulf %162, %5 : vector<8x1xf32>
    %164 = arith.mulf %106, %105 : vector<8x512xf32>
    %165 = arith.mulf %78, %164 : vector<8x512xf32>
    %166 = arith.mulf %21, %110 : vector<8x512xf32>
    %167 = vector.broadcast %163 : vector<8x1xf32> to vector<8x512xf32>
    %168 = arith.mulf %167, %166 : vector<8x512xf32>
    %169 = arith.subf %165, %168 : vector<8x512xf32>
    %170 = arith.mulf %107, %105 : vector<8x512xf32>
    %171 = arith.mulf %89, %170 : vector<8x512xf32>
    %172 = arith.mulf %25, %110 : vector<8x512xf32>
    %173 = vector.broadcast %163 : vector<8x1xf32> to vector<8x512xf32>
    %174 = arith.mulf %173, %172 : vector<8x512xf32>
    %175 = arith.subf %171, %174 : vector<8x512xf32>
    %176 = arith.mulf %108, %105 : vector<8x512xf32>
    %177 = arith.mulf %100, %176 : vector<8x512xf32>
    %178 = arith.mulf %29, %110 : vector<8x512xf32>
    %179 = vector.broadcast %163 : vector<8x1xf32> to vector<8x512xf32>
    %180 = arith.mulf %179, %178 : vector<8x512xf32>
    %181 = arith.subf %177, %180 : vector<8x512xf32>
    %182 = arith.mulf %158, %169 : vector<8x512xf32>
    %cst_13 = arith.constant dense<0.000000e+00> : vector<512xf32>
    %183 = vector.multi_reduction <add>, %182, %cst_13 [0] : vector<8x512xf32> to vector<512xf32>
    %184 = vector.shape_cast %183 : vector<512xf32> to vector<1x512xf32>
    %185 = arith.mulf %158, %175 : vector<8x512xf32>
    %cst_14 = arith.constant dense<0.000000e+00> : vector<512xf32>
    %186 = vector.multi_reduction <add>, %185, %cst_14 [0] : vector<8x512xf32> to vector<512xf32>
    %187 = vector.shape_cast %186 : vector<512xf32> to vector<1x512xf32>
    %188 = arith.mulf %158, %181 : vector<8x512xf32>
    %cst_15 = arith.constant dense<0.000000e+00> : vector<512xf32>
    %189 = vector.multi_reduction <add>, %188, %cst_15 [0] : vector<8x512xf32> to vector<512xf32>
    %190 = vector.shape_cast %189 : vector<512xf32> to vector<1x512xf32>
    %191 = arith.mulf %184, %184 : vector<1x512xf32>
    %192 = arith.mulf %187, %187 : vector<1x512xf32>
    %193 = arith.addf %191, %192 : vector<1x512xf32>
    %194 = arith.mulf %190, %190 : vector<1x512xf32>
    %195 = arith.addf %193, %194 : vector<1x512xf32>
    %196 = math.sqrt %195 : vector<1x512xf32>
    %cst_16 = arith.constant 2.000000e+00 : f32
    %197 = vector.broadcast %cst_16 : f32 to vector<1x512xf32>
    %198 = arith.mulf %197, %196 : vector<1x512xf32>
    %c0_17 = arith.constant 0 : index
    %c0_18 = arith.constant 0 : index
    %199 = vector.load %arg4[%c0_17, %c0_18] : memref<2x512xf32, #tpu.memory_space<vmem>>, vector<1x512xf32>
    tpu.vector_store %arg4[%c0_17, %c0_18], %161 {strides = array<i32>} : memref<2x512xf32, #tpu.memory_space<vmem>>, vector<1x512xf32>,
    %c1 = arith.constant 1 : index
    %c0_19 = arith.constant 0 : index
    %200 = vector.load %arg4[%c1, %c0_19] : memref<2x512xf32, #tpu.memory_space<vmem>>, vector<1x512xf32>
    tpu.vector_store %arg4[%c1, %c0_19], %198 {strides = array<i32>} : memref<2x512xf32, #tpu.memory_space<vmem>>, vector<1x512xf32>,
    return
  }
  func.func @transform_0(%arg0: i32) -> (i32, i32) {
    %c0_i32 = arith.constant 0 : i32
    %c0_i32_0 = arith.constant 0 : i32
    return %c0_i32, %arg0 : i32, i32
  }
  func.func @transform_1(%arg0: i32) -> (i32, i32) {
    %c0_i32 = arith.constant 0 : i32
    %c0_i32_0 = arith.constant 0 : i32
    %c0_i32_1 = arith.constant 0 : i32
    return %c0_i32, %c0_i32_0 : i32, i32
  }
  func.func @transform_2(%arg0: i32) -> (i32, i32) {
    %c0_i32 = arith.constant 0 : i32
    %c0_i32_0 = arith.constant 0 : i32
    %c0_i32_1 = arith.constant 0 : i32
    return %c0_i32, %c0_i32_0 : i32, i32
  }
  func.func @transform_3(%arg0: i32) -> (i32, i32) {
    %c0_i32 = arith.constant 0 : i32
    %c0_i32_0 = arith.constant 0 : i32
    return %c0_i32, %arg0 : i32, i32
  }
}

</mosaic_0001>

<llo_original>
// kernel: tpu_custom_call.1
$region0: #{tpu_custom_call.1}
  #allocation0 [shape = 'u32[]', space=smem, size = 0x4, offset = 0x4, fixed_abs, tag = 'smem constant byte address 0x4 - core index']
  #allocation1 [shape = 'u32[144,128]{1,0:T(1,128)}', space=vmem, size = 0x12000, scoped, tag = 'internal scratch']
  %s0 = inlined_call_operand.hbm [shape: f32[3,1024], index: 0, kind: input, shape index: {}]
  %s1 = inlined_call_operand.hbm [shape: f32[8,16], index: 1, kind: input, shape index: {}]
  %s2 = inlined_call_operand.hbm [shape: f32[8,8], index: 2, kind: input, shape index: {}]
  %s3 = inlined_call_operand.hbm [shape: f32[2,1024], index: 3, kind: output, shape index: {}]
  %s4 = sld [smem:[#allocation0]]
  $region57: #{tpu_custom_call.1} parent=0
    _
  %s6 = ssub.s32 1, %s4
  %s7 = scalar_select 0, %s6, %s4
  $region1: #{tpu_custom_call.1} parent=0
    #allocation2 [shape = 'u8[16384]{0}', space=vmem, size = 0x4000, scoped, tag = 'input window, operand 0']
    #allocation3 [shape = 's32[2]{0}', space=sflag, size = 0x8, scoped, tag = 'scoped memory for tpu_custom_call.1']
    #allocation4 [shape = 's32[2]{0}', space=sflag, size = 0x8, scoped, tag = 'scoped memory for tpu_custom_call.1']
    #allocation5 [shape = 'u8[4096]{0}', space=vmem, size = 0x1000, scoped, tag = 'input window, operand 1, single buffered']
    #allocation6 [shape = 's32[1]{0}', space=sflag, size = 0x4, scoped, tag = 'scoped memory for tpu_custom_call.1']
    #allocation7 [shape = 'u8[4096]{0}', space=vmem, size = 0x1000, scoped, tag = 'input window, operand 2, single buffered']
    #allocation8 [shape = 'u8[8192]{0}', space=vmem, size = 0x2000, scoped, tag = 'output window, operand 0']
    %8 = vsyncpa [#allocation3], 0
    %s9 = scalar_lea.sflag [#allocation3], 1
    %10 = vsyncpa %s9, 0
    %11 = vsyncpa [#allocation6], 0
    %12 = vsyncpa [#allocation4], 0
    %s13 = scalar_lea.sflag [#allocation4], 1
    %14 = vsyncpa %s13, 0
    loop: start=0, step=1, limit=4
    $region2: #{tpu_custom_call.1} parent=1 // loop_pre_header
      _
    $region3: #{tpu_custom_call.1} parent=1 // loop_header
      %s16 = sphi 0, %s20
      %p17 = scmp.ge.s32.totalorder %s16, 4
      %s26 = sphi 0, %s28
      %s29 = sphi 0, %s26
      %s30 = sphi 0, %s29
      %s46 = sphi 0, %s30
      %s50 = sphi 0, %s50
      %s52 = sphi 0, %s50
      %s53 = sphi 0, %s52
      %s67 = sphi 0, %s53
      %s71 = sphi 0, %s71
      %s73 = sphi 0, %s71
      %s74 = sphi 0, %s73
      %s88 = sphi 0, %s74
      %s94 = sphi 0, %s96
      %s97 = sphi 0, %s94
      %s98 = sphi 0, %s97
      %s114 = sphi 0, %s98
    $region4: #{tpu_custom_call.1} parent=1 // loop_header_branch
      %19 = sbr.rel (%p17) target = $region8
    $region5: #{tpu_custom_call.1} parent=1 // loop_body
      %s21 = ssub.s32 %s16, 1
      %s22 = ssub.s32 %s16, 2
      %s23 = sadd.s32 %s16, 1
      %s24 = ssub.s32 %s16, %s23
      %p25 = scmp.eq.s32.totalorder %s24, 0
      %s27 = sadd.s32 %s26, 1
      %s28 = scalar_select %p25, %s26, %s27
      %p31 = pneg %p25
      %p32 = scmp.eq.s32.totalorder %s16, 1
      %p33 = por %p31, %p32
      %p34 = scmp.ne.s32.totalorder %s26, %s29
      %p35 = scmp.eq.s32.totalorder %s16, 0
      %p36 = por %p34, %p35
      %p37 = scmp.ne.s32.totalorder %s26, %s29
      %p38 = scmp.eq.s32.totalorder %s21, 1
      %p39 = por %p37, %p38
      %p40 = scmp.ne.s32.totalorder %s29, %s30
      %p41 = scmp.eq.s32.totalorder %s21, 0
      %p42 = por %p40, %p41
      %p43 = scmp.ne.s32.totalorder %s29, %s30
      %p44 = scmp.eq.s32.totalorder %s22, 1
      %p45 = por %p43, %p44
      %p47 = scmp.ne.s32.totalorder %s30, %s46
      %p48 = scmp.eq.s32.totalorder %s22, 0
      %p49 = por %p47, %p48
      %s51 = sadd.s32 %s50, 1
      %p54 = scmp.eq.s32.totalorder %s16, 1
      %p55 = scmp.ne.s32.totalorder %s50, %s52
      %p56 = scmp.eq.s32.totalorder %s16, 0
      %p57 = por %p55, %p56
      %p58 = scmp.ne.s32.totalorder %s50, %s52
      %p59 = scmp.eq.s32.totalorder %s21, 1
      %p60 = por %p58, %p59
      %p61 = scmp.ne.s32.totalorder %s52, %s53
      %p62 = scmp.eq.s32.totalorder %s21, 0
      %p63 = por %p61, %p62
      %p64 = scmp.ne.s32.totalorder %s52, %s53
      %p65 = scmp.eq.s32.totalorder %s22, 1
      %p66 = por %p64, %p65
      %p68 = scmp.ne.s32.totalorder %s53, %s67
      %p69 = scmp.eq.s32.totalorder %s22, 0
      %p70 = por %p68, %p69
      %s72 = sadd.s32 %s71, 1
      %p75 = scmp.eq.s32.totalorder %s16, 1
      %p76 = scmp.ne.s32.totalorder %s71, %s73
      %p77 = scmp.eq.s32.totalorder %s16, 0
      %p78 = por %p76, %p77
      %p79 = scmp.ne.s32.totalorder %s71, %s73
      %p80 = scmp.eq.s32.totalorder %s21, 1
      %p81 = por %p79, %p80
      %p82 = scmp.ne.s32.totalorder %s73, %s74
      %p83 = scmp.eq.s32.totalorder %s21, 0
      %p84 = por %p82, %p83
      %p85 = scmp.ne.s32.totalorder %s73, %s74
      %p86 = scmp.eq.s32.totalorder %s22, 1
      %p87 = por %p85, %p86
      %p89 = scmp.ne.s32.totalorder %s74, %s88
      %p90 = scmp.eq.s32.totalorder %s22, 0
      %p91 = por %p89, %p90
      %s92 = ssub.s32 %s16, %s23
      %p93 = scmp.eq.s32.totalorder %s92, 0
      %s95 = sadd.s32 %s94, 1
      %s96 = scalar_select %p93, %s94, %s95
      %p99 = pneg %p93
      %p100 = scmp.eq.s32.totalorder %s16, 1
      %p101 = por %p99, %p100
      %p102 = scmp.ne.s32.totalorder %s94, %s97
      %p103 = scmp.eq.s32.totalorder %s16, 0
      %p104 = por %p102, %p103
      %p105 = scmp.ne.s32.totalorder %s94, %s97
      %p106 = scmp.eq.s32.totalorder %s21, 1
      %p107 = por %p105, %p106
      %p108 = scmp.ne.s32.totalorder %s97, %s98
      %p109 = scmp.eq.s32.totalorder %s21, 0
      %p110 = por %p108, %p109
      %p111 = scmp.ne.s32.totalorder %s97, %s98
      %p112 = scmp.eq.s32.totalorder %s22, 1
      %p113 = por %p111, %p112
      %p115 = scmp.ne.s32.totalorder %s98, %s114
      %p116 = scmp.eq.s32.totalorder %s22, 0
      %p117 = por %p115, %p116
      %p118 = scmp.le.s32.totalorder 1, %s16
      %p119 = scmp.lt.s32.totalorder %s16, 3
      %p120 = pnand %p118, %p119
      %p121 = pneg %p120
      // Predicated region
      $region9: #{tpu_custom_call.1} parent=5 // pred_check
        _
      $region10: #{tpu_custom_call.1} parent=5 // pred_check_branch
        %123 = sbr.rel (%p120) target = $region12
      $region11: #{tpu_custom_call.1} parent=5 // pred_region
        %s124 = ssub.s32 %s16, 1
        // Predicated region
        $region13: #{tpu_custom_call.1} parent=11 // pred_check
          %p125 = pneg %p63
        $region14: #{tpu_custom_call.1} parent=11 // pred_check_branch
          %127 = sbr.rel (%p125) target = $region16
        $region15: #{tpu_custom_call.1} parent=11 // pred_region
          %s129 = ssub.s32 128, 128
          %130 = vsyncadd [#allocation6], %s129
          %s132 = sshll.u32 [#allocation5], 4
          %s133 = int_to_ptr.vmem [resolvable:$true] %s132
          %135 = dma.hbm_to_vmem [thread:$0]  %s1, 128, %s133, [#allocation6]
        $region16: #{tpu_custom_call.1} parent=11 // pred_fallthru
          _
        // Predicated region
        $region17: #{tpu_custom_call.1} parent=11 // pred_check
          %p136 = pneg %p84
        $region18: #{tpu_custom_call.1} parent=11 // pred_check_branch
          %138 = sbr.rel (%p136) target = $region20
        $region19: #{tpu_custom_call.1} parent=11 // pred_region
          %s140 = ssub.s32 128, 128
          %141 = vsyncadd [#allocation6], %s140
          %s143 = sshll.u32 [#allocation7], 4
          %s144 = int_to_ptr.vmem [resolvable:$true] %s143
          %146 = dma.hbm_to_vmem [thread:$0]  %s2, 128, %s144, [#allocation6]
        $region20: #{tpu_custom_call.1} parent=11 // pred_fallthru
          _
      $region12: #{tpu_custom_call.1} parent=5 // pred_fallthru
        _
      %p147 = scmp.lt.s32.totalorder %s16, 2
      // Predicated region
      $region21: #{tpu_custom_call.1} parent=5 // pred_check
        %p148 = pneg %p147
      $region22: #{tpu_custom_call.1} parent=5 // pred_check_branch
        %150 = sbr.rel (%p148) target = $region24
      $region23: #{tpu_custom_call.1} parent=5 // pred_region
        // Predicated region
        $region25: #{tpu_custom_call.1} parent=23 // pred_check
          %p151 = pneg %p36
        $region26: #{tpu_custom_call.1} parent=23 // pred_check_branch
          %153 = sbr.rel (%p151) target = $region28
        $region27: #{tpu_custom_call.1} parent=23 // pred_region
          %s154 = sand.u32 %s26, 1
          %s155 = scalar_lea.sflag [#allocation3], %s154
          %s156 = sand.u32 %s26, 1
          %s157 = smul.addr %s156, 16
          %s158 = scalar_lea.vmem [#allocation2], %s157
          %s159 = smul.u32 4, %s16
          %s161 = ssub.s32 256, 256
          %162 = vsyncadd %s155, %s161
          %s163 = smul.addr %s159, 64
          %s164 = scalar_lea.hbm %s0, %s163
          %s166 = sshll.u32 %s158, 4
          %s167 = int_to_ptr.vmem [resolvable:$true] %s166
          %169 = dma.hbm_to_vmem [thread:$0]  %s164, 256, %s167, %s155
        $region28: #{tpu_custom_call.1} parent=23 // pred_fallthru
          _
      $region24: #{tpu_custom_call.1} parent=5 // pred_fallthru
        _
      %p170 = scmp.le.s32.totalorder 1, %s16
      %p171 = scmp.lt.s32.totalorder %s16, 3
      %p172 = pnand %p170, %p171
      %p173 = pneg %p172
      // Predicated region
      $region29: #{tpu_custom_call.1} parent=5 // pred_check
        _
      $region30: #{tpu_custom_call.1} parent=5 // pred_check_branch
        %175 = sbr.rel (%p172) target = $region32
      $region31: #{tpu_custom_call.1} parent=5 // pred_region
        %s176 = ssub.s32 %s16, 1
        %s177 = sand.u32 %s29, 1
        %s178 = scalar_lea.sflag [#allocation3], %s177
        %s179 = sand.u32 %s29, 1
        %s180 = smul.addr %s179, 16
        %s181 = scalar_lea.vmem [#allocation2], %s180
        // Predicated region
        $region33: #{tpu_custom_call.1} parent=31 // pred_check
          %p182 = pneg %p42
        $region34: #{tpu_custom_call.1} parent=31 // pred_check_branch
          %184 = sbr.rel (%p182) target = $region36
        $region35: #{tpu_custom_call.1} parent=31 // pred_region
          %185 = dma.done %s178, 256
        $region36: #{tpu_custom_call.1} parent=31 // pred_fallthru
          _
        // Predicated region
        $region37: #{tpu_custom_call.1} parent=31 // pred_check
          %p186 = pneg %p63
        $region38: #{tpu_custom_call.1} parent=31 // pred_check_branch
          %188 = sbr.rel (%p186) target = $region40
        $region39: #{tpu_custom_call.1} parent=31 // pred_region
          %189 = dma.done [#allocation6], 128
        $region40: #{tpu_custom_call.1} parent=31 // pred_fallthru
          _
        // Predicated region
        $region41: #{tpu_custom_call.1} parent=31 // pred_check
          %p190 = pneg %p84
        $region42: #{tpu_custom_call.1} parent=31 // pred_check_branch
          %192 = sbr.rel (%p190) target = $region44
        $region43: #{tpu_custom_call.1} parent=31 // pred_region
          %193 = dma.done [#allocation6], 128
        $region44: #{tpu_custom_call.1} parent=31 // pred_fallthru
          _
        %s194 = sand.u32 %s29, 1
        %s195 = scalar_lea.sflag [#allocation3], %s194
        %s196 = sand.u32 %s29, 1
        %s197 = smul.addr %s196, 16
        %s198 = scalar_lea.vmem [#allocation2], %s197
        %p199 = pneg %p42
        %p200 = pneg %p39
        %p201 = pneg %p63
        %p202 = pneg %p60
        %p203 = pneg %p84
        %p204 = pneg %p81
        %p205 = pneg %p110
        %p206 = pneg %p107
        %s207 = sand.u32 %s97, 1
        %s208 = scalar_lea.sflag [#allocation4], %s207
        %s209 = sand.u32 %s97, 1
        %s210 = smul.addr %s209, 8
        %s211 = scalar_lea.vmem [#allocation8], %s210
        %s212 = smul.u32 4, %s21
        %s213 = smul.u32 4, %s21
        %v214 = vld [vmem:[%s181] sm:$0x77]
        %v215 = vld [vmem:[%s181 + $0x8] sm:$0x77]
        %v216 = vld [vmem:[#allocation5] sm:$0xff]
        %v219 = vlaneseq
        %v220 = vshrl.u32 %v219, 7
        %v221 = vsub.s32 0, %v220
        %v222 = vrot.slane %v214, %v221
        %v223 = vlaneseq
        %v224 = vshrl.u32 %v223, 7
        %v225 = vsub.s32 4, %v224
        %v226 = vrot.slane %v214, %v225
        %v227 = vlaneseq
        %v228 = vshrl.u32 %v227, 7
        %v229 = vsub.s32 0, %v228
        %v230 = vrot.slane %v215, %v229
        %v231 = vlaneseq
        %v232 = vshrl.u32 %v231, 7
        %v233 = vsub.s32 4, %v232
        %v234 = vrot.slane %v215, %v233
        %v239 = vlaneseq
        %v240 = vshrl.u32 %v239, 7
        %v241 = vsub.s32 0, %v240
        %v242 = vrot.slane %v222, %v241
        %v243 = vlaneseq
        %v244 = vshrl.u32 %v243, 7
        %v245 = vsub.s32 0, %v244
        %v246 = vrot.slane %v226, %v245
        %v247 = vlaneseq
        %v248 = vshrl.u32 %v247, 7
        %v249 = vsub.s32 0, %v248
        %v250 = vrot.slane %v230, %v249
        %v251 = vlaneseq
        %v252 = vshrl.u32 %v251, 7
        %v253 = vsub.s32 0, %v252
        %v254 = vrot.slane %v234, %v253
        %256 = vset.pattern.permute.xlu0 0
        %257 = vperm.xlu0 %256, %v216
        %v258 = vpop.permute.xlu0 %257
        %v260 = vsub.f32 %v242, %v258
        %v261 = vsub.f32 %v246, %v258
        %v262 = vsub.f32 %v250, %v258
        %v263 = vsub.f32 %v254, %v258
        %v264 = vlaneseq
        %v265 = vshrl.u32 %v264, 7
        %v266 = vsub.s32 1, %v265
        %v267 = vrot.slane %v214, %v266
        %v268 = vlaneseq
        %v269 = vshrl.u32 %v268, 7
        %v270 = vsub.s32 5, %v269
        %v271 = vrot.slane %v214, %v270
        %v272 = vlaneseq
        %v273 = vshrl.u32 %v272, 7
        %v274 = vsub.s32 1, %v273
        %v275 = vrot.slane %v215, %v274
        %v276 = vlaneseq
        %v277 = vshrl.u32 %v276, 7
        %v278 = vsub.s32 5, %v277
        %v279 = vrot.slane %v215, %v278
        %v284 = vlaneseq
        %v285 = vshrl.u32 %v284, 7
        %v286 = vsub.s32 1, %v285
        %v287 = vrot.slane %v267, %v286
        %v288 = vlaneseq
        %v289 = vshrl.u32 %v288, 7
        %v290 = vsub.s32 1, %v289
        %v291 = vrot.slane %v271, %v290
        %v292 = vlaneseq
        %v293 = vshrl.u32 %v292, 7
        %v294 = vsub.s32 1, %v293
        %v295 = vrot.slane %v275, %v294
        %v296 = vlaneseq
        %v297 = vshrl.u32 %v296, 7
        %v298 = vsub.s32 1, %v297
        %v299 = vrot.slane %v279, %v298
        %300 = vset.pattern.permute.xlu0 1
        %301 = vperm.xlu0 %300, %v216
        %v302 = vpop.permute.xlu0 %301
        %v304 = vsub.f32 %v287, %v302
        %v305 = vsub.f32 %v291, %v302
        %v306 = vsub.f32 %v295, %v302
        %v307 = vsub.f32 %v299, %v302
        %v308 = vlaneseq
        %v309 = vshrl.u32 %v308, 7
        %v310 = vsub.s32 2, %v309
        %v311 = vrot.slane %v214, %v310
        %v312 = vlaneseq
        %v313 = vshrl.u32 %v312, 7
        %v314 = vsub.s32 6, %v313
        %v315 = vrot.slane %v214, %v314
        %v316 = vlaneseq
        %v317 = vshrl.u32 %v316, 7
        %v318 = vsub.s32 2, %v317
        %v319 = vrot.slane %v215, %v318
        %v320 = vlaneseq
        %v321 = vshrl.u32 %v320, 7
        %v322 = vsub.s32 6, %v321
        %v323 = vrot.slane %v215, %v322
        %v328 = vlaneseq
        %v329 = vshrl.u32 %v328, 7
        %v330 = vsub.s32 2, %v329
        %v331 = vrot.slane %v311, %v330
        %v332 = vlaneseq
        %v333 = vshrl.u32 %v332, 7
        %v334 = vsub.s32 2, %v333
        %v335 = vrot.slane %v315, %v334
        %v336 = vlaneseq
        %v337 = vshrl.u32 %v336, 7
        %v338 = vsub.s32 2, %v337
        %v339 = vrot.slane %v319, %v338
        %v340 = vlaneseq
        %v341 = vshrl.u32 %v340, 7
        %v342 = vsub.s32 2, %v341
        %v343 = vrot.slane %v323, %v342
        %344 = vset.pattern.permute.xlu0 2
        %345 = vperm.xlu0 %344, %v216
        %v346 = vpop.permute.xlu0 %345
        %v348 = vsub.f32 %v331, %v346
        %v349 = vsub.f32 %v335, %v346
        %v350 = vsub.f32 %v339, %v346
        %v351 = vsub.f32 %v343, %v346
        %v352 = vmul.f32 %v260, %v260
        %v353 = vmul.f32 %v261, %v261
        %v354 = vmul.f32 %v262, %v262
        %v355 = vmul.f32 %v263, %v263
        %v356 = vmul.f32 %v304, %v304
        %v357 = vmul.f32 %v305, %v305
        %v358 = vmul.f32 %v306, %v306
        %v359 = vmul.f32 %v307, %v307
        %v360 = vmul.f32 %v348, %v348
        %v361 = vmul.f32 %v349, %v349
        %v362 = vmul.f32 %v350, %v350
        %v363 = vmul.f32 %v351, %v351
        %v364 = vadd.f32 %v352, %v356
        %v365 = vadd.f32 %v353, %v357
        %v366 = vadd.f32 %v354, %v358
        %v367 = vadd.f32 %v355, %v359
        %v368 = vadd.f32 %v364, %v360
        %v369 = vadd.f32 %v365, %v361
        %v370 = vadd.f32 %v366, %v362
        %v371 = vadd.f32 %v367, %v363
        %372 = vset.pattern.permute.xlu0 5
        %373 = vperm.xlu0 %372, %v216
        %v374 = vpop.permute.xlu0 %373
        %v376 = vmul.f32 %v374, %v260
        %v377 = vmul.f32 %v374, %v261
        %v378 = vmul.f32 %v374, %v262
        %v379 = vmul.f32 %v374, %v263
        %380 = vset.pattern.permute.xlu0 4
        %381 = vperm.xlu0 %380, %v216
        %v382 = vpop.permute.xlu0 %381
        %v384 = vadd.f32 %v382, %v376
        %v385 = vadd.f32 %v382, %v377
        %v386 = vadd.f32 %v382, %v378
        %v387 = vadd.f32 %v382, %v379
        %388 = vset.pattern.permute.xlu0 6
        %389 = vperm.xlu0 %388, %v216
        %v390 = vpop.permute.xlu0 %389
        %v392 = vmul.f32 %v390, %v352
        %v393 = vmul.f32 %v390, %v353
        %v394 = vmul.f32 %v390, %v354
        %v395 = vmul.f32 %v390, %v355
        %v396 = vadd.f32 %v384, %v392
        %v397 = vadd.f32 %v385, %v393
        %v398 = vadd.f32 %v386, %v394
        %v399 = vadd.f32 %v387, %v395
        %v400 = vmul.f32 %v352, %v260
        %v401 = vmul.f32 %v353, %v261
        %v402 = vmul.f32 %v354, %v262
        %v403 = vmul.f32 %v355, %v263
        %404 = vset.pattern.permute.xlu0 7
        %405 = vperm.xlu0 %404, %v216
        %v406 = vpop.permute.xlu0 %405
        %v408 = vmul.f32 %v406, %v400
        %v409 = vmul.f32 %v406, %v401
        %v410 = vmul.f32 %v406, %v402
        %v411 = vmul.f32 %v406, %v403
        %v412 = vadd.f32 %v396, %v408
        %v413 = vadd.f32 %v397, %v409
        %v414 = vadd.f32 %v398, %v410
        %v415 = vadd.f32 %v399, %v411
        %416 = vset.pattern.permute.xlu0 9
        %417 = vperm.xlu0 %416, %v216
        %v418 = vpop.permute.xlu0 %417
        %v420 = vmul.f32 %v418, %v304
        %v421 = vmul.f32 %v418, %v305
        %v422 = vmul.f32 %v418, %v306
        %v423 = vmul.f32 %v418, %v307
        %424 = vset.pattern.permute.xlu0 8
        %425 = vperm.xlu0 %424, %v216
        %v426 = vpop.permute.xlu0 %425
        %v428 = vadd.f32 %v426, %v420
        %v429 = vadd.f32 %v426, %v421
        %v430 = vadd.f32 %v426, %v422
        %v431 = vadd.f32 %v426, %v423
        %432 = vset.pattern.permute.xlu0 10
        %433 = vperm.xlu0 %432, %v216
        %v434 = vpop.permute.xlu0 %433
        %v436 = vmul.f32 %v434, %v356
        %v437 = vmul.f32 %v434, %v357
        %v438 = vmul.f32 %v434, %v358
        %v439 = vmul.f32 %v434, %v359
        %v440 = vadd.f32 %v428, %v436
        %v441 = vadd.f32 %v429, %v437
        %v442 = vadd.f32 %v430, %v438
        %v443 = vadd.f32 %v431, %v439
        %v444 = vmul.f32 %v356, %v304
        %v445 = vmul.f32 %v357, %v305
        %v446 = vmul.f32 %v358, %v306
        %v447 = vmul.f32 %v359, %v307
        %448 = vset.pattern.permute.xlu0 11
        %449 = vperm.xlu0 %448, %v216
        %v450 = vpop.permute.xlu0 %449
        %v452 = vmul.f32 %v450, %v444
        %v453 = vmul.f32 %v450, %v445
        %v454 = vmul.f32 %v450, %v446
        %v455 = vmul.f32 %v450, %v447
        %v456 = vadd.f32 %v440, %v452
        %v457 = vadd.f32 %v441, %v453
        %v458 = vadd.f32 %v442, %v454
        %v459 = vadd.f32 %v443, %v455
        %460 = vset.pattern.permute.xlu0 13
        %461 = vperm.xlu0 %460, %v216
        %v462 = vpop.permute.xlu0 %461
        %v464 = vmul.f32 %v462, %v348
        %v465 = vmul.f32 %v462, %v349
        %v466 = vmul.f32 %v462, %v350
        %v467 = vmul.f32 %v462, %v351
        %468 = vset.pattern.permute.xlu0 12
        %469 = vperm.xlu0 %468, %v216
        %v470 = vpop.permute.xlu0 %469
        %v472 = vadd.f32 %v470, %v464
        %v473 = vadd.f32 %v470, %v465
        %v474 = vadd.f32 %v470, %v466
        %v475 = vadd.f32 %v470, %v467
        %476 = vset.pattern.permute.xlu0 14
        %477 = vperm.xlu0 %476, %v216
        %v478 = vpop.permute.xlu0 %477
        %v480 = vmul.f32 %v478, %v360
        %v481 = vmul.f32 %v478, %v361
        %v482 = vmul.f32 %v478, %v362
        %v483 = vmul.f32 %v478, %v363
        %v484 = vadd.f32 %v472, %v480
        %v485 = vadd.f32 %v473, %v481
        %v486 = vadd.f32 %v474, %v482
        %v487 = vadd.f32 %v475, %v483
        %v488 = vmul.f32 %v360, %v348
        %v489 = vmul.f32 %v361, %v349
        %v490 = vmul.f32 %v362, %v350
        %v491 = vmul.f32 %v363, %v351
        %492 = vset.pattern.permute.xlu0 15
        %493 = vperm.xlu0 %492, %v216
        %v494 = vpop.permute.xlu0 %493
        %v496 = vmul.f32 %v494, %v488
        %v497 = vmul.f32 %v494, %v489
        %v498 = vmul.f32 %v494, %v490
        %v499 = vmul.f32 %v494, %v491
        %v500 = vadd.f32 %v484, %v496
        %v501 = vadd.f32 %v485, %v497
        %v502 = vadd.f32 %v486, %v498
        %v503 = vadd.f32 %v487, %v499
        %v504 = vmul.f32 %v216, 2.0
        %506 = vset.pattern.permute.xlu0 6
        %507 = vperm.xlu0 %506, %v504
        %v508 = vpop.permute.xlu0 %507
        %v510 = vmul.f32 %v508, %v260
        %v511 = vmul.f32 %v508, %v261
        %v512 = vmul.f32 %v508, %v262
        %v513 = vmul.f32 %v508, %v263
        %v514 = vadd.f32 %v374, %v510
        %v515 = vadd.f32 %v374, %v511
        %v516 = vadd.f32 %v374, %v512
        %v517 = vadd.f32 %v374, %v513
        %v518 = vmul.f32 %v216, 3.0
        %520 = vset.pattern.permute.xlu0 7
        %521 = vperm.xlu0 %520, %v518
        %v522 = vpop.permute.xlu0 %521
        %v524 = vmul.f32 %v522, %v352
        %v525 = vmul.f32 %v522, %v353
        %v526 = vmul.f32 %v522, %v354
        %v527 = vmul.f32 %v522, %v355
        %v528 = vadd.f32 %v514, %v524
        %v529 = vadd.f32 %v515, %v525
        %v530 = vadd.f32 %v516, %v526
        %v531 = vadd.f32 %v517, %v527
        %532 = vset.pattern.permute.xlu0 10
        %533 = vperm.xlu0 %532, %v504
        %v534 = vpop.permute.xlu0 %533
        %v536 = vmul.f32 %v534, %v304
        %v537 = vmul.f32 %v534, %v305
        %v538 = vmul.f32 %v534, %v306
        %v539 = vmul.f32 %v534, %v307
        %v540 = vadd.f32 %v418, %v536
        %v541 = vadd.f32 %v418, %v537
        %v542 = vadd.f32 %v418, %v538
        %v543 = vadd.f32 %v418, %v539
        %544 = vset.pattern.permute.xlu0 11
        %545 = vperm.xlu0 %544, %v518
        %v546 = vpop.permute.xlu0 %545
        %v548 = vmul.f32 %v546, %v356
        %v549 = vmul.f32 %v546, %v357
        %v550 = vmul.f32 %v546, %v358
        %v551 = vmul.f32 %v546, %v359
        %v552 = vadd.f32 %v540, %v548
        %v553 = vadd.f32 %v541, %v549
        %v554 = vadd.f32 %v542, %v550
        %v555 = vadd.f32 %v543, %v551
        %556 = vset.pattern.permute.xlu0 14
        %557 = vperm.xlu0 %556, %v504
        %v558 = vpop.permute.xlu0 %557
        %v560 = vmul.f32 %v558, %v348
        %v561 = vmul.f32 %v558, %v349
        %v562 = vmul.f32 %v558, %v350
        %v563 = vmul.f32 %v558, %v351
        %v564 = vadd.f32 %v462, %v560
        %v565 = vadd.f32 %v462, %v561
        %v566 = vadd.f32 %v462, %v562
        %v567 = vadd.f32 %v462, %v563
        %568 = vset.pattern.permute.xlu0 15
        %569 = vperm.xlu0 %568, %v518
        %v570 = vpop.permute.xlu0 %569
        %v572 = vmul.f32 %v570, %v360
        %v573 = vmul.f32 %v570, %v361
        %v574 = vmul.f32 %v570, %v362
        %v575 = vmul.f32 %v570, %v363
        %v576 = vadd.f32 %v564, %v572
        %v577 = vadd.f32 %v565, %v573
        %v578 = vadd.f32 %v566, %v574
        %v579 = vadd.f32 %v567, %v575
        %v580 = vsub.f32 0.0, %v216
        %582 = vset.pattern.permute.xlu0 3
        %583 = vperm.xlu0 %582, %v580
        %v584 = vpop.permute.xlu0 %583
        %v586 = vmul.f32 %v584, %v368
        %v587 = vmul.f32 %v584, %v369
        %v588 = vmul.f32 %v584, %v370
        %v589 = vmul.f32 %v584, %v371
        %v590 = vmul.f32 %v586, 1.442695
        %v591 = vpow.pop %v590
        %v592 = vmul.f32 %v587, 1.442695
        %v593 = vpow.pop %v592
        %v594 = vmul.f32 %v588, 1.442695
        %v595 = vpow.pop %v594
        %v596 = vmul.f32 %v589, 1.442695
        %v597 = vpow.pop %v596
        %v598 = vmul.f32 %v456, %v500
        %v599 = vmul.f32 %v457, %v501
        %v600 = vmul.f32 %v458, %v502
        %v601 = vmul.f32 %v459, %v503
        %v602 = vmul.f32 %v412, %v500
        %v603 = vmul.f32 %v413, %v501
        %v604 = vmul.f32 %v414, %v502
        %v605 = vmul.f32 %v415, %v503
        %v606 = vmul.f32 %v412, %v456
        %v607 = vmul.f32 %v413, %v457
        %v608 = vmul.f32 %v414, %v458
        %v609 = vmul.f32 %v415, %v459
        %v610 = vmul.f32 %v412, %v598
        %v611 = vmul.f32 %v413, %v599
        %v612 = vmul.f32 %v414, %v600
        %v613 = vmul.f32 %v415, %v601
        %v614 = vmul.f32 %v610, %v591
        %v615 = vmul.f32 %v611, %v593
        %v616 = vmul.f32 %v612, %v595
        %v617 = vmul.f32 %v613, %v597
        %v618 = vld [vmem:[#allocation7] sm:$0xff]
        %vm619 = vcmask 64512
        %v621 = vsel %vm619, %v618, 0
        %v623 = vand.u32 %v615, 4294901760
        %624 = vmatprep.subr.mxu0 %v623
        %v625 = vand.u32 %v614, 4294901760
        %626 = vmatpush1.msra.mxu0 %v625
        %627 = vmatprep.subr.mxu0 0.0
        %628 = vmatpush1.msra.mxu0 0.0
        %629 = vmatprep.subr.mxu0 0.0
        %630 = vmatpush1.msra.mxu0 0.0
        %631 = vmatprep.subr.mxu0 0.0
        %632 = vmatpush1.msra.mxu0 0.0
        %633 = vmatprep.subr.mxu0 0.0
        %634 = vmatpush1.msra.mxu0 0.0
        %635 = vmatprep.subr.mxu0 0.0
        %636 = vmatpush1.msra.mxu0 0.0
        %637 = vmatprep.subr.mxu0 0.0
        %638 = vmatpush1.msra.mxu0 0.0
        %639 = vmatprep.subr.mxu0 0.0
        %640 = vmatpush1.msra.mxu0 0.0
        %641 = vmatprep.subr.mxu0 0.0
        %642 = vmatpush1.msra.mxu0 0.0
        %643 = vmatprep.subr.mxu0 0.0
        %644 = vmatpush1.msra.mxu0 0.0
        %645 = vmatprep.subr.mxu0 0.0
        %646 = vmatpush1.msra.mxu0 0.0
        %647 = vmatprep.subr.mxu0 0.0
        %648 = vmatpush1.msra.mxu0 0.0
        %649 = vmatprep.subr.mxu0 0.0
        %650 = vmatpush1.msra.mxu0 0.0
        %651 = vmatprep.subr.mxu0 0.0
        %652 = vmatpush1.msra.mxu0 0.0
        %653 = vmatprep.subr.mxu0 0.0
        %654 = vmatpush1.msra.mxu0 0.0
        %655 = vmatprep.subr.mxu0 0.0
        %656 = vmatpush1.msra.mxu0 0.0
        %657 = vmatprep.subr.mxu0 0.0
        %658 = vmatpush1.msra.mxu0 0.0
        %659 = vmatprep.subr.mxu0 0.0
        %660 = vmatpush1.msra.mxu0 0.0
        %661 = vmatprep.subr.mxu0 0.0
        %662 = vmatpush1.msra.mxu0 0.0
        %663 = vmatprep.subr.mxu0 0.0
        %664 = vmatpush1.msra.mxu0 0.0
        %665 = vmatprep.subr.mxu0 0.0
        %666 = vmatpush1.msra.mxu0 0.0
        %667 = vmatprep.subr.mxu0 0.0
        %668 = vmatpush1.msra.mxu0 0.0
        %669 = vmatprep.subr.mxu0 0.0
        %670 = vmatpush1.msra.mxu0 0.0
        %671 = vmatprep.subr.mxu0 0.0
        %672 = vmatpush1.msra.mxu0 0.0
        %673 = vmatprep.subr.mxu0 0.0
        %674 = vmatpush1.msra.mxu0 0.0
        %675 = vmatprep.subr.mxu0 0.0
        %676 = vmatpush1.msra.mxu0 0.0
        %677 = vmatprep.subr.mxu0 0.0
        %678 = vmatpush1.msra.mxu0 0.0
        %679 = vmatprep.subr.mxu0 0.0
        %680 = vmatpush1.msra.mxu0 0.0
        %681 = vmatprep.subr.mxu0 0.0
        %682 = vmatpush1.msra.mxu0 0.0
        %683 = vmatprep.subr.mxu0 0.0
        %684 = vmatpush1.msra.mxu0 0.0
        %685 = vmatprep.subr.mxu0 0.0
        %686 = vmatpush1.msra.mxu0 0.0
        %687 = vmatprep.subr.mxu0 0.0
        %688 = vmatpush1.msra.mxu0 0.0
        %689 = vmatprep.mubr.f32.mxu0 0.0
        %v690 = vand.u32 %v621, 4294901760
        %v691 = vsub.f32 %v621, %v690
        %v692 = vand.u32 %v691, 4294901760
        %v693 = vsub.f32 %v691, %v692
        %v694 = vand.u32 %v693, 4294901760
        %695 = vmatmul.mubr.f32.gmra.mrb[0].mxu0 %v694
        %v696 = vpop.f32.mrb[0].mxu0
        %v697 = vadd.f32 0.0, %v696
        %v698 = vpop.f32.mrb[0].mxu0
        %v699 = vadd.f32 0.0, %v698
        %700 = vdwg.mxu0
        %v701 = vand.u32 %v615, 4294901760
        %v702 = vsub.f32 %v615, %v701
        %v703 = vand.u32 %v702, 4294901760
        %v704 = vsub.f32 %v702, %v703
        %v705 = vand.u32 %v704, 4294901760
        %706 = vmatprep.subr.mxu0 %v705
        %v707 = vand.u32 %v614, 4294901760
        %v708 = vsub.f32 %v614, %v707
        %v709 = vand.u32 %v708, 4294901760
        %v710 = vsub.f32 %v708, %v709
        %v711 = vand.u32 %v710, 4294901760
        %712 = vmatpush1.msra.mxu0 %v711
        %713 = vmatprep.subr.mxu0 0.0
        %714 = vmatpush1.msra.mxu0 0.0
        %715 = vmatprep.subr.mxu0 0.0
        %716 = vmatpush1.msra.mxu0 0.0
        %717 = vmatprep.subr.mxu0 0.0
        %718 = vmatpush1.msra.mxu0 0.0
        %719 = vmatprep.subr.mxu0 0.0
        %720 = vmatpush1.msra.mxu0 0.0
        %721 = vmatprep.subr.mxu0 0.0
        %722 = vmatpush1.msra.mxu0 0.0
        %723 = vmatprep.subr.mxu0 0.0
        %724 = vmatpush1.msra.mxu0 0.0
        %725 = vmatprep.subr.mxu0 0.0
        %726 = vmatpush1.msra.mxu0 0.0
        %727 = vmatprep.subr.mxu0 0.0
        %728 = vmatpush1.msra.mxu0 0.0
        %729 = vmatprep.subr.mxu0 0.0
        %730 = vmatpush1.msra.mxu0 0.0
        %731 = vmatprep.subr.mxu0 0.0
        %732 = vmatpush1.msra.mxu0 0.0
        %733 = vmatprep.subr.mxu0 0.0
        %734 = vmatpush1.msra.mxu0 0.0
        %735 = vmatprep.subr.mxu0 0.0
        %736 = vmatpush1.msra.mxu0 0.0
        %737 = vmatprep.subr.mxu0 0.0
        %738 = vmatpush1.msra.mxu0 0.0
        %739 = vmatprep.subr.mxu0 0.0
        %740 = vmatpush1.msra.mxu0 0.0
        %741 = vmatprep.subr.mxu0 0.0
        %742 = vmatpush1.msra.mxu0 0.0
        %743 = vmatprep.subr.mxu0 0.0
        %744 = vmatpush1.msra.mxu0 0.0
        %745 = vmatprep.subr.mxu0 0.0
        %746 = vmatpush1.msra.mxu0 0.0
        %747 = vmatprep.subr.mxu0 0.0
        %748 = vmatpush1.msra.mxu0 0.0
        %749 = vmatprep.subr.mxu0 0.0
        %750 = vmatpush1.msra.mxu0 0.0
        %751 = vmatprep.subr.mxu0 0.0
        %752 = vmatpush1.msra.mxu0 0.0
        %753 = vmatprep.subr.mxu0 0.0
        %754 = vmatpush1.msra.mxu0 0.0
        %755 = vmatprep.subr.mxu0 0.0
        %756 = vmatpush1.msra.mxu0 0.0
        %757 = vmatprep.subr.mxu0 0.0
        %758 = vmatpush1.msra.mxu0 0.0
        %759 = vmatprep.subr.mxu0 0.0
        %760 = vmatpush1.msra.mxu0 0.0
        %761 = vmatprep.subr.mxu0 0.0
        %762 = vmatpush1.msra.mxu0 0.0
        %763 = vmatprep.subr.mxu0 0.0
        %764 = vmatpush1.msra.mxu0 0.0
        %765 = vmatprep.subr.mxu0 0.0
        %766 = vmatpush1.msra.mxu0 0.0
        %767 = vmatprep.subr.mxu0 0.0
        %768 = vmatpush1.msra.mxu0 0.0
        %769 = vmatprep.subr.mxu0 0.0
        %770 = vmatpush1.msra.mxu0 0.0
        %771 = vmatprep.subr.mxu0 0.0
        %772 = vmatpush1.msra.mxu0 0.0
        %773 = vmatprep.subr.mxu0 0.0
        %774 = vmatpush1.msra.mxu0 0.0
        %775 = vmatprep.mubr.f32.mxu0 0.0
        %v776 = vand.u32 %v621, 4294901760
        %777 = vmatmul.mubr.f32.gmra.mrb[0].mxu0 %v776
        %v778 = vpop.f32.mrb[0].mxu0
        %v779 = vadd.f32 %v697, %v778
        %v780 = vpop.f32.mrb[0].mxu0
        %v781 = vadd.f32 %v699, %v780
        %782 = vdwg.mxu0
        %v783 = vand.u32 %v615, 4294901760
        %v784 = vsub.f32 %v615, %v783
        %785 = vmatprep.subr.mxu0 %v784
        %v786 = vand.u32 %v614, 4294901760
        %v787 = vsub.f32 %v614, %v786
        %788 = vmatpush1.msra.mxu0 %v787
        %789 = vmatprep.subr.mxu0 0.0
        %790 = vmatpush1.msra.mxu0 0.0
        %791 = vmatprep.subr.mxu0 0.0
        %792 = vmatpush1.msra.mxu0 0.0
        %793 = vmatprep.subr.mxu0 0.0
        %794 = vmatpush1.msra.mxu0 0.0
        %795 = vmatprep.subr.mxu0 0.0
        %796 = vmatpush1.msra.mxu0 0.0
        %797 = vmatprep.subr.mxu0 0.0
        %798 = vmatpush1.msra.mxu0 0.0
        %799 = vmatprep.subr.mxu0 0.0
        %800 = vmatpush1.msra.mxu0 0.0
        %801 = vmatprep.subr.mxu0 0.0
        %802 = vmatpush1.msra.mxu0 0.0
        %803 = vmatprep.subr.mxu0 0.0
        %804 = vmatpush1.msra.mxu0 0.0
        %805 = vmatprep.subr.mxu0 0.0
        %806 = vmatpush1.msra.mxu0 0.0
        %807 = vmatprep.subr.mxu0 0.0
        %808 = vmatpush1.msra.mxu0 0.0
        %809 = vmatprep.subr.mxu0 0.0
        %810 = vmatpush1.msra.mxu0 0.0
        %811 = vmatprep.subr.mxu0 0.0
        %812 = vmatpush1.msra.mxu0 0.0
        %813 = vmatprep.subr.mxu0 0.0
        %814 = vmatpush1.msra.mxu0 0.0
        %815 = vmatprep.subr.mxu0 0.0
        %816 = vmatpush1.msra.mxu0 0.0
        %817 = vmatprep.subr.mxu0 0.0
        %818 = vmatpush1.msra.mxu0 0.0
        %819 = vmatprep.subr.mxu0 0.0
        %820 = vmatpush1.msra.mxu0 0.0
        %821 = vmatprep.subr.mxu0 0.0
        %822 = vmatpush1.msra.mxu0 0.0
        %823 = vmatprep.subr.mxu0 0.0
        %824 = vmatpush1.msra.mxu0 0.0
        %825 = vmatprep.subr.mxu0 0.0
        %826 = vmatpush1.msra.mxu0 0.0
        %827 = vmatprep.subr.mxu0 0.0
        %828 = vmatpush1.msra.mxu0 0.0
        %829 = vmatprep.subr.mxu0 0.0
        %830 = vmatpush1.msra.mxu0 0.0
        %831 = vmatprep.subr.mxu0 0.0
        %832 = vmatpush1.msra.mxu0 0.0
        %833 = vmatprep.subr.mxu0 0.0
        %834 = vmatpush1.msra.mxu0 0.0
        %835 = vmatprep.subr.mxu0 0.0
        %836 = vmatpush1.msra.mxu0 0.0
        %837 = vmatprep.subr.mxu0 0.0
        %838 = vmatpush1.msra.mxu0 0.0
        %839 = vmatprep.subr.mxu0 0.0
        %840 = vmatpush1.msra.mxu0 0.0
        %841 = vmatprep.subr.mxu0 0.0
        %842 = vmatpush1.msra.mxu0 0.0
        %843 = vmatprep.subr.mxu0 0.0
        %844 = vmatpush1.msra.mxu0 0.0
        %845 = vmatprep.subr.mxu0 0.0
        %846 = vmatpush1.msra.mxu0 0.0
        %847 = vmatprep.subr.mxu0 0.0
        %848 = vmatpush1.msra.mxu0 0.0
        %849 = vmatprep.subr.mxu0 0.0
        %850 = vmatpush1.msra.mxu0 0.0
        %851 = vmatprep.mubr.f32.mxu0 0.0
        %v852 = vand.u32 %v621, 4294901760
        %v853 = vsub.f32 %v621, %v852
        %854 = vmatmul.mubr.f32.gmra.mrb[0].mxu0 %v853
        %v855 = vpop.f32.mrb[0].mxu0
        %v856 = vadd.f32 %v779, %v855
        %v857 = vpop.f32.mrb[0].mxu0
        %v858 = vadd.f32 %v781, %v857
        %859 = vdwg.mxu0
        %v860 = vand.u32 %v615, 4294901760
        %861 = vmatprep.subr.mxu0 %v860
        %v862 = vand.u32 %v614, 4294901760
        %863 = vmatpush1.msra.mxu0 %v862
        %864 = vmatprep.subr.mxu0 0.0
        %865 = vmatpush1.msra.mxu0 0.0
        %866 = vmatprep.subr.mxu0 0.0
        %867 = vmatpush1.msra.mxu0 0.0
        %868 = vmatprep.subr.mxu0 0.0
        %869 = vmatpush1.msra.mxu0 0.0
        %870 = vmatprep.subr.mxu0 0.0
        %871 = vmatpush1.msra.mxu0 0.0
        %872 = vmatprep.subr.mxu0 0.0
        %873 = vmatpush1.msra.mxu0 0.0
        %874 = vmatprep.subr.mxu0 0.0
        %875 = vmatpush1.msra.mxu0 0.0
        %876 = vmatprep.subr.mxu0 0.0
        %877 = vmatpush1.msra.mxu0 0.0
        %878 = vmatprep.subr.mxu0 0.0
        %879 = vmatpush1.msra.mxu0 0.0
        %880 = vmatprep.subr.mxu0 0.0
        %881 = vmatpush1.msra.mxu0 0.0
        %882 = vmatprep.subr.mxu0 0.0
        %883 = vmatpush1.msra.mxu0 0.0
        %884 = vmatprep.subr.mxu0 0.0
        %885 = vmatpush1.msra.mxu0 0.0
        %886 = vmatprep.subr.mxu0 0.0
        %887 = vmatpush1.msra.mxu0 0.0
        %888 = vmatprep.subr.mxu0 0.0
        %889 = vmatpush1.msra.mxu0 0.0
        %890 = vmatprep.subr.mxu0 0.0
        %891 = vmatpush1.msra.mxu0 0.0
        %892 = vmatprep.subr.mxu0 0.0
        %893 = vmatpush1.msra.mxu0 0.0
        %894 = vmatprep.subr.mxu0 0.0
        %895 = vmatpush1.msra.mxu0 0.0
        %896 = vmatprep.subr.mxu0 0.0
        %897 = vmatpush1.msra.mxu0 0.0
        %898 = vmatprep.subr.mxu0 0.0
        %899 = vmatpush1.msra.mxu0 0.0
        %900 = vmatprep.subr.mxu0 0.0
        %901 = vmatpush1.msra.mxu0 0.0
        %902 = vmatprep.subr.mxu0 0.0
        %903 = vmatpush1.msra.mxu0 0.0
        %904 = vmatprep.subr.mxu0 0.0
        %905 = vmatpush1.msra.mxu0 0.0
        %906 = vmatprep.subr.mxu0 0.0
        %907 = vmatpush1.msra.mxu0 0.0
        %908 = vmatprep.subr.mxu0 0.0
        %909 = vmatpush1.msra.mxu0 0.0
        %910 = vmatprep.subr.mxu0 0.0
        %911 = vmatpush1.msra.mxu0 0.0
        %912 = vmatprep.subr.mxu0 0.0
        %913 = vmatpush1.msra.mxu0 0.0
        %914 = vmatprep.subr.mxu0 0.0
        %915 = vmatpush1.msra.mxu0 0.0
        %916 = vmatprep.subr.mxu0 0.0
        %917 = vmatpush1.msra.mxu0 0.0
        %918 = vmatprep.subr.mxu0 0.0
        %919 = vmatpush1.msra.mxu0 0.0
        %920 = vmatprep.subr.mxu0 0.0
        %921 = vmatpush1.msra.mxu0 0.0
        %922 = vmatprep.subr.mxu0 0.0
        %923 = vmatpush1.msra.mxu0 0.0
        %924 = vmatprep.subr.mxu0 0.0
        %925 = vmatpush1.msra.mxu0 0.0
        %926 = vmatprep.mubr.f32.mxu0 0.0
        %v927 = vand.u32 %v621, 4294901760
        %v928 = vsub.f32 %v621, %v927
        %v929 = vand.u32 %v928, 4294901760
        %930 = vmatmul.mubr.f32.gmra.mrb[0].mxu0 %v929
        %v931 = vpop.f32.mrb[0].mxu0
        %v932 = vadd.f32 %v856, %v931
        %v933 = vpop.f32.mrb[0].mxu0
        %v934 = vadd.f32 %v858, %v933
        %935 = vdwg.mxu0
        %v936 = vand.u32 %v615, 4294901760
        %v937 = vsub.f32 %v615, %v936
        %v938 = vand.u32 %v937, 4294901760
        %939 = vmatprep.subr.mxu0 %v938
        %v940 = vand.u32 %v614, 4294901760
        %v941 = vsub.f32 %v614, %v940
        %v942 = vand.u32 %v941, 4294901760
        %943 = vmatpush1.msra.mxu0 %v942
        %944 = vmatprep.subr.mxu0 0.0
        %945 = vmatpush1.msra.mxu0 0.0
        %946 = vmatprep.subr.mxu0 0.0
        %947 = vmatpush1.msra.mxu0 0.0
        %948 = vmatprep.subr.mxu0 0.0
        %949 = vmatpush1.msra.mxu0 0.0
        %950 = vmatprep.subr.mxu0 0.0
        %951 = vmatpush1.msra.mxu0 0.0
        %952 = vmatprep.subr.mxu0 0.0
        %953 = vmatpush1.msra.mxu0 0.0
        %954 = vmatprep.subr.mxu0 0.0
        %955 = vmatpush1.msra.mxu0 0.0
        %956 = vmatprep.subr.mxu0 0.0
        %957 = vmatpush1.msra.mxu0 0.0
        %958 = vmatprep.subr.mxu0 0.0
        %959 = vmatpush1.msra.mxu0 0.0
        %960 = vmatprep.subr.mxu0 0.0
        %961 = vmatpush1.msra.mxu0 0.0
        %962 = vmatprep.subr.mxu0 0.0
        %963 = vmatpush1.msra.mxu0 0.0
        %964 = vmatprep.subr.mxu0 0.0
        %965 = vmatpush1.msra.mxu0 0.0
        %966 = vmatprep.subr.mxu0 0.0
        %967 = vmatpush1.msra.mxu0 0.0
        %968 = vmatprep.subr.mxu0 0.0
        %969 = vmatpush1.msra.mxu0 0.0
        %970 = vmatprep.subr.mxu0 0.0
        %971 = vmatpush1.msra.mxu0 0.0
        %972 = vmatprep.subr.mxu0 0.0
        %973 = vmatpush1.msra.mxu0 0.0
        %974 = vmatprep.subr.mxu0 0.0
        %975 = vmatpush1.msra.mxu0 0.0
        %976 = vmatprep.subr.mxu0 0.0
        %977 = vmatpush1.msra.mxu0 0.0
        %978 = vmatprep.subr.mxu0 0.0
        %979 = vmatpush1.msra.mxu0 0.0
        %980 = vmatprep.subr.mxu0 0.0
        %981 = vmatpush1.msra.mxu0 0.0
        %982 = vmatprep.subr.mxu0 0.0
        %983 = vmatpush1.msra.mxu0 0.0
        %984 = vmatprep.subr.mxu0 0.0
        %985 = vmatpush1.msra.mxu0 0.0
        %986 = vmatprep.subr.mxu0 0.0
        %987 = vmatpush1.msra.mxu0 0.0
        %988 = vmatprep.subr.mxu0 0.0
        %989 = vmatpush1.msra.mxu0 0.0
        %990 = vmatprep.subr.mxu0 0.0
        %991 = vmatpush1.msra.mxu0 0.0
        %992 = vmatprep.subr.mxu0 0.0
        %993 = vmatpush1.msra.mxu0 0.0
        %994 = vmatprep.subr.mxu0 0.0
        %995 = vmatpush1.msra.mxu0 0.0
        %996 = vmatprep.subr.mxu0 0.0
        %997 = vmatpush1.msra.mxu0 0.0
        %998 = vmatprep.subr.mxu0 0.0
        %999 = vmatpush1.msra.mxu0 0.0
        %1000 = vmatprep.subr.mxu0 0.0
        %1001 = vmatpush1.msra.mxu0 0.0
        %1002 = vmatprep.subr.mxu0 0.0
        %1003 = vmatpush1.msra.mxu0 0.0
        %1004 = vmatprep.subr.mxu0 0.0
        %1005 = vmatpush1.msra.mxu0 0.0
        %1006 = vmatprep.mubr.f32.mxu0 0.0
        %v1007 = vand.u32 %v621, 4294901760
        %1008 = vmatmul.mubr.f32.gmra.mrb[0].mxu0 %v1007
        %v1009 = vpop.f32.mrb[0].mxu0
        %v1010 = vadd.f32 %v932, %v1009
        %v1011 = vpop.f32.mrb[0].mxu0
        %v1012 = vadd.f32 %v934, %v1011
        %1013 = vdwg.mxu0
        %v1014 = vand.u32 %v615, 4294901760
        %1015 = vmatprep.subr.mxu0 %v1014
        %v1016 = vand.u32 %v614, 4294901760
        %1017 = vmatpush1.msra.mxu0 %v1016
        %1018 = vmatprep.subr.mxu0 0.0
        %1019 = vmatpush1.msra.mxu0 0.0
        %1020 = vmatprep.subr.mxu0 0.0
        %1021 = vmatpush1.msra.mxu0 0.0
        %1022 = vmatprep.subr.mxu0 0.0
        %1023 = vmatpush1.msra.mxu0 0.0
        %1024 = vmatprep.subr.mxu0 0.0
        %1025 = vmatpush1.msra.mxu0 0.0
        %1026 = vmatprep.subr.mxu0 0.0
        %1027 = vmatpush1.msra.mxu0 0.0
        %1028 = vmatprep.subr.mxu0 0.0
        %1029 = vmatpush1.msra.mxu0 0.0
        %1030 = vmatprep.subr.mxu0 0.0
        %1031 = vmatpush1.msra.mxu0 0.0
        %1032 = vmatprep.subr.mxu0 0.0
        %1033 = vmatpush1.msra.mxu0 0.0
        %1034 = vmatprep.subr.mxu0 0.0
        %1035 = vmatpush1.msra.mxu0 0.0
        %1036 = vmatprep.subr.mxu0 0.0
        %1037 = vmatpush1.msra.mxu0 0.0
        %1038 = vmatprep.subr.mxu0 0.0
        %1039 = vmatpush1.msra.mxu0 0.0
        %1040 = vmatprep.subr.mxu0 0.0
        %1041 = vmatpush1.msra.mxu0 0.0
        %1042 = vmatprep.subr.mxu0 0.0
        %1043 = vmatpush1.msra.mxu0 0.0
        %1044 = vmatprep.subr.mxu0 0.0
        %1045 = vmatpush1.msra.mxu0 0.0
        %1046 = vmatprep.subr.mxu0 0.0
        %1047 = vmatpush1.msra.mxu0 0.0
        %1048 = vmatprep.subr.mxu0 0.0
        %1049 = vmatpush1.msra.mxu0 0.0
        %1050 = vmatprep.subr.mxu0 0.0
        %1051 = vmatpush1.msra.mxu0 0.0
        %1052 = vmatprep.subr.mxu0 0.0
        %1053 = vmatpush1.msra.mxu0 0.0
        %1054 = vmatprep.subr.mxu0 0.0
        %1055 = vmatpush1.msra.mxu0 0.0
        %1056 = vmatprep.subr.mxu0 0.0
        %1057 = vmatpush1.msra.mxu0 0.0
        %1058 = vmatprep.subr.mxu0 0.0
        %1059 = vmatpush1.msra.mxu0 0.0
        %1060 = vmatprep.subr.mxu0 0.0
        %1061 = vmatpush1.msra.mxu0 0.0
        %1062 = vmatprep.subr.mxu0 0.0
        %1063 = vmatpush1.msra.mxu0 0.0
        %1064 = vmatprep.subr.mxu0 0.0
        %1065 = vmatpush1.msra.mxu0 0.0
        %1066 = vmatprep.subr.mxu0 0.0
        %1067 = vmatpush1.msra.mxu0 0.0
        %1068 = vmatprep.subr.mxu0 0.0
        %1069 = vmatpush1.msra.mxu0 0.0
        %1070 = vmatprep.subr.mxu0 0.0
        %1071 = vmatpush1.msra.mxu0 0.0
        %1072 = vmatprep.subr.mxu0 0.0
        %1073 = vmatpush1.msra.mxu0 0.0
        %1074 = vmatprep.subr.mxu0 0.0
        %1075 = vmatpush1.msra.mxu0 0.0
        %1076 = vmatprep.subr.mxu0 0.0
        %1077 = vmatpush1.msra.mxu0 0.0
        %1078 = vmatprep.subr.mxu0 0.0
        %1079 = vmatpush1.msra.mxu0 0.0
        %1080 = vmatprep.mubr.f32.mxu0 0.0
        %v1081 = vand.u32 %v621, 4294901760
        %1082 = vmatmul.mubr.f32.gmra.mrb[0].mxu0 %v1081
        %v1083 = vpop.f32.mrb[0].mxu0
        %v1084 = vadd.f32 %v1010, %v1083
        %v1085 = vpop.f32.mrb[0].mxu0
        %v1086 = vadd.f32 %v1012, %v1085
        %1087 = vdwg.mxu0
        %v1088 = vand.u32 %v617, 4294901760
        %1089 = vmatprep.subr.mxu0 %v1088
        %v1090 = vand.u32 %v616, 4294901760
        %1091 = vmatpush1.msra.mxu0 %v1090
        %1092 = vmatprep.subr.mxu0 0.0
        %1093 = vmatpush1.msra.mxu0 0.0
        %1094 = vmatprep.subr.mxu0 0.0
        %1095 = vmatpush1.msra.mxu0 0.0
        %1096 = vmatprep.subr.mxu0 0.0
        %1097 = vmatpush1.msra.mxu0 0.0
        %1098 = vmatprep.subr.mxu0 0.0
        %1099 = vmatpush1.msra.mxu0 0.0
        %1100 = vmatprep.subr.mxu0 0.0
        %1101 = vmatpush1.msra.mxu0 0.0
        %1102 = vmatprep.subr.mxu0 0.0
        %1103 = vmatpush1.msra.mxu0 0.0
        %1104 = vmatprep.subr.mxu0 0.0
        %1105 = vmatpush1.msra.mxu0 0.0
        %1106 = vmatprep.subr.mxu0 0.0
        %1107 = vmatpush1.msra.mxu0 0.0
        %1108 = vmatprep.subr.mxu0 0.0
        %1109 = vmatpush1.msra.mxu0 0.0
        %1110 = vmatprep.subr.mxu0 0.0
        %1111 = vmatpush1.msra.mxu0 0.0
        %1112 = vmatprep.subr.mxu0 0.0
        %1113 = vmatpush1.msra.mxu0 0.0
        %1114 = vmatprep.subr.mxu0 0.0
        %1115 = vmatpush1.msra.mxu0 0.0
        %1116 = vmatprep.subr.mxu0 0.0
        %1117 = vmatpush1.msra.mxu0 0.0
        %1118 = vmatprep.subr.mxu0 0.0
        %1119 = vmatpush1.msra.mxu0 0.0
        %1120 = vmatprep.subr.mxu0 0.0
        %1121 = vmatpush1.msra.mxu0 0.0
        %1122 = vmatprep.subr.mxu0 0.0
        %1123 = vmatpush1.msra.mxu0 0.0
        %1124 = vmatprep.subr.mxu0 0.0
        %1125 = vmatpush1.msra.mxu0 0.0
        %1126 = vmatprep.subr.mxu0 0.0
        %1127 = vmatpush1.msra.mxu0 0.0
        %1128 = vmatprep.subr.mxu0 0.0
        %1129 = vmatpush1.msra.mxu0 0.0
        %1130 = vmatprep.subr.mxu0 0.0
        %1131 = vmatpush1.msra.mxu0 0.0
        %1132 = vmatprep.subr.mxu0 0.0
        %1133 = vmatpush1.msra.mxu0 0.0
        %1134 = vmatprep.subr.mxu0 0.0
        %1135 = vmatpush1.msra.mxu0 0.0
        %1136 = vmatprep.subr.mxu0 0.0
        %1137 = vmatpush1.msra.mxu0 0.0
        %1138 = vmatprep.subr.mxu0 0.0
        %1139 = vmatpush1.msra.mxu0 0.0
        %1140 = vmatprep.subr.mxu0 0.0
        %1141 = vmatpush1.msra.mxu0 0.0
        %1142 = vmatprep.subr.mxu0 0.0
        %1143 = vmatpush1.msra.mxu0 0.0
        %1144 = vmatprep.subr.mxu0 0.0
        %1145 = vmatpush1.msra.mxu0 0.0
        %1146 = vmatprep.subr.mxu0 0.0
        %1147 = vmatpush1.msra.mxu0 0.0
        %1148 = vmatprep.subr.mxu0 0.0
        %1149 = vmatpush1.msra.mxu0 0.0
        %1150 = vmatprep.subr.mxu0 0.0
        %1151 = vmatpush1.msra.mxu0 0.0
        %1152 = vmatprep.subr.mxu0 0.0
        %1153 = vmatpush1.msra.mxu0 0.0
        %1154 = vmatprep.mubr.f32.mxu0 0.0
        %v1155 = vand.u32 %v621, 4294901760
        %v1156 = vsub.f32 %v621, %v1155
        %v1157 = vand.u32 %v1156, 4294901760
        %v1158 = vsub.f32 %v1156, %v1157
        %v1159 = vand.u32 %v1158, 4294901760
        %1160 = vmatmul.mubr.f32.gmra.mrb[0].mxu0 %v1159
        %v1161 = vpop.f32.mrb[0].mxu0
        %v1162 = vadd.f32 0.0, %v1161
        %v1163 = vpop.f32.mrb[0].mxu0
        %v1164 = vadd.f32 0.0, %v1163
        %1165 = vdwg.mxu0
        %v1166 = vand.u32 %v617, 4294901760
        %v1167 = vsub.f32 %v617, %v1166
        %v1168 = vand.u32 %v1167, 4294901760
        %v1169 = vsub.f32 %v1167, %v1168
        %v1170 = vand.u32 %v1169, 4294901760
        %1171 = vmatprep.subr.mxu0 %v1170
        %v1172 = vand.u32 %v616, 4294901760
        %v1173 = vsub.f32 %v616, %v1172
        %v1174 = vand.u32 %v1173, 4294901760
        %v1175 = vsub.f32 %v1173, %v1174
        %v1176 = vand.u32 %v1175, 4294901760
        %1177 = vmatpush1.msra.mxu0 %v1176
        %1178 = vmatprep.subr.mxu0 0.0
        %1179 = vmatpush1.msra.mxu0 0.0
        %1180 = vmatprep.subr.mxu0 0.0
        %1181 = vmatpush1.msra.mxu0 0.0
        %1182 = vmatprep.subr.mxu0 0.0
        %1183 = vmatpush1.msra.mxu0 0.0
        %1184 = vmatprep.subr.mxu0 0.0
        %1185 = vmatpush1.msra.mxu0 0.0
        %1186 = vmatprep.subr.mxu0 0.0
        %1187 = vmatpush1.msra.mxu0 0.0
        %1188 = vmatprep.subr.mxu0 0.0
        %1189 = vmatpush1.msra.mxu0 0.0
        %1190 = vmatprep.subr.mxu0 0.0
        %1191 = vmatpush1.msra.mxu0 0.0
        %1192 = vmatprep.subr.mxu0 0.0
        %1193 = vmatpush1.msra.mxu0 0.0
        %1194 = vmatprep.subr.mxu0 0.0
        %1195 = vmatpush1.msra.mxu0 0.0
        %1196 = vmatprep.subr.mxu0 0.0
        %1197 = vmatpush1.msra.mxu0 0.0
        %1198 = vmatprep.subr.mxu0 0.0
        %1199 = vmatpush1.msra.mxu0 0.0
        %1200 = vmatprep.subr.mxu0 0.0
        %1201 = vmatpush1.msra.mxu0 0.0
        %1202 = vmatprep.subr.mxu0 0.0
        %1203 = vmatpush1.msra.mxu0 0.0
        %1204 = vmatprep.subr.mxu0 0.0
        %1205 = vmatpush1.msra.mxu0 0.0
        %1206 = vmatprep.subr.mxu0 0.0
        %1207 = vmatpush1.msra.mxu0 0.0
        %1208 = vmatprep.subr.mxu0 0.0
        %1209 = vmatpush1.msra.mxu0 0.0
        %1210 = vmatprep.subr.mxu0 0.0
        %1211 = vmatpush1.msra.mxu0 0.0
        %1212 = vmatprep.subr.mxu0 0.0
        %1213 = vmatpush1.msra.mxu0 0.0
        %1214 = vmatprep.subr.mxu0 0.0
        %1215 = vmatpush1.msra.mxu0 0.0
        %1216 = vmatprep.subr.mxu0 0.0
        %1217 = vmatpush1.msra.mxu0 0.0
        %1218 = vmatprep.subr.mxu0 0.0
        %1219 = vmatpush1.msra.mxu0 0.0
        %1220 = vmatprep.subr.mxu0 0.0
        %1221 = vmatpush1.msra.mxu0 0.0
        %1222 = vmatprep.subr.mxu0 0.0
        %1223 = vmatpush1.msra.mxu0 0.0
        %1224 = vmatprep.subr.mxu0 0.0
        %1225 = vmatpush1.msra.mxu0 0.0
        %1226 = vmatprep.subr.mxu0 0.0
        %1227 = vmatpush1.msra.mxu0 0.0
        %1228 = vmatprep.subr.mxu0 0.0
        %1229 = vmatpush1.msra.mxu0 0.0
        %1230 = vmatprep.subr.mxu0 0.0
        %1231 = vmatpush1.msra.mxu0 0.0
        %1232 = vmatprep.subr.mxu0 0.0
        %1233 = vmatpush1.msra.mxu0 0.0
        %1234 = vmatprep.subr.mxu0 0.0
        %1235 = vmatpush1.msra.mxu0 0.0
        %1236 = vmatprep.subr.mxu0 0.0
        %1237 = vmatpush1.msra.mxu0 0.0
        %1238 = vmatprep.subr.mxu0 0.0
        %1239 = vmatpush1.msra.mxu0 0.0
        %1240 = vmatprep.mubr.f32.mxu0 0.0
        %v1241 = vand.u32 %v621, 4294901760
        %1242 = vmatmul.mubr.f32.gmra.mrb[0].mxu0 %v1241
        %v1243 = vpop.f32.mrb[0].mxu0
        %v1244 = vadd.f32 %v1162, %v1243
        %v1245 = vpop.f32.mrb[0].mxu0
        %v1246 = vadd.f32 %v1164, %v1245
        %1247 = vdwg.mxu0
        %v1248 = vand.u32 %v617, 4294901760
        %v1249 = vsub.f32 %v617, %v1248
        %1250 = vmatprep.subr.mxu0 %v1249
        %v1251 = vand.u32 %v616, 4294901760
        %v1252 = vsub.f32 %v616, %v1251
        %1253 = vmatpush1.msra.mxu0 %v1252
        %1254 = vmatprep.subr.mxu0 0.0
        %1255 = vmatpush1.msra.mxu0 0.0
        %1256 = vmatprep.subr.mxu0 0.0
        %1257 = vmatpush1.msra.mxu0 0.0
        %1258 = vmatprep.subr.mxu0 0.0
        %1259 = vmatpush1.msra.mxu0 0.0
        %1260 = vmatprep.subr.mxu0 0.0
        %1261 = vmatpush1.msra.mxu0 0.0
        %1262 = vmatprep.subr.mxu0 0.0
        %1263 = vmatpush1.msra.mxu0 0.0
        %1264 = vmatprep.subr.mxu0 0.0
        %1265 = vmatpush1.msra.mxu0 0.0
        %1266 = vmatprep.subr.mxu0 0.0
        %1267 = vmatpush1.msra.mxu0 0.0
        %1268 = vmatprep.subr.mxu0 0.0
        %1269 = vmatpush1.msra.mxu0 0.0
        %1270 = vmatprep.subr.mxu0 0.0
        %1271 = vmatpush1.msra.mxu0 0.0
        %1272 = vmatprep.subr.mxu0 0.0
        %1273 = vmatpush1.msra.mxu0 0.0
        %1274 = vmatprep.subr.mxu0 0.0
        %1275 = vmatpush1.msra.mxu0 0.0
        %1276 = vmatprep.subr.mxu0 0.0
        %1277 = vmatpush1.msra.mxu0 0.0
        %1278 = vmatprep.subr.mxu0 0.0
        %1279 = vmatpush1.msra.mxu0 0.0
        %1280 = vmatprep.subr.mxu0 0.0
        %1281 = vmatpush1.msra.mxu0 0.0
        %1282 = vmatprep.subr.mxu0 0.0
        %1283 = vmatpush1.msra.mxu0 0.0
        %1284 = vmatprep.subr.mxu0 0.0
        %1285 = vmatpush1.msra.mxu0 0.0
        %1286 = vmatprep.subr.mxu0 0.0
        %1287 = vmatpush1.msra.mxu0 0.0
        %1288 = vmatprep.subr.mxu0 0.0
        %1289 = vmatpush1.msra.mxu0 0.0
        %1290 = vmatprep.subr.mxu0 0.0
        %1291 = vmatpush1.msra.mxu0 0.0
        %1292 = vmatprep.subr.mxu0 0.0
        %1293 = vmatpush1.msra.mxu0 0.0
        %1294 = vmatprep.subr.mxu0 0.0
        %1295 = vmatpush1.msra.mxu0 0.0
        %1296 = vmatprep.subr.mxu0 0.0
        %1297 = vmatpush1.msra.mxu0 0.0
        %1298 = vmatprep.subr.mxu0 0.0
        %1299 = vmatpush1.msra.mxu0 0.0
        %1300 = vmatprep.subr.mxu0 0.0
        %1301 = vmatpush1.msra.mxu0 0.0
        %1302 = vmatprep.subr.mxu0 0.0
        %1303 = vmatpush1.msra.mxu0 0.0
        %1304 = vmatprep.subr.mxu0 0.0
        %1305 = vmatpush1.msra.mxu0 0.0
        %1306 = vmatprep.subr.mxu0 0.0
        %1307 = vmatpush1.msra.mxu0 0.0
        %1308 = vmatprep.subr.mxu0 0.0
        %1309 = vmatpush1.msra.mxu0 0.0
        %1310 = vmatprep.subr.mxu0 0.0
        %1311 = vmatpush1.msra.mxu0 0.0
        %1312 = vmatprep.subr.mxu0 0.0
        %1313 = vmatpush1.msra.mxu0 0.0
        %1314 = vmatprep.subr.mxu0 0.0
        %1315 = vmatpush1.msra.mxu0 0.0
        %1316 = vmatprep.mubr.f32.mxu0 0.0
        %v1317 = vand.u32 %v621, 4294901760
        %v1318 = vsub.f32 %v621, %v1317
        %1319 = vmatmul.mubr.f32.gmra.mrb[0].mxu0 %v1318
        %v1320 = vpop.f32.mrb[0].mxu0
        %v1321 = vadd.f32 %v1244, %v1320
        %v1322 = vpop.f32.mrb[0].mxu0
        %v1323 = vadd.f32 %v1246, %v1322
        %1324 = vdwg.mxu0
        %v1325 = vand.u32 %v617, 4294901760
        %1326 = vmatprep.subr.mxu0 %v1325
        %v1327 = vand.u32 %v616, 4294901760
        %1328 = vmatpush1.msra.mxu0 %v1327
        %1329 = vmatprep.subr.mxu0 0.0
        %1330 = vmatpush1.msra.mxu0 0.0
        %1331 = vmatprep.subr.mxu0 0.0
        %1332 = vmatpush1.msra.mxu0 0.0
        %1333 = vmatprep.subr.mxu0 0.0
        %1334 = vmatpush1.msra.mxu0 0.0
        %1335 = vmatprep.subr.mxu0 0.0
        %1336 = vmatpush1.msra.mxu0 0.0
        %1337 = vmatprep.subr.mxu0 0.0
        %1338 = vmatpush1.msra.mxu0 0.0
        %1339 = vmatprep.subr.mxu0 0.0
        %1340 = vmatpush1.msra.mxu0 0.0
        %1341 = vmatprep.subr.mxu0 0.0
        %1342 = vmatpush1.msra.mxu0 0.0
        %1343 = vmatprep.subr.mxu0 0.0
        %1344 = vmatpush1.msra.mxu0 0.0
        %1345 = vmatprep.subr.mxu0 0.0
        %1346 = vmatpush1.msra.mxu0 0.0
        %1347 = vmatprep.subr.mxu0 0.0
        %1348 = vmatpush1.msra.mxu0 0.0
        %1349 = vmatprep.subr.mxu0 0.0
        %1350 = vmatpush1.msra.mxu0 0.0
        %1351 = vmatprep.subr.mxu0 0.0
        %1352 = vmatpush1.msra.mxu0 0.0
        %1353 = vmatprep.subr.mxu0 0.0
        %1354 = vmatpush1.msra.mxu0 0.0
        %1355 = vmatprep.subr.mxu0 0.0
        %1356 = vmatpush1.msra.mxu0 0.0
        %1357 = vmatprep.subr.mxu0 0.0
        %1358 = vmatpush1.msra.mxu0 0.0
        %1359 = vmatprep.subr.mxu0 0.0
        %1360 = vmatpush1.msra.mxu0 0.0
        %1361 = vmatprep.subr.mxu0 0.0
        %1362 = vmatpush1.msra.mxu0 0.0
        %1363 = vmatprep.subr.mxu0 0.0
        %1364 = vmatpush1.msra.mxu0 0.0
        %1365 = vmatprep.subr.mxu0 0.0
        %1366 = vmatpush1.msra.mxu0 0.0
        %1367 = vmatprep.subr.mxu0 0.0
        %1368 = vmatpush1.msra.mxu0 0.0
        %1369 = vmatprep.subr.mxu0 0.0
        %1370 = vmatpush1.msra.mxu0 0.0
        %1371 = vmatprep.subr.mxu0 0.0
        %1372 = vmatpush1.msra.mxu0 0.0
        %1373 = vmatprep.subr.mxu0 0.0
        %1374 = vmatpush1.msra.mxu0 0.0
        %1375 = vmatprep.subr.mxu0 0.0
        %1376 = vmatpush1.msra.mxu0 0.0
        %1377 = vmatprep.subr.mxu0 0.0
        %1378 = vmatpush1.msra.mxu0 0.0
        %1379 = vmatprep.subr.mxu0 0.0
        %1380 = vmatpush1.msra.mxu0 0.0
        %1381 = vmatprep.subr.mxu0 0.0
        %1382 = vmatpush1.msra.mxu0 0.0
        %1383 = vmatprep.subr.mxu0 0.0
        %1384 = vmatpush1.msra.mxu0 0.0
        %1385 = vmatprep.subr.mxu0 0.0
        %1386 = vmatpush1.msra.mxu0 0.0
        %1387 = vmatprep.subr.mxu0 0.0
        %1388 = vmatpush1.msra.mxu0 0.0
        %1389 = vmatprep.subr.mxu0 0.0
        %1390 = vmatpush1.msra.mxu0 0.0
        %1391 = vmatprep.mubr.f32.mxu0 0.0
        %v1392 = vand.u32 %v621, 4294901760
        %v1393 = vsub.f32 %v621, %v1392
        %v1394 = vand.u32 %v1393, 4294901760
        %1395 = vmatmul.mubr.f32.gmra.mrb[0].mxu0 %v1394
        %v1396 = vpop.f32.mrb[0].mxu0
        %v1397 = vadd.f32 %v1321, %v1396
        %v1398 = vpop.f32.mrb[0].mxu0
        %v1399 = vadd.f32 %v1323, %v1398
        %1400 = vdwg.mxu0
        %v1401 = vand.u32 %v617, 4294901760
        %v1402 = vsub.f32 %v617, %v1401
        %v1403 = vand.u32 %v1402, 4294901760
        %1404 = vmatprep.subr.mxu0 %v1403
        %v1405 = vand.u32 %v616, 4294901760
        %v1406 = vsub.f32 %v616, %v1405
        %v1407 = vand.u32 %v1406, 4294901760
        %1408 = vmatpush1.msra.mxu0 %v1407
        %1409 = vmatprep.subr.mxu0 0.0
        %1410 = vmatpush1.msra.mxu0 0.0
        %1411 = vmatprep.subr.mxu0 0.0
        %1412 = vmatpush1.msra.mxu0 0.0
        %1413 = vmatprep.subr.mxu0 0.0
        %1414 = vmatpush1.msra.mxu0 0.0
        %1415 = vmatprep.subr.mxu0 0.0
        %1416 = vmatpush1.msra.mxu0 0.0
        %1417 = vmatprep.subr.mxu0 0.0
        %1418 = vmatpush1.msra.mxu0 0.0
        %1419 = vmatprep.subr.mxu0 0.0
        %1420 = vmatpush1.msra.mxu0 0.0
        %1421 = vmatprep.subr.mxu0 0.0
        %1422 = vmatpush1.msra.mxu0 0.0
        %1423 = vmatprep.subr.mxu0 0.0
        %1424 = vmatpush1.msra.mxu0 0.0
        %1425 = vmatprep.subr.mxu0 0.0
        %1426 = vmatpush1.msra.mxu0 0.0
        %1427 = vmatprep.subr.mxu0 0.0
        %1428 = vmatpush1.msra.mxu0 0.0
        %1429 = vmatprep.subr.mxu0 0.0
        %1430 = vmatpush1.msra.mxu0 0.0
        %1431 = vmatprep.subr.mxu0 0.0
        %1432 = vmatpush1.msra.mxu0 0.0
        %1433 = vmatprep.subr.mxu0 0.0
        %1434 = vmatpush1.msra.mxu0 0.0
        %1435 = vmatprep.subr.mxu0 0.0
        %1436 = vmatpush1.msra.mxu0 0.0
        %1437 = vmatprep.subr.mxu0 0.0
        %1438 = vmatpush1.msra.mxu0 0.0
        %1439 = vmatprep.subr.mxu0 0.0
        %1440 = vmatpush1.msra.mxu0 0.0
        %1441 = vmatprep.subr.mxu0 0.0
        %1442 = vmatpush1.msra.mxu0 0.0
        %1443 = vmatprep.subr.mxu0 0.0
        %1444 = vmatpush1.msra.mxu0 0.0
        %1445 = vmatprep.subr.mxu0 0.0
        %1446 = vmatpush1.msra.mxu0 0.0
        %1447 = vmatprep.subr.mxu0 0.0
        %1448 = vmatpush1.msra.mxu0 0.0
        %1449 = vmatprep.subr.mxu0 0.0
        %1450 = vmatpush1.msra.mxu0 0.0
        %1451 = vmatprep.subr.mxu0 0.0
        %1452 = vmatpush1.msra.mxu0 0.0
        %1453 = vmatprep.subr.mxu0 0.0
        %1454 = vmatpush1.msra.mxu0 0.0
        %1455 = vmatprep.subr.mxu0 0.0
        %1456 = vmatpush1.msra.mxu0 0.0
        %1457 = vmatprep.subr.mxu0 0.0
        %1458 = vmatpush1.msra.mxu0 0.0
        %1459 = vmatprep.subr.mxu0 0.0
        %1460 = vmatpush1.msra.mxu0 0.0
        %1461 = vmatprep.subr.mxu0 0.0
        %1462 = vmatpush1.msra.mxu0 0.0
        %1463 = vmatprep.subr.mxu0 0.0
        %1464 = vmatpush1.msra.mxu0 0.0
        %1465 = vmatprep.subr.mxu0 0.0
        %1466 = vmatpush1.msra.mxu0 0.0
        %1467 = vmatprep.subr.mxu0 0.0
        %1468 = vmatpush1.msra.mxu0 0.0
        %1469 = vmatprep.subr.mxu0 0.0
        %1470 = vmatpush1.msra.mxu0 0.0
        %1471 = vmatprep.mubr.f32.mxu0 0.0
        %v1472 = vand.u32 %v621, 4294901760
        %1473 = vmatmul.mubr.f32.gmra.mrb[0].mxu0 %v1472
        %v1474 = vpop.f32.mrb[0].mxu0
        %v1475 = vadd.f32 %v1397, %v1474
        %v1476 = vpop.f32.mrb[0].mxu0
        %v1477 = vadd.f32 %v1399, %v1476
        %1478 = vdwg.mxu0
        %v1479 = vand.u32 %v617, 4294901760
        %1480 = vmatprep.subr.mxu0 %v1479
        %v1481 = vand.u32 %v616, 4294901760
        %1482 = vmatpush1.msra.mxu0 %v1481
        %1483 = vmatprep.subr.mxu0 0.0
        %1484 = vmatpush1.msra.mxu0 0.0
        %1485 = vmatprep.subr.mxu0 0.0
        %1486 = vmatpush1.msra.mxu0 0.0
        %1487 = vmatprep.subr.mxu0 0.0
        %1488 = vmatpush1.msra.mxu0 0.0
        %1489 = vmatprep.subr.mxu0 0.0
        %1490 = vmatpush1.msra.mxu0 0.0
        %1491 = vmatprep.subr.mxu0 0.0
        %1492 = vmatpush1.msra.mxu0 0.0
        %1493 = vmatprep.subr.mxu0 0.0
        %1494 = vmatpush1.msra.mxu0 0.0
        %1495 = vmatprep.subr.mxu0 0.0
        %1496 = vmatpush1.msra.mxu0 0.0
        %1497 = vmatprep.subr.mxu0 0.0
        %1498 = vmatpush1.msra.mxu0 0.0
        %1499 = vmatprep.subr.mxu0 0.0
        %1500 = vmatpush1.msra.mxu0 0.0
        %1501 = vmatprep.subr.mxu0 0.0
        %1502 = vmatpush1.msra.mxu0 0.0
        %1503 = vmatprep.subr.mxu0 0.0
        %1504 = vmatpush1.msra.mxu0 0.0
        %1505 = vmatprep.subr.mxu0 0.0
        %1506 = vmatpush1.msra.mxu0 0.0
        %1507 = vmatprep.subr.mxu0 0.0
        %1508 = vmatpush1.msra.mxu0 0.0
        %1509 = vmatprep.subr.mxu0 0.0
        %1510 = vmatpush1.msra.mxu0 0.0
        %1511 = vmatprep.subr.mxu0 0.0
        %1512 = vmatpush1.msra.mxu0 0.0
        %1513 = vmatprep.subr.mxu0 0.0
        %1514 = vmatpush1.msra.mxu0 0.0
        %1515 = vmatprep.subr.mxu0 0.0
        %1516 = vmatpush1.msra.mxu0 0.0
        %1517 = vmatprep.subr.mxu0 0.0
        %1518 = vmatpush1.msra.mxu0 0.0
        %1519 = vmatprep.subr.mxu0 0.0
        %1520 = vmatpush1.msra.mxu0 0.0
        %1521 = vmatprep.subr.mxu0 0.0
        %1522 = vmatpush1.msra.mxu0 0.0
        %1523 = vmatprep.subr.mxu0 0.0
        %1524 = vmatpush1.msra.mxu0 0.0
        %1525 = vmatprep.subr.mxu0 0.0
        %1526 = vmatpush1.msra.mxu0 0.0
        %1527 = vmatprep.subr.mxu0 0.0
        %1528 = vmatpush1.msra.mxu0 0.0
        %1529 = vmatprep.subr.mxu0 0.0
        %1530 = vmatpush1.msra.mxu0 0.0
        %1531 = vmatprep.subr.mxu0 0.0
        %1532 = vmatpush1.msra.mxu0 0.0
        %1533 = vmatprep.subr.mxu0 0.0
        %1534 = vmatpush1.msra.mxu0 0.0
        %1535 = vmatprep.subr.mxu0 0.0
        %1536 = vmatpush1.msra.mxu0 0.0
        %1537 = vmatprep.subr.mxu0 0.0
        %1538 = vmatpush1.msra.mxu0 0.0
        %1539 = vmatprep.subr.mxu0 0.0
        %1540 = vmatpush1.msra.mxu0 0.0
        %1541 = vmatprep.subr.mxu0 0.0
        %1542 = vmatpush1.msra.mxu0 0.0
        %1543 = vmatprep.subr.mxu0 0.0
        %1544 = vmatpush1.msra.mxu0 0.0
        %1545 = vmatprep.mubr.f32.mxu0 0.0
        %v1546 = vand.u32 %v621, 4294901760
        %1547 = vmatmul.mubr.f32.gmra.mrb[0].mxu0 %v1546
        %v1548 = vpop.f32.mrb[0].mxu0
        %v1549 = vadd.f32 %v1475, %v1548
        %v1550 = vpop.f32.mrb[0].mxu0
        %v1551 = vadd.f32 %v1477, %v1550
        %1552 = vdwg.mxu0
        %v1553 = vmul.f32 %v614, %v1084
        %v1554 = vmul.f32 %v615, %v1086
        %v1555 = vmul.f32 %v616, %v1549
        %v1556 = vmul.f32 %v617, %v1551
        %v1557 = vrot.slane %v1553, 4
        %v1558 = vadd.f32 %v1553, %v1557
        %v1559 = vrot.slane %v1558, 2
        %v1560 = vadd.f32 %v1558, %v1559
        %v1561 = vrot.slane %v1560, 1
        %v1562 = vadd.f32 %v1560, %v1561
        %v1563 = vrot.slane %v1554, 4
        %v1564 = vadd.f32 %v1554, %v1563
        %v1565 = vrot.slane %v1564, 2
        %v1566 = vadd.f32 %v1564, %v1565
        %v1567 = vrot.slane %v1566, 1
        %v1568 = vadd.f32 %v1566, %v1567
        %v1569 = vrot.slane %v1555, 4
        %v1570 = vadd.f32 %v1555, %v1569
        %v1571 = vrot.slane %v1570, 2
        %v1572 = vadd.f32 %v1570, %v1571
        %v1573 = vrot.slane %v1572, 1
        %v1574 = vadd.f32 %v1572, %v1573
        %v1575 = vrot.slane %v1556, 4
        %v1576 = vadd.f32 %v1556, %v1575
        %v1577 = vrot.slane %v1576, 2
        %v1578 = vadd.f32 %v1576, %v1577
        %v1579 = vrot.slane %v1578, 1
        %v1580 = vadd.f32 %v1578, %v1579
        %v1581 = vmul.f32 %v598, %v591
        %v1582 = vmul.f32 %v599, %v593
        %v1583 = vmul.f32 %v600, %v595
        %v1584 = vmul.f32 %v601, %v597
        %v1585 = vmul.f32 %v528, %v1581
        %v1586 = vmul.f32 %v529, %v1582
        %v1587 = vmul.f32 %v530, %v1583
        %v1588 = vmul.f32 %v531, %v1584
        %v1589 = vmul.f32 %v260, %v614
        %v1590 = vmul.f32 %v261, %v615
        %v1591 = vmul.f32 %v262, %v616
        %v1592 = vmul.f32 %v263, %v617
        %1593 = vset.pattern.permute.xlu0 3
        %1594 = vperm.xlu0 %1593, %v504
        %v1595 = vpop.permute.xlu0 %1594
        %v1597 = vmul.f32 %v1595, %v1589
        %v1598 = vmul.f32 %v1595, %v1590
        %v1599 = vmul.f32 %v1595, %v1591
        %v1600 = vmul.f32 %v1595, %v1592
        %v1601 = vsub.f32 %v1585, %v1597
        %v1602 = vsub.f32 %v1586, %v1598
        %v1603 = vsub.f32 %v1587, %v1599
        %v1604 = vsub.f32 %v1588, %v1600
        %v1605 = vmul.f32 %v602, %v591
        %v1606 = vmul.f32 %v603, %v593
        %v1607 = vmul.f32 %v604, %v595
        %v1608 = vmul.f32 %v605, %v597
        %v1609 = vmul.f32 %v552, %v1605
        %v1610 = vmul.f32 %v553, %v1606
        %v1611 = vmul.f32 %v554, %v1607
        %v1612 = vmul.f32 %v555, %v1608
        %v1613 = vmul.f32 %v304, %v614
        %v1614 = vmul.f32 %v305, %v615
        %v1615 = vmul.f32 %v306, %v616
        %v1616 = vmul.f32 %v307, %v617
        %v1617 = vmul.f32 %v1595, %v1613
        %v1618 = vmul.f32 %v1595, %v1614
        %v1619 = vmul.f32 %v1595, %v1615
        %v1620 = vmul.f32 %v1595, %v1616
        %v1621 = vsub.f32 %v1609, %v1617
        %v1622 = vsub.f32 %v1610, %v1618
        %v1623 = vsub.f32 %v1611, %v1619
        %v1624 = vsub.f32 %v1612, %v1620
        %v1625 = vmul.f32 %v606, %v591
        %v1626 = vmul.f32 %v607, %v593
        %v1627 = vmul.f32 %v608, %v595
        %v1628 = vmul.f32 %v609, %v597
        %v1629 = vmul.f32 %v576, %v1625
        %v1630 = vmul.f32 %v577, %v1626
        %v1631 = vmul.f32 %v578, %v1627
        %v1632 = vmul.f32 %v579, %v1628
        %v1633 = vmul.f32 %v348, %v614
        %v1634 = vmul.f32 %v349, %v615
        %v1635 = vmul.f32 %v350, %v616
        %v1636 = vmul.f32 %v351, %v617
        %v1637 = vmul.f32 %v1595, %v1633
        %v1638 = vmul.f32 %v1595, %v1634
        %v1639 = vmul.f32 %v1595, %v1635
        %v1640 = vmul.f32 %v1595, %v1636
        %v1641 = vsub.f32 %v1629, %v1637
        %v1642 = vsub.f32 %v1630, %v1638
        %v1643 = vsub.f32 %v1631, %v1639
        %v1644 = vsub.f32 %v1632, %v1640
        %v1645 = vmul.f32 %v1084, %v1601
        %v1646 = vmul.f32 %v1086, %v1602
        %v1647 = vmul.f32 %v1549, %v1603
        %v1648 = vmul.f32 %v1551, %v1604
        %v1649 = vrot.slane %v1645, 4
        %v1650 = vadd.f32 %v1645, %v1649
        %v1651 = vrot.slane %v1650, 2
        %v1652 = vadd.f32 %v1650, %v1651
        %v1653 = vrot.slane %v1652, 1
        %v1654 = vadd.f32 %v1652, %v1653
        %v1655 = vrot.slane %v1646, 4
        %v1656 = vadd.f32 %v1646, %v1655
        %v1657 = vrot.slane %v1656, 2
        %v1658 = vadd.f32 %v1656, %v1657
        %v1659 = vrot.slane %v1658, 1
        %v1660 = vadd.f32 %v1658, %v1659
        %v1661 = vrot.slane %v1647, 4
        %v1662 = vadd.f32 %v1647, %v1661
        %v1663 = vrot.slane %v1662, 2
        %v1664 = vadd.f32 %v1662, %v1663
        %v1665 = vrot.slane %v1664, 1
        %v1666 = vadd.f32 %v1664, %v1665
        %v1667 = vrot.slane %v1648, 4
        %v1668 = vadd.f32 %v1648, %v1667
        %v1669 = vrot.slane %v1668, 2
        %v1670 = vadd.f32 %v1668, %v1669
        %v1671 = vrot.slane %v1670, 1
        %v1672 = vadd.f32 %v1670, %v1671
        %v1673 = vmul.f32 %v1084, %v1621
        %v1674 = vmul.f32 %v1086, %v1622
        %v1675 = vmul.f32 %v1549, %v1623
        %v1676 = vmul.f32 %v1551, %v1624
        %v1677 = vrot.slane %v1673, 4
        %v1678 = vadd.f32 %v1673, %v1677
        %v1679 = vrot.slane %v1678, 2
        %v1680 = vadd.f32 %v1678, %v1679
        %v1681 = vrot.slane %v1680, 1
        %v1682 = vadd.f32 %v1680, %v1681
        %v1683 = vrot.slane %v1674, 4
        %v1684 = vadd.f32 %v1674, %v1683
        %v1685 = vrot.slane %v1684, 2
        %v1686 = vadd.f32 %v1684, %v1685
        %v1687 = vrot.slane %v1686, 1
        %v1688 = vadd.f32 %v1686, %v1687
        %v1689 = vrot.slane %v1675, 4
        %v1690 = vadd.f32 %v1675, %v1689
        %v1691 = vrot.slane %v1690, 2
        %v1692 = vadd.f32 %v1690, %v1691
        %v1693 = vrot.slane %v1692, 1
        %v1694 = vadd.f32 %v1692, %v1693
        %v1695 = vrot.slane %v1676, 4
        %v1696 = vadd.f32 %v1676, %v1695
        %v1697 = vrot.slane %v1696, 2
        %v1698 = vadd.f32 %v1696, %v1697
        %v1699 = vrot.slane %v1698, 1
        %v1700 = vadd.f32 %v1698, %v1699
        %v1701 = vmul.f32 %v1084, %v1641
        %v1702 = vmul.f32 %v1086, %v1642
        %v1703 = vmul.f32 %v1549, %v1643
        %v1704 = vmul.f32 %v1551, %v1644
        %v1705 = vrot.slane %v1701, 4
        %v1706 = vadd.f32 %v1701, %v1705
        %v1707 = vrot.slane %v1706, 2
        %v1708 = vadd.f32 %v1706, %v1707
        %v1709 = vrot.slane %v1708, 1
        %v1710 = vadd.f32 %v1708, %v1709
        %v1711 = vrot.slane %v1702, 4
        %v1712 = vadd.f32 %v1702, %v1711
        %v1713 = vrot.slane %v1712, 2
        %v1714 = vadd.f32 %v1712, %v1713
        %v1715 = vrot.slane %v1714, 1
        %v1716 = vadd.f32 %v1714, %v1715
        %v1717 = vrot.slane %v1703, 4
        %v1718 = vadd.f32 %v1703, %v1717
        %v1719 = vrot.slane %v1718, 2
        %v1720 = vadd.f32 %v1718, %v1719
        %v1721 = vrot.slane %v1720, 1
        %v1722 = vadd.f32 %v1720, %v1721
        %v1723 = vrot.slane %v1704, 4
        %v1724 = vadd.f32 %v1704, %v1723
        %v1725 = vrot.slane %v1724, 2
        %v1726 = vadd.f32 %v1724, %v1725
        %v1727 = vrot.slane %v1726, 1
        %v1728 = vadd.f32 %v1726, %v1727
        %v1729 = vmul.f32 %v1654, %v1654
        %v1730 = vmul.f32 %v1660, %v1660
        %v1731 = vmul.f32 %v1666, %v1666
        %v1732 = vmul.f32 %v1672, %v1672
        %v1733 = vmul.f32 %v1682, %v1682
        %v1734 = vmul.f32 %v1688, %v1688
        %v1735 = vmul.f32 %v1694, %v1694
        %v1736 = vmul.f32 %v1700, %v1700
        %v1737 = vadd.f32 %v1729, %v1733
        %v1738 = vadd.f32 %v1730, %v1734
        %v1739 = vadd.f32 %v1731, %v1735
        %v1740 = vadd.f32 %v1732, %v1736
        %v1741 = vmul.f32 %v1710, %v1710
        %v1742 = vmul.f32 %v1716, %v1716
        %v1743 = vmul.f32 %v1722, %v1722
        %v1744 = vmul.f32 %v1728, %v1728
        %v1745 = vadd.f32 %v1737, %v1741
        %v1746 = vadd.f32 %v1738, %v1742
        %v1747 = vadd.f32 %v1739, %v1743
        %v1748 = vadd.f32 %v1740, %v1744
        %v1749 = vrsqrt.pop %v1745
        %v1750 = vmul.f32 %v1745, %v1749
        %vm1751 = vcmp.eq.f32.partialorder %v1745, inf
        %v1752 = vsel %vm1751, %v1745, %v1750
        %vm1753 = vcmp.eq.f32.partialorder %v1745, 0.0
        %v1754 = vand.u32 %v1745, 2147483648
        %v1755 = vsel %vm1753, %v1754, %v1752
        %v1756 = vrsqrt.pop %v1746
        %v1757 = vmul.f32 %v1746, %v1756
        %vm1758 = vcmp.eq.f32.partialorder %v1746, inf
        %v1759 = vsel %vm1758, %v1746, %v1757
        %vm1760 = vcmp.eq.f32.partialorder %v1746, 0.0
        %v1761 = vand.u32 %v1746, 2147483648
        %v1762 = vsel %vm1760, %v1761, %v1759
        %v1763 = vrsqrt.pop %v1747
        %v1764 = vmul.f32 %v1747, %v1763
        %vm1765 = vcmp.eq.f32.partialorder %v1747, inf
        %v1766 = vsel %vm1765, %v1747, %v1764
        %vm1767 = vcmp.eq.f32.partialorder %v1747, 0.0
        %v1768 = vand.u32 %v1747, 2147483648
        %v1769 = vsel %vm1767, %v1768, %v1766
        %v1770 = vrsqrt.pop %v1748
        %v1771 = vmul.f32 %v1748, %v1770
        %vm1772 = vcmp.eq.f32.partialorder %v1748, inf
        %v1773 = vsel %vm1772, %v1748, %v1771
        %vm1774 = vcmp.eq.f32.partialorder %v1748, 0.0
        %v1775 = vand.u32 %v1748, 2147483648
        %v1776 = vsel %vm1774, %v1775, %v1773
        %v1777 = vmul.f32 %v1755, 2.0
        %v1778 = vmul.f32 %v1762, 2.0
        %v1779 = vmul.f32 %v1769, 2.0
        %v1780 = vmul.f32 %v1776, 2.0
        %v1785 = vcombine.low %v1562, %v1568
        %v1786 = vcombine.low %v1574, %v1580
        %v1788 = vunpack.c.l.s4 1966171168
        %v1789 = vunpack.c.0.s8 %v1788
        %v1790 = vlaneseq
        %v1791 = vshrl.u32 %v1790, 7
        %v1792 = vsub.s32 %v1789, %v1791
        %v1793 = vrot.slane %v1785, %v1792
        %v1795 = vunpack.c.l.s4 1966171168
        %v1796 = vunpack.c.0.s8 %v1795
        %v1797 = vlaneseq
        %v1798 = vshrl.u32 %v1797, 7
        %v1799 = vsub.s32 %v1796, %v1798
        %v1800 = vrot.slane %v1786, %v1799
        %v1801 = vcombine.low %v1793, %v1800
        %v1803 = vunpack.c.l.s4 1966171168
        %v1804 = vunpack.c.0.s8 %v1803
        %v1805 = vlaneseq
        %v1806 = vshrl.u32 %v1805, 7
        %v1807 = vsub.s32 %v1804, %v1806
        %v1808 = vrot.slane %v1801, %v1807
        %v1810 = vlaneseq
        %vm1811 = vcmp.ge.s32.totalorder %v1810, 0
        %vm1812 = vcmp.lt.s32.totalorder %v1810, 512
        %vm1813 = vmand %vm1811, %vm1812
        %1814 = vst.msk [vmem:[%s211] ss:$2 sm:$0xf] %vm1813, %v1808
        %v1819 = vcombine.low %v1777, %v1778
        %v1820 = vcombine.low %v1779, %v1780
        %v1822 = vunpack.c.l.s4 1966171168
        %v1823 = vunpack.c.0.s8 %v1822
        %v1824 = vlaneseq
        %v1825 = vshrl.u32 %v1824, 7
        %v1826 = vsub.s32 %v1823, %v1825
        %v1827 = vrot.slane %v1819, %v1826
        %v1829 = vunpack.c.l.s4 1966171168
        %v1830 = vunpack.c.0.s8 %v1829
        %v1831 = vlaneseq
        %v1832 = vshrl.u32 %v1831, 7
        %v1833 = vsub.s32 %v1830, %v1832
        %v1834 = vrot.slane %v1820, %v1833
        %v1835 = vcombine.low %v1827, %v1834
        %v1837 = vunpack.c.l.s4 1966171168
        %v1838 = vunpack.c.0.s8 %v1837
        %v1839 = vlaneseq
        %v1840 = vshrl.u32 %v1839, 7
        %v1841 = vsub.s32 %v1838, %v1840
        %v1842 = vrot.slane %v1835, %v1841
        %s1844 = scalar_lea.vmem %s211, 1 [#allocation8]
        %1845 = vst.msk [vmem:[%s1844] ss:$2 sm:$0xf] %vm1813, %v1842
        %s1846 = sand.u32 %s97, 1
        %s1847 = scalar_lea.sflag [#allocation4], %s1846
        %s1848 = sand.u32 %s97, 1
        %s1849 = smul.addr %s1848, 8
        %s1850 = scalar_lea.vmem [#allocation8], %s1849
        // Predicated region
        $region45: #{tpu_custom_call.1} parent=31 // pred_check
          %p1851 = pneg %p107
        $region46: #{tpu_custom_call.1} parent=31 // pred_check_branch
          %1853 = sbr.rel (%p1851) target = $region48
        $region47: #{tpu_custom_call.1} parent=31 // pred_region
          %s1854 = smul.u32 4, %s21
          %s1856 = ssub.s32 128, 128
          %1857 = vsyncadd %s1847, %s1856
          %s1858 = smul.addr %s1854, 32
          %s1859 = scalar_lea.hbm %s3, %s1858
          %s1861 = sshll.u32 %s1850, 4
          %s1862 = int_to_ptr.vmem [resolvable:$true] %s1861
          %1864 = dma.vmem_to_hbm [thread:$0]  %s1862, 128, %s1859, %s1847
        $region48: #{tpu_custom_call.1} parent=31 // pred_fallthru
          _
      $region32: #{tpu_custom_call.1} parent=5 // pred_fallthru
        _
      %p1865 = scmp.le.s32.totalorder 2, %s16
      // Predicated region
      $region49: #{tpu_custom_call.1} parent=5 // pred_check
        %p1866 = pneg %p1865
      $region50: #{tpu_custom_call.1} parent=5 // pred_check_branch
        %1868 = sbr.rel (%p1866) target = $region52
      $region51: #{tpu_custom_call.1} parent=5 // pred_region
        %s1869 = ssub.s32 %s16, 2
        // Predicated region
        $region53: #{tpu_custom_call.1} parent=51 // pred_check
          %p1870 = pneg %p113
        $region54: #{tpu_custom_call.1} parent=51 // pred_check_branch
          %1872 = sbr.rel (%p1870) target = $region56
        $region55: #{tpu_custom_call.1} parent=51 // pred_region
          %s1873 = sand.u32 %s98, 1
          %s1874 = scalar_lea.sflag [#allocation4], %s1873
          %s1875 = sand.u32 %s98, 1
          %s1876 = smul.addr %s1875, 8
          %s1877 = scalar_lea.vmem [#allocation8], %s1876
          %1878 = dma.done %s1874, 128
        $region56: #{tpu_custom_call.1} parent=51 // pred_fallthru
          _
      $region52: #{tpu_custom_call.1} parent=5 // pred_fallthru
        _
    $region6: #{tpu_custom_call.1} parent=1 // loop_footer
      %s20 = sadd.s32 1, %s16
    $region7: #{tpu_custom_call.1} parent=1 // loop_footer_branch
      %15 = sbr.rel target = $region3
    $region8: #{tpu_custom_call.1} parent=1 // loop_exit
      _
    %1879 = vsyncpa [#allocation3], 1
    %s1880 = scalar_lea.sflag [#allocation3], 1
    %1881 = vsyncpa %s1880, 1
    %1882 = vsyncpa [#allocation6], 1
    %1883 = vsyncpa [#allocation4], 1
    %s1884 = scalar_lea.sflag [#allocation4], 1
    %1885 = vsyncpa %s1884, 1

// kernel: tpu_custom_call.1
$region0: #{tpu_custom_call.1}
  #allocation0 [shape = 'u32[]', space=smem, size = 0x4, offset = 0x4, fixed_abs, tag = 'smem constant byte address 0x4 - core index']
  #allocation1 [shape = 'u32[144,128]{1,0:T(1,128)}', space=vmem, size = 0x12000, scoped, tag = 'internal scratch']
  %s0 = inlined_call_operand.hbm [shape: f32[3,1024], index: 0, kind: input, shape index: {}]
  %s1 = inlined_call_operand.hbm [shape: f32[8,16], index: 1, kind: input, shape index: {}]
  %s2 = inlined_call_operand.hbm [shape: f32[8,8], index: 2, kind: input, shape index: {}]
  %s3 = inlined_call_operand.hbm [shape: f32[2,1024], index: 3, kind: output, shape index: {}]
  %s4 = sld [smem:[#allocation0]]
  $region57: #{tpu_custom_call.1} parent=0
    _
  %s6 = ssub.s32 1, %s4
  %s7 = scalar_select 0, %s6, %s4
  $region1: #{tpu_custom_call.1} parent=0
    #allocation2 [shape = 'u8[16384]{0}', space=vmem, size = 0x4000, scoped, tag = 'input window, operand 0']
    #allocation3 [shape = 's32[2]{0}', space=sflag, size = 0x8, scoped, tag = 'scoped memory for tpu_custom_call.1']
    #allocation4 [shape = 's32[2]{0}', space=sflag, size = 0x8, scoped, tag = 'scoped memory for tpu_custom_call.1']
    #allocation5 [shape = 'u8[4096]{0}', space=vmem, size = 0x1000, scoped, tag = 'input window, operand 1, single buffered']
    #allocation6 [shape = 's32[1]{0}', space=sflag, size = 0x4, scoped, tag = 'scoped memory for tpu_custom_call.1']
    #allocation7 [shape = 'u8[4096]{0}', space=vmem, size = 0x1000, scoped, tag = 'input window, operand 2, single buffered']
    #allocation8 [shape = 'u8[8192]{0}', space=vmem, size = 0x2000, scoped, tag = 'output window, operand 0']
    %8 = vsyncpa [#allocation3], 0
    %s9 = scalar_lea.sflag [#allocation3], 1
    %10 = vsyncpa %s9, 0
    %11 = vsyncpa [#allocation6], 0
    %12 = vsyncpa [#allocation4], 0
    %s13 = scalar_lea.sflag [#allocation4], 1
    %14 = vsyncpa %s13, 0
    loop: start=0, step=1, limit=4
    $region2: #{tpu_custom_call.1} parent=1 // loop_pre_header
      _
    $region3: #{tpu_custom_call.1} parent=1 // loop_header
      %s16 = sphi 0, %s20
      %p17 = scmp.ge.s32.totalorder %s16, 4
      %s26 = sphi 0, %s28
      %s29 = sphi 0, %s26
      %s30 = sphi 0, %s29
      %s46 = sphi 0, %s30
      %s50 = sphi 0, %s50
      %s52 = sphi 0, %s50
      %s53 = sphi 0, %s52
      %s67 = sphi 0, %s53
      %s71 = sphi 0, %s71
      %s73 = sphi 0, %s71
      %s74 = sphi 0, %s73
      %s88 = sphi 0, %s74
      %s94 = sphi 0, %s96
      %s97 = sphi 0, %s94
      %s98 = sphi 0, %s97
      %s114 = sphi 0, %s98
    $region4: #{tpu_custom_call.1} parent=1 // loop_header_branch
      %19 = sbr.rel (%p17) target = $region8
    $region5: #{tpu_custom_call.1} parent=1 // loop_body
      %s21 = ssub.s32 %s16, 1
      %s22 = ssub.s32 %s16, 2
      %s23 = sadd.s32 %s16, 1
      %s24 = ssub.s32 %s16, %s23
      %p25 = scmp.eq.s32.totalorder %s24, 0
      %s27 = sadd.s32 %s26, 1
      %s28 = scalar_select %p25, %s26, %s27
      %p31 = pneg %p25
      %p32 = scmp.eq.s32.totalorder %s16, 1
      %p33 = por %p31, %p32
      %p34 = scmp.ne.s32.totalorder %s26, %s29
      %p35 = scmp.eq.s32.totalorder %s16, 0
      %p36 = por %p34, %p35
      %p37 = scmp.ne.s32.totalorder %s26, %s29
      %p38 = scmp.eq.s32.totalorder %s21, 1
      %p39 = por %p37, %p38
      %p40 = scmp.ne.s32.totalorder %s29, %s30
      %p41 = scmp.eq.s32.totalorder %s21, 0
      %p42 = por %p40, %p41
      %p43 = scmp.ne.s32.totalorder %s29, %s30
      %p44 = scmp.eq.s32.totalorder %s22, 1
      %p45 = por %p43, %p44
      %p47 = scmp.ne.s32.totalorder %s30, %s46
      %p48 = scmp.eq.s32.totalorder %s22, 0
      %p49 = por %p47, %p48
      %s51 = sadd.s32 %s50, 1
      %p54 = scmp.eq.s32.totalorder %s16, 1
      %p55 = scmp.ne.s32.totalorder %s50, %s52
      %p56 = scmp.eq.s32.totalorder %s16, 0
      %p57 = por %p55, %p56
      %p58 = scmp.ne.s32.totalorder %s50, %s52
      %p59 = scmp.eq.s32.totalorder %s21, 1
      %p60 = por %p58, %p59
      %p61 = scmp.ne.s32.totalorder %s52, %s53
      %p62 = scmp.eq.s32.totalorder %s21, 0
      %p63 = por %p61, %p62
      %p64 = scmp.ne.s32.totalorder %s52, %s53
      %p65 = scmp.eq.s32.totalorder %s22, 1
      %p66 = por %p64, %p65
      %p68 = scmp.ne.s32.totalorder %s53, %s67
      %p69 = scmp.eq.s32.totalorder %s22, 0
      %p70 = por %p68, %p69
      %s72 = sadd.s32 %s71, 1
      %p75 = scmp.eq.s32.totalorder %s16, 1
      %p76 = scmp.ne.s32.totalorder %s71, %s73
      %p77 = scmp.eq.s32.totalorder %s16, 0
      %p78 = por %p76, %p77
      %p79 = scmp.ne.s32.totalorder %s71, %s73
      %p80 = scmp.eq.s32.totalorder %s21, 1
      %p81 = por %p79, %p80
      %p82 = scmp.ne.s32.totalorder %s73, %s74
      %p83 = scmp.eq.s32.totalorder %s21, 0
      %p84 = por %p82, %p83
      %p85 = scmp.ne.s32.totalorder %s73, %s74
      %p86 = scmp.eq.s32.totalorder %s22, 1
      %p87 = por %p85, %p86
      %p89 = scmp.ne.s32.totalorder %s74, %s88
      %p90 = scmp.eq.s32.totalorder %s22, 0
      %p91 = por %p89, %p90
      %s92 = ssub.s32 %s16, %s23
      %p93 = scmp.eq.s32.totalorder %s92, 0
      %s95 = sadd.s32 %s94, 1
      %s96 = scalar_select %p93, %s94, %s95
      %p99 = pneg %p93
      %p100 = scmp.eq.s32.totalorder %s16, 1
      %p101 = por %p99, %p100
      %p102 = scmp.ne.s32.totalorder %s94, %s97
      %p103 = scmp.eq.s32.totalorder %s16, 0
      %p104 = por %p102, %p103
      %p105 = scmp.ne.s32.totalorder %s94, %s97
      %p106 = scmp.eq.s32.totalorder %s21, 1
      %p107 = por %p105, %p106
      %p108 = scmp.ne.s32.totalorder %s97, %s98
      %p109 = scmp.eq.s32.totalorder %s21, 0
      %p110 = por %p108, %p109
      %p111 = scmp.ne.s32.totalorder %s97, %s98
      %p112 = scmp.eq.s32.totalorder %s22, 1
      %p113 = por %p111, %p112
      %p115 = scmp.ne.s32.totalorder %s98, %s114
      %p116 = scmp.eq.s32.totalorder %s22, 0
      %p117 = por %p115, %p116
      %p118 = scmp.le.s32.totalorder 1, %s16
      %p119 = scmp.lt.s32.totalorder %s16, 3
      %p120 = pnand %p118, %p119
      %p121 = pneg %p120
      // Predicated region
      $region9: #{tpu_custom_call.1} parent=5 // pred_check
        _
      $region10: #{tpu_custom_call.1} parent=5 // pred_check_branch
        %123 = sbr.rel (%p120) target = $region12
      $region11: #{tpu_custom_call.1} parent=5 // pred_region
        %s124 = ssub.s32 %s16, 1
        // Predicated region
        $region13: #{tpu_custom_call.1} parent=11 // pred_check
          %p125 = pneg %p63
        $region14: #{tpu_custom_call.1} parent=11 // pred_check_branch
          %127 = sbr.rel (%p125) target = $region16
        $region15: #{tpu_custom_call.1} parent=11 // pred_region
          %s129 = ssub.s32 128, 128
          %130 = vsyncadd [#allocation6], %s129
          %s132 = sshll.u32 [#allocation5], 4
          %s133 = int_to_ptr.vmem [resolvable:$true] %s132
          %135 = dma.hbm_to_vmem [thread:$0]  %s1, 128, %s133, [#allocation6]
        $region16: #{tpu_custom_call.1} parent=11 // pred_fallthru
          _
        // Predicated region
        $region17: #{tpu_custom_call.1} parent=11 // pred_check
          %p136 = pneg %p84
        $region18: #{tpu_custom_call.1} parent=11 // pred_check_branch
          %138 = sbr.rel (%p136) target = $region20
        $region19: #{tpu_custom_call.1} parent=11 // pred_region
          %s140 = ssub.s32 128, 128
          %141 = vsyncadd [#allocation6], %s140
          %s143 = sshll.u32 [#allocation7], 4
          %s144 = int_to_ptr.vmem [resolvable:$true] %s143
          %146 = dma.hbm_to_vmem [thread:$0]  %s2, 128, %s144, [#allocation6]
        $region20: #{tpu_custom_call.1} parent=11 // pred_fallthru
          _
      $region12: #{tpu_custom_call.1} parent=5 // pred_fallthru
        _
      %p147 = scmp.lt.s32.totalorder %s16, 2
      // Predicated region
      $region21: #{tpu_custom_call.1} parent=5 // pred_check
        %p148 = pneg %p147
      $region22: #{tpu_custom_call.1} parent=5 // pred_check_branch
        %150 = sbr.rel (%p148) target = $region24
      $region23: #{tpu_custom_call.1} parent=5 // pred_region
        // Predicated region
        $region25: #{tpu_custom_call.1} parent=23 // pred_check
          %p151 = pneg %p36
        $region26: #{tpu_custom_call.1} parent=23 // pred_check_branch
          %153 = sbr.rel (%p151) target = $region28
        $region27: #{tpu_custom_call.1} parent=23 // pred_region
          %s154 = sand.u32 %s26, 1
          %s155 = scalar_lea.sflag [#allocation3], %s154
          %s156 = sand.u32 %s26, 1
          %s157 = smul.addr %s156, 16
          %s158 = scalar_lea.vmem [#allocation2], %s157
          %s159 = smul.u32 4, %s16
          %s161 = ssub.s32 256, 256
          %162 = vsyncadd %s155, %s161
          %s163 = smul.addr %s159, 64
          %s164 = scalar_lea.hbm %s0, %s163
          %s166 = sshll.u32 %s158, 4
          %s167 = int_to_ptr.vmem [resolvable:$true] %s166
          %169 = dma.hbm_to_vmem [thread:$0]  %s164, 256, %s167, %s155
        $region28: #{tpu_custom_call.1} parent=23 // pred_fallthru
          _
      $region24: #{tpu_custom_call.1} parent=5 // pred_fallthru
        _
      %p170 = scmp.le.s32.totalorder 1, %s16
      %p171 = scmp.lt.s32.totalorder %s16, 3
      %p172 = pnand %p170, %p171
      %p173 = pneg %p172
      // Predicated region
      $region29: #{tpu_custom_call.1} parent=5 // pred_check
        _
      $region30: #{tpu_custom_call.1} parent=5 // pred_check_branch
        %175 = sbr.rel (%p172) target = $region32
      $region31: #{tpu_custom_call.1} parent=5 // pred_region
        %s176 = ssub.s32 %s16, 1
        %s177 = sand.u32 %s29, 1
        %s178 = scalar_lea.sflag [#allocation3], %s177
        %s179 = sand.u32 %s29, 1
        %s180 = smul.addr %s179, 16
        %s181 = scalar_lea.vmem [#allocation2], %s180
        // Predicated region
        $region33: #{tpu_custom_call.1} parent=31 // pred_check
          %p182 = pneg %p42
        $region34: #{tpu_custom_call.1} parent=31 // pred_check_branch
          %184 = sbr.rel (%p182) target = $region36
        $region35: #{tpu_custom_call.1} parent=31 // pred_region
          %185 = dma.done %s178, 256
        $region36: #{tpu_custom_call.1} parent=31 // pred_fallthru
          _
        // Predicated region
        $region37: #{tpu_custom_call.1} parent=31 // pred_check
          %p186 = pneg %p63
        $region38: #{tpu_custom_call.1} parent=31 // pred_check_branch
          %188 = sbr.rel (%p186) target = $region40
        $region39: #{tpu_custom_call.1} parent=31 // pred_region
          %189 = dma.done [#allocation6], 128
        $region40: #{tpu_custom_call.1} parent=31 // pred_fallthru
          _
        // Predicated region
        $region41: #{tpu_custom_call.1} parent=31 // pred_check
          %p190 = pneg %p84
        $region42: #{tpu_custom_call.1} parent=31 // pred_check_branch
          %192 = sbr.rel (%p190) target = $region44
        $region43: #{tpu_custom_call.1} parent=31 // pred_region
          %193 = dma.done [#allocation6], 128
        $region44: #{tpu_custom_call.1} parent=31 // pred_fallthru
          _
        %s194 = sand.u32 %s29, 1
        %s195 = scalar_lea.sflag [#allocation3], %s194
        %s196 = sand.u32 %s29, 1
        %s197 = smul.addr %s196, 16
        %s198 = scalar_lea.vmem [#allocation2], %s197
        %p199 = pneg %p42
        %p200 = pneg %p39
        %p201 = pneg %p63
        %p202 = pneg %p60
        %p203 = pneg %p84
        %p204 = pneg %p81
        %p205 = pneg %p110
        %p206 = pneg %p107
        %s207 = sand.u32 %s97, 1
        %s208 = scalar_lea.sflag [#allocation4], %s207
        %s209 = sand.u32 %s97, 1
        %s210 = smul.addr %s209, 8
        %s211 = scalar_lea.vmem [#allocation8], %s210
        %s212 = smul.u32 4, %s21
        %s213 = smul.u32 4, %s21
        %v214 = vld [vmem:[%s181] sm:$0x77]
        %v215 = vld [vmem:[%s181 + $0x8] sm:$0x77]
        %v216 = vld [vmem:[#allocation5] sm:$0xff]
        %v219 = vlaneseq
        %v220 = vshrl.u32 %v219, 7
        %v221 = vsub.s32 0, %v220
        %v222 = vrot.slane %v214, %v221
        %v223 = vlaneseq
        %v224 = vshrl.u32 %v223, 7
        %v225 = vsub.s32 4, %v224
        %v226 = vrot.slane %v214, %v225
        %v227 = vlaneseq
        %v228 = vshrl.u32 %v227, 7
        %v229 = vsub.s32 0, %v228
        %v230 = vrot.slane %v215, %v229
        %v231 = vlaneseq
        %v232 = vshrl.u32 %v231, 7
        %v233 = vsub.s32 4, %v232
        %v234 = vrot.slane %v215, %v233
        %v239 = vlaneseq
        %v240 = vshrl.u32 %v239, 7
        %v241 = vsub.s32 0, %v240
        %v242 = vrot.slane %v222, %v241
        %v243 = vlaneseq
        %v244 = vshrl.u32 %v243, 7
        %v245 = vsub.s32 0, %v244
        %v246 = vrot.slane %v226, %v245
        %v247 = vlaneseq
        %v248 = vshrl.u32 %v247, 7
        %v249 = vsub.s32 0, %v248
        %v250 = vrot.slane %v230, %v249
        %v251 = vlaneseq
        %v252 = vshrl.u32 %v251, 7
        %v253 = vsub.s32 0, %v252
        %v254 = vrot.slane %v234, %v253
        %256 = vset.pattern.permute.xlu0 0
        %257 = vperm.xlu0 %256, %v216
        %v258 = vpop.permute.xlu0 %257
        %v260 = vsub.f32 %v242, %v258
        %v261 = vsub.f32 %v246, %v258
        %v262 = vsub.f32 %v250, %v258
        %v263 = vsub.f32 %v254, %v258
        %v264 = vlaneseq
        %v265 = vshrl.u32 %v264, 7
        %v266 = vsub.s32 1, %v265
        %v267 = vrot.slane %v214, %v266
        %v268 = vlaneseq
        %v269 = vshrl.u32 %v268, 7
        %v270 = vsub.s32 5, %v269
        %v271 = vrot.slane %v214, %v270
        %v272 = vlaneseq
        %v273 = vshrl.u32 %v272, 7
        %v274 = vsub.s32 1, %v273
        %v275 = vrot.slane %v215, %v274
        %v276 = vlaneseq
        %v277 = vshrl.u32 %v276, 7
        %v278 = vsub.s32 5, %v277
        %v279 = vrot.slane %v215, %v278
        %v284 = vlaneseq
        %v285 = vshrl.u32 %v284, 7
        %v286 = vsub.s32 1, %v285
        %v287 = vrot.slane %v267, %v286
        %v288 = vlaneseq
        %v289 = vshrl.u32 %v288, 7
        %v290 = vsub.s32 1, %v289
        %v291 = vrot.slane %v271, %v290
        %v292 = vlaneseq
        %v293 = vshrl.u32 %v292, 7
        %v294 = vsub.s32 1, %v293
        %v295 = vrot.slane %v275, %v294
        %v296 = vlaneseq
        %v297 = vshrl.u32 %v296, 7
        %v298 = vsub.s32 1, %v297
        %v299 = vrot.slane %v279, %v298
        %300 = vset.pattern.permute.xlu0 1
        %301 = vperm.xlu0 %300, %v216
        %v302 = vpop.permute.xlu0 %301
        %v304 = vsub.f32 %v287, %v302
        %v305 = vsub.f32 %v291, %v302
        %v306 = vsub.f32 %v295, %v302
        %v307 = vsub.f32 %v299, %v302
        %v308 = vlaneseq
        %v309 = vshrl.u32 %v308, 7
        %v310 = vsub.s32 2, %v309
        %v311 = vrot.slane %v214, %v310
        %v312 = vlaneseq
        %v313 = vshrl.u32 %v312, 7
        %v314 = vsub.s32 6, %v313
        %v315 = vrot.slane %v214, %v314
        %v316 = vlaneseq
        %v317 = vshrl.u32 %v316, 7
        %v318 = vsub.s32 2, %v317
        %v319 = vrot.slane %v215, %v318
        %v320 = vlaneseq
        %v321 = vshrl.u32 %v320, 7
        %v322 = vsub.s32 6, %v321
        %v323 = vrot.slane %v215, %v322
        %v328 = vlaneseq
        %v329 = vshrl.u32 %v328, 7
        %v330 = vsub.s32 2, %v329
        %v331 = vrot.slane %v311, %v330
        %v332 = vlaneseq
        %v333 = vshrl.u32 %v332, 7
        %v334 = vsub.s32 2, %v333
        %v335 = vrot.slane %v315, %v334
        %v336 = vlaneseq
        %v337 = vshrl.u32 %v336, 7
        %v338 = vsub.s32 2, %v337
        %v339 = vrot.slane %v319, %v338
        %v340 = vlaneseq
        %v341 = vshrl.u32 %v340, 7
        %v342 = vsub.s32 2, %v341
        %v343 = vrot.slane %v323, %v342
        %344 = vset.pattern.permute.xlu0 2
        %345 = vperm.xlu0 %344, %v216
        %v346 = vpop.permute.xlu0 %345
        %v348 = vsub.f32 %v331, %v346
        %v349 = vsub.f32 %v335, %v346
        %v350 = vsub.f32 %v339, %v346
        %v351 = vsub.f32 %v343, %v346
        %v352 = vmul.f32 %v260, %v260
        %v353 = vmul.f32 %v261, %v261
        %v354 = vmul.f32 %v262, %v262
        %v355 = vmul.f32 %v263, %v263
        %v356 = vmul.f32 %v304, %v304
        %v357 = vmul.f32 %v305, %v305
        %v358 = vmul.f32 %v306, %v306
        %v359 = vmul.f32 %v307, %v307
        %v360 = vmul.f32 %v348, %v348
        %v361 = vmul.f32 %v349, %v349
        %v362 = vmul.f32 %v350, %v350
        %v363 = vmul.f32 %v351, %v351
        %v364 = vadd.f32 %v352, %v356
        %v365 = vadd.f32 %v353, %v357
        %v366 = vadd.f32 %v354, %v358
        %v367 = vadd.f32 %v355, %v359
        %v368 = vadd.f32 %v364, %v360
        %v369 = vadd.f32 %v365, %v361
        %v370 = vadd.f32 %v366, %v362
        %v371 = vadd.f32 %v367, %v363
        %372 = vset.pattern.permute.xlu0 5
        %373 = vperm.xlu0 %372, %v216
        %v374 = vpop.permute.xlu0 %373
        %v376 = vmul.f32 %v374, %v260
        %v377 = vmul.f32 %v374, %v261
        %v378 = vmul.f32 %v374, %v262
        %v379 = vmul.f32 %v374, %v263
        %380 = vset.pattern.permute.xlu0 4
        %381 = vperm.xlu0 %380, %v216
        %v382 = vpop.permute.xlu0 %381
        %v384 = vadd.f32 %v382, %v376
        %v385 = vadd.f32 %v382, %v377
        %v386 = vadd.f32 %v382, %v378
        %v387 = vadd.f32 %v382, %v379
        %388 = vset.pattern.permute.xlu0 6
        %389 = vperm.xlu0 %388, %v216
        %v390 = vpop.permute.xlu0 %389
        %v392 = vmul.f32 %v390, %v352
        %v393 = vmul.f32 %v390, %v353
        %v394 = vmul.f32 %v390, %v354
        %v395 = vmul.f32 %v390, %v355
        %v396 = vadd.f32 %v384, %v392
        %v397 = vadd.f32 %v385, %v393
        %v398 = vadd.f32 %v386, %v394
        %v399 = vadd.f32 %v387, %v395
        %v400 = vmul.f32 %v352, %v260
        %v401 = vmul.f32 %v353, %v261
        %v402 = vmul.f32 %v354, %v262
        %v403 = vmul.f32 %v355, %v263
        %404 = vset.pattern.permute.xlu0 7
        %405 = vperm.xlu0 %404, %v216
        %v406 = vpop.permute.xlu0 %405
        %v408 = vmul.f32 %v406, %v400
        %v409 = vmul.f32 %v406, %v401
        %v410 = vmul.f32 %v406, %v402
        %v411 = vmul.f32 %v406, %v403
        %v412 = vadd.f32 %v396, %v408
        %v413 = vadd.f32 %v397, %v409
        %v414 = vadd.f32 %v398, %v410
        %v415 = vadd.f32 %v399, %v411
        %416 = vset.pattern.permute.xlu0 9
        %417 = vperm.xlu0 %416, %v216
        %v418 = vpop.permute.xlu0 %417
        %v420 = vmul.f32 %v418, %v304
        %v421 = vmul.f32 %v418, %v305
        %v422 = vmul.f32 %v418, %v306
        %v423 = vmul.f32 %v418, %v307
        %424 = vset.pattern.permute.xlu0 8
        %425 = vperm.xlu0 %424, %v216
        %v426 = vpop.permute.xlu0 %425
        %v428 = vadd.f32 %v426, %v420
        %v429 = vadd.f32 %v426, %v421
        %v430 = vadd.f32 %v426, %v422
        %v431 = vadd.f32 %v426, %v423
        %432 = vset.pattern.permute.xlu0 10
        %433 = vperm.xlu0 %432, %v216
        %v434 = vpop.permute.xlu0 %433
        %v436 = vmul.f32 %v434, %v356
        %v437 = vmul.f32 %v434, %v357
        %v438 = vmul.f32 %v434, %v358
        %v439 = vmul.f32 %v434, %v359
        %v440 = vadd.f32 %v428, %v436
        %v441 = vadd.f32 %v429, %v437
        %v442 = vadd.f32 %v430, %v438
        %v443 = vadd.f32 %v431, %v439
        %v444 = vmul.f32 %v356, %v304
        %v445 = vmul.f32 %v357, %v305
        %v446 = vmul.f32 %v358, %v306
        %v447 = vmul.f32 %v359, %v307
        %448 = vset.pattern.permute.xlu0 11
        %449 = vperm.xlu0 %448, %v216
        %v450 = vpop.permute.xlu0 %449
        %v452 = vmul.f32 %v450, %v444
        %v453 = vmul.f32 %v450, %v445
        %v454 = vmul.f32 %v450, %v446
        %v455 = vmul.f32 %v450, %v447
        %v456 = vadd.f32 %v440, %v452
        %v457 = vadd.f32 %v441, %v453
        %v458 = vadd.f32 %v442, %v454
        %v459 = vadd.f32 %v443, %v455
        %460 = vset.pattern.permute.xlu0 13
        %461 = vperm.xlu0 %460, %v216
        %v462 = vpop.permute.xlu0 %461
        %v464 = vmul.f32 %v462, %v348
        %v465 = vmul.f32 %v462, %v349
        %v466 = vmul.f32 %v462, %v350
        %v467 = vmul.f32 %v462, %v351
        %468 = vset.pattern.permute.xlu0 12
        %469 = vperm.xlu0 %468, %v216
        %v470 = vpop.permute.xlu0 %469
        %v472 = vadd.f32 %v470, %v464
        %v473 = vadd.f32 %v470, %v465
        %v474 = vadd.f32 %v470, %v466
        %v475 = vadd.f32 %v470, %v467
        %476 = vset.pattern.permute.xlu0 14
        %477 = vperm.xlu0 %476, %v216
        %v478 = vpop.permute.xlu0 %477
        %v480 = vmul.f32 %v478, %v360
        %v481 = vmul.f32 %v478, %v361
        %v482 = vmul.f32 %v478, %v362
        %v483 = vmul.f32 %v478, %v363
        %v484 = vadd.f32 %v472, %v480
        %v485 = vadd.f32 %v473, %v481
        %v486 = vadd.f32 %v474, %v482
        %v487 = vadd.f32 %v475, %v483
        %v488 = vmul.f32 %v360, %v348
        %v489 = vmul.f32 %v361, %v349
        %v490 = vmul.f32 %v362, %v350
        %v491 = vmul.f32 %v363, %v351
        %492 = vset.pattern.permute.xlu0 15
        %493 = vperm.xlu0 %492, %v216
        %v494 = vpop.permute.xlu0 %493
        %v496 = vmul.f32 %v494, %v488
        %v497 = vmul.f32 %v494, %v489
        %v498 = vmul.f32 %v494, %v490
        %v499 = vmul.f32 %v494, %v491
        %v500 = vadd.f32 %v484, %v496
        %v501 = vadd.f32 %v485, %v497
        %v502 = vadd.f32 %v486, %v498
        %v503 = vadd.f32 %v487, %v499
        %v504 = vmul.f32 %v216, 2.0
        %506 = vset.pattern.permute.xlu0 6
        %507 = vperm.xlu0 %506, %v504
        %v508 = vpop.permute.xlu0 %507
        %v510 = vmul.f32 %v508, %v260
        %v511 = vmul.f32 %v508, %v261
        %v512 = vmul.f32 %v508, %v262
        %v513 = vmul.f32 %v508, %v263
        %v514 = vadd.f32 %v374, %v510
        %v515 = vadd.f32 %v374, %v511
        %v516 = vadd.f32 %v374, %v512
        %v517 = vadd.f32 %v374, %v513
        %v518 = vmul.f32 %v216, 3.0
        %520 = vset.pattern.permute.xlu0 7
        %521 = vperm.xlu0 %520, %v518
        %v522 = vpop.permute.xlu0 %521
        %v524 = vmul.f32 %v522, %v352
        %v525 = vmul.f32 %v522, %v353
        %v526 = vmul.f32 %v522, %v354
        %v527 = vmul.f32 %v522, %v355
        %v528 = vadd.f32 %v514, %v524
        %v529 = vadd.f32 %v515, %v525
        %v530 = vadd.f32 %v516, %v526
        %v531 = vadd.f32 %v517, %v527
        %532 = vset.pattern.permute.xlu0 10
        %533 = vperm.xlu0 %532, %v504
        %v534 = vpop.permute.xlu0 %533
        %v536 = vmul.f32 %v534, %v304
        %v537 = vmul.f32 %v534, %v305
        %v538 = vmul.f32 %v534, %v306
        %v539 = vmul.f32 %v534, %v307
        %v540 = vadd.f32 %v418, %v536
        %v541 = vadd.f32 %v418, %v537
        %v542 = vadd.f32 %v418, %v538
        %v543 = vadd.f32 %v418, %v539
        %544 = vset.pattern.permute.xlu0 11
        %545 = vperm.xlu0 %544, %v518
        %v546 = vpop.permute.xlu0 %545
        %v548 = vmul.f32 %v546, %v356
        %v549 = vmul.f32 %v546, %v357
        %v550 = vmul.f32 %v546, %v358
        %v551 = vmul.f32 %v546, %v359
        %v552 = vadd.f32 %v540, %v548
        %v553 = vadd.f32 %v541, %v549
        %v554 = vadd.f32 %v542, %v550
        %v555 = vadd.f32 %v543, %v551
        %556 = vset.pattern.permute.xlu0 14
        %557 = vperm.xlu0 %556, %v504
        %v558 = vpop.permute.xlu0 %557
        %v560 = vmul.f32 %v558, %v348
        %v561 = vmul.f32 %v558, %v349
        %v562 = vmul.f32 %v558, %v350
        %v563 = vmul.f32 %v558, %v351
        %v564 = vadd.f32 %v462, %v560
        %v565 = vadd.f32 %v462, %v561
        %v566 = vadd.f32 %v462, %v562
        %v567 = vadd.f32 %v462, %v563
        %568 = vset.pattern.permute.xlu0 15
        %569 = vperm.xlu0 %568, %v518
        %v570 = vpop.permute.xlu0 %569
        %v572 = vmul.f32 %v570, %v360
        %v573 = vmul.f32 %v570, %v361
        %v574 = vmul.f32 %v570, %v362
        %v575 = vmul.f32 %v570, %v363
        %v576 = vadd.f32 %v564, %v572
        %v577 = vadd.f32 %v565, %v573
        %v578 = vadd.f32 %v566, %v574
        %v579 = vadd.f32 %v567, %v575
        %v580 = vsub.f32 0.0, %v216
        %582 = vset.pattern.permute.xlu0 3
        %583 = vperm.xlu0 %582, %v580
        %v584 = vpop.permute.xlu0 %583
        %v586 = vmul.f32 %v584, %v368
        %v587 = vmul.f32 %v584, %v369
        %v588 = vmul.f32 %v584, %v370
        %v589 = vmul.f32 %v584, %v371
        %v590 = vmul.f32 %v586, 1.442695
        %v591 = vpow.pop %v590
        %v592 = vmul.f32 %v587, 1.442695
        %v593 = vpow.pop %v592
        %v594 = vmul.f32 %v588, 1.442695
        %v595 = vpow.pop %v594
        %v596 = vmul.f32 %v589, 1.442695
        %v597 = vpow.pop %v596
        %v598 = vmul.f32 %v456, %v500
        %v599 = vmul.f32 %v457, %v501
        %v600 = vmul.f32 %v458, %v502
        %v601 = vmul.f32 %v459, %v503
        %v602 = vmul.f32 %v412, %v500
        %v603 = vmul.f32 %v413, %v501
        %v604 = vmul.f32 %v414, %v502
        %v605 = vmul.f32 %v415, %v503
        %v606 = vmul.f32 %v412, %v456
        %v607 = vmul.f32 %v413, %v457
        %v608 = vmul.f32 %v414, %v458
        %v609 = vmul.f32 %v415, %v459
        %v610 = vmul.f32 %v412, %v598
        %v611 = vmul.f32 %v413, %v599
        %v612 = vmul.f32 %v414, %v600
        %v613 = vmul.f32 %v415, %v601
        %v614 = vmul.f32 %v610, %v591
        %v615 = vmul.f32 %v611, %v593
        %v616 = vmul.f32 %v612, %v595
        %v617 = vmul.f32 %v613, %v597
        %v618 = vld [vmem:[#allocation7] sm:$0xff]
        %vm619 = vcmask 64512
        %v621 = vsel %vm619, %v618, 0
        %v623 = vand.u32 %v615, 4294901760
        %624 = vmatprep.subr.mxu0 %v623
        %v625 = vand.u32 %v614, 4294901760
        %626 = vmatpush1.msra.mxu0 %v625
        %627 = vmatprep.subr.mxu0 0.0
        %628 = vmatpush1.msra.mxu0 0.0
        %629 = vmatprep.subr.mxu0 0.0
        %630 = vmatpush1.msra.mxu0 0.0
        %631 = vmatprep.subr.mxu0 0.0
        %632 = vmatpush1.msra.mxu0 0.0
        %633 = vmatprep.subr.mxu0 0.0
        %634 = vmatpush1.msra.mxu0 0.0
        %635 = vmatprep.subr.mxu0 0.0
        %636 = vmatpush1.msra.mxu0 0.0
        %637 = vmatprep.subr.mxu0 0.0
        %638 = vmatpush1.msra.mxu0 0.0
        %639 = vmatprep.subr.mxu0 0.0
        %640 = vmatpush1.msra.mxu0 0.0
        %641 = vmatprep.subr.mxu0 0.0
        %642 = vmatpush1.msra.mxu0 0.0
        %643 = vmatprep.subr.mxu0 0.0
        %644 = vmatpush1.msra.mxu0 0.0
        %645 = vmatprep.subr.mxu0 0.0
        %646 = vmatpush1.msra.mxu0 0.0
        %647 = vmatprep.subr.mxu0 0.0
        %648 = vmatpush1.msra.mxu0 0.0
        %649 = vmatprep.subr.mxu0 0.0
        %650 = vmatpush1.msra.mxu0 0.0
        %651 = vmatprep.subr.mxu0 0.0
        %652 = vmatpush1.msra.mxu0 0.0
        %653 = vmatprep.subr.mxu0 0.0
        %654 = vmatpush1.msra.mxu0 0.0
        %655 = vmatprep.subr.mxu0 0.0
        %656 = vmatpush1.msra.mxu0 0.0
        %657 = vmatprep.subr.mxu0 0.0
        %658 = vmatpush1.msra.mxu0 0.0
        %659 = vmatprep.subr.mxu0 0.0
        %660 = vmatpush1.msra.mxu0 0.0
        %661 = vmatprep.subr.mxu0 0.0
        %662 = vmatpush1.msra.mxu0 0.0
        %663 = vmatprep.subr.mxu0 0.0
        %664 = vmatpush1.msra.mxu0 0.0
        %665 = vmatprep.subr.mxu0 0.0
        %666 = vmatpush1.msra.mxu0 0.0
        %667 = vmatprep.subr.mxu0 0.0
        %668 = vmatpush1.msra.mxu0 0.0
        %669 = vmatprep.subr.mxu0 0.0
        %670 = vmatpush1.msra.mxu0 0.0
        %671 = vmatprep.subr.mxu0 0.0
        %672 = vmatpush1.msra.mxu0 0.0
        %673 = vmatprep.subr.mxu0 0.0
        %674 = vmatpush1.msra.mxu0 0.0
        %675 = vmatprep.subr.mxu0 0.0
        %676 = vmatpush1.msra.mxu0 0.0
        %677 = vmatprep.subr.mxu0 0.0
        %678 = vmatpush1.msra.mxu0 0.0
        %679 = vmatprep.subr.mxu0 0.0
        %680 = vmatpush1.msra.mxu0 0.0
        %681 = vmatprep.subr.mxu0 0.0
        %682 = vmatpush1.msra.mxu0 0.0
        %683 = vmatprep.subr.mxu0 0.0
        %684 = vmatpush1.msra.mxu0 0.0
        %685 = vmatprep.subr.mxu0 0.0
        %686 = vmatpush1.msra.mxu0 0.0
        %687 = vmatprep.subr.mxu0 0.0
        %688 = vmatpush1.msra.mxu0 0.0
        %689 = vmatprep.mubr.f32.mxu0 0.0
        %v690 = vand.u32 %v621, 4294901760
        %v691 = vsub.f32 %v621, %v690
        %v692 = vand.u32 %v691, 4294901760
        %v693 = vsub.f32 %v691, %v692
        %v694 = vand.u32 %v693, 4294901760
        %695 = vmatmul.mubr.f32.gmra.mrb[0].mxu0 %v694
        %v696 = vpop.f32.mrb[0].mxu0
        %v697 = vadd.f32 0.0, %v696
        %v698 = vpop.f32.mrb[0].mxu0
        %v699 = vadd.f32 0.0, %v698
        %700 = vdwg.mxu0
        %v701 = vand.u32 %v615, 4294901760
        %v702 = vsub.f32 %v615, %v701
        %v703 = vand.u32 %v702, 4294901760
        %v704 = vsub.f32 %v702, %v703
        %v705 = vand.u32 %v704, 4294901760
        %706 = vmatprep.subr.mxu0 %v705
        %v707 = vand.u32 %v614, 4294901760
        %v708 = vsub.f32 %v614, %v707
        %v709 = vand.u32 %v708, 4294901760
        %v710 = vsub.f32 %v708, %v709
        %v711 = vand.u32 %v710, 4294901760
        %712 = vmatpush1.msra.mxu0 %v711
        %713 = vmatprep.subr.mxu0 0.0
        %714 = vmatpush1.msra.mxu0 0.0
        %715 = vmatprep.subr.mxu0 0.0
        %716 = vmatpush1.msra.mxu0 0.0
        %717 = vmatprep.subr.mxu0 0.0
        %718 = vmatpush1.msra.mxu0 0.0
        %719 = vmatprep.subr.mxu0 0.0
        %720 = vmatpush1.msra.mxu0 0.0
        %721 = vmatprep.subr.mxu0 0.0
        %722 = vmatpush1.msra.mxu0 0.0
        %723 = vmatprep.subr.mxu0 0.0
        %724 = vmatpush1.msra.mxu0 0.0
        %725 = vmatprep.subr.mxu0 0.0
        %726 = vmatpush1.msra.mxu0 0.0
        %727 = vmatprep.subr.mxu0 0.0
        %728 = vmatpush1.msra.mxu0 0.0
        %729 = vmatprep.subr.mxu0 0.0
        %730 = vmatpush1.msra.mxu0 0.0
        %731 = vmatprep.subr.mxu0 0.0
        %732 = vmatpush1.msra.mxu0 0.0
        %733 = vmatprep.subr.mxu0 0.0
        %734 = vmatpush1.msra.mxu0 0.0
        %735 = vmatprep.subr.mxu0 0.0
        %736 = vmatpush1.msra.mxu0 0.0
        %737 = vmatprep.subr.mxu0 0.0
        %738 = vmatpush1.msra.mxu0 0.0
        %739 = vmatprep.subr.mxu0 0.0
        %740 = vmatpush1.msra.mxu0 0.0
        %741 = vmatprep.subr.mxu0 0.0
        %742 = vmatpush1.msra.mxu0 0.0
        %743 = vmatprep.subr.mxu0 0.0
        %744 = vmatpush1.msra.mxu0 0.0
        %745 = vmatprep.subr.mxu0 0.0
        %746 = vmatpush1.msra.mxu0 0.0
        %747 = vmatprep.subr.mxu0 0.0
        %748 = vmatpush1.msra.mxu0 0.0
        %749 = vmatprep.subr.mxu0 0.0
        %750 = vmatpush1.msra.mxu0 0.0
        %751 = vmatprep.subr.mxu0 0.0
        %752 = vmatpush1.msra.mxu0 0.0
        %753 = vmatprep.subr.mxu0 0.0
        %754 = vmatpush1.msra.mxu0 0.0
        %755 = vmatprep.subr.mxu0 0.0
        %756 = vmatpush1.msra.mxu0 0.0
        %757 = vmatprep.subr.mxu0 0.0
        %758 = vmatpush1.msra.mxu0 0.0
        %759 = vmatprep.subr.mxu0 0.0
        %760 = vmatpush1.msra.mxu0 0.0
        %761 = vmatprep.subr.mxu0 0.0
        %762 = vmatpush1.msra.mxu0 0.0
        %763 = vmatprep.subr.mxu0 0.0
        %764 = vmatpush1.msra.mxu0 0.0
        %765 = vmatprep.subr.mxu0 0.0
        %766 = vmatpush1.msra.mxu0 0.0
        %767 = vmatprep.subr.mxu0 0.0
        %768 = vmatpush1.msra.mxu0 0.0
        %769 = vmatprep.subr.mxu0 0.0
        %770 = vmatpush1.msra.mxu0 0.0
        %771 = vmatprep.subr.mxu0 0.0
        %772 = vmatpush1.msra.mxu0 0.0
        %773 = vmatprep.subr.mxu0 0.0
        %774 = vmatpush1.msra.mxu0 0.0
        %775 = vmatprep.mubr.f32.mxu0 0.0
        %v776 = vand.u32 %v621, 4294901760
        %777 = vmatmul.mubr.f32.gmra.mrb[0].mxu0 %v776
        %v778 = vpop.f32.mrb[0].mxu0
        %v779 = vadd.f32 %v697, %v778
        %v780 = vpop.f32.mrb[0].mxu0
        %v781 = vadd.f32 %v699, %v780
        %782 = vdwg.mxu0
        %v783 = vand.u32 %v615, 4294901760
        %v784 = vsub.f32 %v615, %v783
        %785 = vmatprep.subr.mxu0 %v784
        %v786 = vand.u32 %v614, 4294901760
        %v787 = vsub.f32 %v614, %v786
        %788 = vmatpush1.msra.mxu0 %v787
        %789 = vmatprep.subr.mxu0 0.0
        %790 = vmatpush1.msra.mxu0 0.0
        %791 = vmatprep.subr.mxu0 0.0
        %792 = vmatpush1.msra.mxu0 0.0
        %793 = vmatprep.subr.mxu0 0.0
        %794 = vmatpush1.msra.mxu0 0.0
        %795 = vmatprep.subr.mxu0 0.0
        %796 = vmatpush1.msra.mxu0 0.0
        %797 = vmatprep.subr.mxu0 0.0
        %798 = vmatpush1.msra.mxu0 0.0
        %799 = vmatprep.subr.mxu0 0.0
        %800 = vmatpush1.msra.mxu0 0.0
        %801 = vmatprep.subr.mxu0 0.0
        %802 = vmatpush1.msra.mxu0 0.0
        %803 = vmatprep.subr.mxu0 0.0
        %804 = vmatpush1.msra.mxu0 0.0
        %805 = vmatprep.subr.mxu0 0.0
        %806 = vmatpush1.msra.mxu0 0.0
        %807 = vmatprep.subr.mxu0 0.0
        %808 = vmatpush1.msra.mxu0 0.0
        %809 = vmatprep.subr.mxu0 0.0
        %810 = vmatpush1.msra.mxu0 0.0
        %811 = vmatprep.subr.mxu0 0.0
        %812 = vmatpush1.msra.mxu0 0.0
        %813 = vmatprep.subr.mxu0 0.0
        %814 = vmatpush1.msra.mxu0 0.0
        %815 = vmatprep.subr.mxu0 0.0
        %816 = vmatpush1.msra.mxu0 0.0
        %817 = vmatprep.subr.mxu0 0.0
        %818 = vmatpush1.msra.mxu0 0.0
        %819 = vmatprep.subr.mxu0 0.0
        %820 = vmatpush1.msra.mxu0 0.0
        %821 = vmatprep.subr.mxu0 0.0
        %822 = vmatpush1.msra.mxu0 0.0
        %823 = vmatprep.subr.mxu0 0.0
        %824 = vmatpush1.msra.mxu0 0.0
        %825 = vmatprep.subr.mxu0 0.0
        %826 = vmatpush1.msra.mxu0 0.0
        %827 = vmatprep.subr.mxu0 0.0
        %828 = vmatpush1.msra.mxu0 0.0
        %829 = vmatprep.subr.mxu0 0.0
        %830 = vmatpush1.msra.mxu0 0.0
        %831 = vmatprep.subr.mxu0 0.0
        %832 = vmatpush1.msra.mxu0 0.0
        %833 = vmatprep.subr.mxu0 0.0
        %834 = vmatpush1.msra.mxu0 0.0
        %835 = vmatprep.subr.mxu0 0.0
        %836 = vmatpush1.msra.mxu0 0.0
        %837 = vmatprep.subr.mxu0 0.0
        %838 = vmatpush1.msra.mxu0 0.0
        %839 = vmatprep.subr.mxu0 0.0
        %840 = vmatpush1.msra.mxu0 0.0
        %841 = vmatprep.subr.mxu0 0.0
        %842 = vmatpush1.msra.mxu0 0.0
        %843 = vmatprep.subr.mxu0 0.0
        %844 = vmatpush1.msra.mxu0 0.0
        %845 = vmatprep.subr.mxu0 0.0
        %846 = vmatpush1.msra.mxu0 0.0
        %847 = vmatprep.subr.mxu0 0.0
        %848 = vmatpush1.msra.mxu0 0.0
        %849 = vmatprep.subr.mxu0 0.0
        %850 = vmatpush1.msra.mxu0 0.0
        %851 = vmatprep.mubr.f32.mxu0 0.0
        %v852 = vand.u32 %v621, 4294901760
        %v853 = vsub.f32 %v621, %v852
        %854 = vmatmul.mubr.f32.gmra.mrb[0].mxu0 %v853
        %v855 = vpop.f32.mrb[0].mxu0
        %v856 = vadd.f32 %v779, %v855
        %v857 = vpop.f32.mrb[0].mxu0
        %v858 = vadd.f32 %v781, %v857
        %859 = vdwg.mxu0
        %v860 = vand.u32 %v615, 4294901760
        %861 = vmatprep.subr.mxu0 %v860
        %v862 = vand.u32 %v614, 4294901760
        %863 = vmatpush1.msra.mxu0 %v862
        %864 = vmatprep.subr.mxu0 0.0
        %865 = vmatpush1.msra.mxu0 0.0
        %866 = vmatprep.subr.mxu0 0.0
        %867 = vmatpush1.msra.mxu0 0.0
        %868 = vmatprep.subr.mxu0 0.0
        %869 = vmatpush1.msra.mxu0 0.0
        %870 = vmatprep.subr.mxu0 0.0
        %871 = vmatpush1.msra.mxu0 0.0
        %872 = vmatprep.subr.mxu0 0.0
        %873 = vmatpush1.msra.mxu0 0.0
        %874 = vmatprep.subr.mxu0 0.0
        %875 = vmatpush1.msra.mxu0 0.0
        %876 = vmatprep.subr.mxu0 0.0
        %877 = vmatpush1.msra.mxu0 0.0
        %878 = vmatprep.subr.mxu0 0.0
        %879 = vmatpush1.msra.mxu0 0.0
        %880 = vmatprep.subr.mxu0 0.0
        %881 = vmatpush1.msra.mxu0 0.0
        %882 = vmatprep.subr.mxu0 0.0
        %883 = vmatpush1.msra.mxu0 0.0
        %884 = vmatprep.subr.mxu0 0.0
        %885 = vmatpush1.msra.mxu0 0.0
        %886 = vmatprep.subr.mxu0 0.0
        %887 = vmatpush1.msra.mxu0 0.0
        %888 = vmatprep.subr.mxu0 0.0
        %889 = vmatpush1.msra.mxu0 0.0
        %890 = vmatprep.subr.mxu0 0.0
        %891 = vmatpush1.msra.mxu0 0.0
        %892 = vmatprep.subr.mxu0 0.0
        %893 = vmatpush1.msra.mxu0 0.0
        %894 = vmatprep.subr.mxu0 0.0
        %895 = vmatpush1.msra.mxu0 0.0
        %896 = vmatprep.subr.mxu0 0.0
        %897 = vmatpush1.msra.mxu0 0.0
        %898 = vmatprep.subr.mxu0 0.0
        %899 = vmatpush1.msra.mxu0 0.0
        %900 = vmatprep.subr.mxu0 0.0
        %901 = vmatpush1.msra.mxu0 0.0
        %902 = vmatprep.subr.mxu0 0.0
        %903 = vmatpush1.msra.mxu0 0.0
        %904 = vmatprep.subr.mxu0 0.0
        %905 = vmatpush1.msra.mxu0 0.0
        %906 = vmatprep.subr.mxu0 0.0
        %907 = vmatpush1.msra.mxu0 0.0
        %908 = vmatprep.subr.mxu0 0.0
        %909 = vmatpush1.msra.mxu0 0.0
        %910 = vmatprep.subr.mxu0 0.0
        %911 = vmatpush1.msra.mxu0 0.0
        %912 = vmatprep.subr.mxu0 0.0
        %913 = vmatpush1.msra.mxu0 0.0
        %914 = vmatprep.subr.mxu0 0.0
        %915 = vmatpush1.msra.mxu0 0.0
        %916 = vmatprep.subr.mxu0 0.0
        %917 = vmatpush1.msra.mxu0 0.0
        %918 = vmatprep.subr.mxu0 0.0
        %919 = vmatpush1.msra.mxu0 0.0
        %920 = vmatprep.subr.mxu0 0.0
        %921 = vmatpush1.msra.mxu0 0.0
        %922 = vmatprep.subr.mxu0 0.0
        %923 = vmatpush1.msra.mxu0 0.0
        %924 = vmatprep.subr.mxu0 0.0
        %925 = vmatpush1.msra.mxu0 0.0
        %926 = vmatprep.mubr.f32.mxu0 0.0
        %v927 = vand.u32 %v621, 4294901760
        %v928 = vsub.f32 %v621, %v927
        %v929 = vand.u32 %v928, 4294901760
        %930 = vmatmul.mubr.f32.gmra.mrb[0].mxu0 %v929
        %v931 = vpop.f32.mrb[0].mxu0
        %v932 = vadd.f32 %v856, %v931
        %v933 = vpop.f32.mrb[0].mxu0
        %v934 = vadd.f32 %v858, %v933
        %935 = vdwg.mxu0
        %v936 = vand.u32 %v615, 4294901760
        %v937 = vsub.f32 %v615, %v936
        %v938 = vand.u32 %v937, 4294901760
        %939 = vmatprep.subr.mxu0 %v938
        %v940 = vand.u32 %v614, 4294901760
        %v941 = vsub.f32 %v614, %v940
        %v942 = vand.u32 %v941, 4294901760
        %943 = vmatpush1.msra.mxu0 %v942
        %944 = vmatprep.subr.mxu0 0.0
        %945 = vmatpush1.msra.mxu0 0.0
        %946 = vmatprep.subr.mxu0 0.0
        %947 = vmatpush1.msra.mxu0 0.0
        %948 = vmatprep.subr.mxu0 0.0
        %949 = vmatpush1.msra.mxu0 0.0
        %950 = vmatprep.subr.mxu0 0.0
        %951 = vmatpush1.msra.mxu0 0.0
        %952 = vmatprep.subr.mxu0 0.0
        %953 = vmatpush1.msra.mxu0 0.0
        %954 = vmatprep.subr.mxu0 0.0
        %955 = vmatpush1.msra.mxu0 0.0
        %956 = vmatprep.subr.mxu0 0.0
        %957 = vmatpush1.msra.mxu0 0.0
        %958 = vmatprep.subr.mxu0 0.0
        %959 = vmatpush1.msra.mxu0 0.0
        %960 = vmatprep.subr.mxu0 0.0
        %961 = vmatpush1.msra.mxu0 0.0
        %962 = vmatprep.subr.mxu0 0.0
        %963 = vmatpush1.msra.mxu0 0.0
        %964 = vmatprep.subr.mxu0 0.0
        %965 = vmatpush1.msra.mxu0 0.0
        %966 = vmatprep.subr.mxu0 0.0
        %967 = vmatpush1.msra.mxu0 0.0
        %968 = vmatprep.subr.mxu0 0.0
        %969 = vmatpush1.msra.mxu0 0.0
        %970 = vmatprep.subr.mxu0 0.0
        %971 = vmatpush1.msra.mxu0 0.0
        %972 = vmatprep.subr.mxu0 0.0
        %973 = vmatpush1.msra.mxu0 0.0
        %974 = vmatprep.subr.mxu0 0.0
        %975 = vmatpush1.msra.mxu0 0.0
        %976 = vmatprep.subr.mxu0 0.0
        %977 = vmatpush1.msra.mxu0 0.0
        %978 = vmatprep.subr.mxu0 0.0
        %979 = vmatpush1.msra.mxu0 0.0
        %980 = vmatprep.subr.mxu0 0.0
        %981 = vmatpush1.msra.mxu0 0.0
        %982 = vmatprep.subr.mxu0 0.0
        %983 = vmatpush1.msra.mxu0 0.0
        %984 = vmatprep.subr.mxu0 0.0
        %985 = vmatpush1.msra.mxu0 0.0
        %986 = vmatprep.subr.mxu0 0.0
        %987 = vmatpush1.msra.mxu0 0.0
        %988 = vmatprep.subr.mxu0 0.0
        %989 = vmatpush1.msra.mxu0 0.0
        %990 = vmatprep.subr.mxu0 0.0
        %991 = vmatpush1.msra.mxu0 0.0
        %992 = vmatprep.subr.mxu0 0.0
        %993 = vmatpush1.msra.mxu0 0.0
        %994 = vmatprep.subr.mxu0 0.0
        %995 = vmatpush1.msra.mxu0 0.0
        %996 = vmatprep.subr.mxu0 0.0
        %997 = vmatpush1.msra.mxu0 0.0
        %998 = vmatprep.subr.mxu0 0.0
        %999 = vmatpush1.msra.mxu0 0.0
        %1000 = vmatprep.subr.mxu0 0.0
        %1001 = vmatpush1.msra.mxu0 0.0
        %1002 = vmatprep.subr.mxu0 0.0
        %1003 = vmatpush1.msra.mxu0 0.0
        %1004 = vmatprep.subr.mxu0 0.0
        %1005 = vmatpush1.msra.mxu0 0.0
        %1006 = vmatprep.mubr.f32.mxu0 0.0
        %v1007 = vand.u32 %v621, 4294901760
        %1008 = vmatmul.mubr.f32.gmra.mrb[0].mxu0 %v1007
        %v1009 = vpop.f32.mrb[0].mxu0
        %v1010 = vadd.f32 %v932, %v1009
        %v1011 = vpop.f32.mrb[0].mxu0
        %v1012 = vadd.f32 %v934, %v1011
        %1013 = vdwg.mxu0
        %v1014 = vand.u32 %v615, 4294901760
        %1015 = vmatprep.subr.mxu0 %v1014
        %v1016 = vand.u32 %v614, 4294901760
        %1017 = vmatpush1.msra.mxu0 %v1016
        %1018 = vmatprep.subr.mxu0 0.0
        %1019 = vmatpush1.msra.mxu0 0.0
        %1020 = vmatprep.subr.mxu0 0.0
        %1021 = vmatpush1.msra.mxu0 0.0
        %1022 = vmatprep.subr.mxu0 0.0
        %1023 = vmatpush1.msra.mxu0 0.0
        %1024 = vmatprep.subr.mxu0 0.0
        %1025 = vmatpush1.msra.mxu0 0.0
        %1026 = vmatprep.subr.mxu0 0.0
        %1027 = vmatpush1.msra.mxu0 0.0
        %1028 = vmatprep.subr.mxu0 0.0
        %1029 = vmatpush1.msra.mxu0 0.0
        %1030 = vmatprep.subr.mxu0 0.0
        %1031 = vmatpush1.msra.mxu0 0.0
        %1032 = vmatprep.subr.mxu0 0.0
        %1033 = vmatpush1.msra.mxu0 0.0
        %1034 = vmatprep.subr.mxu0 0.0
        %1035 = vmatpush1.msra.mxu0 0.0
        %1036 = vmatprep.subr.mxu0 0.0
        %1037 = vmatpush1.msra.mxu0 0.0
        %1038 = vmatprep.subr.mxu0 0.0
        %1039 = vmatpush1.msra.mxu0 0.0
        %1040 = vmatprep.subr.mxu0 0.0
        %1041 = vmatpush1.msra.mxu0 0.0
        %1042 = vmatprep.subr.mxu0 0.0
        %1043 = vmatpush1.msra.mxu0 0.0
        %1044 = vmatprep.subr.mxu0 0.0
        %1045 = vmatpush1.msra.mxu0 0.0
        %1046 = vmatprep.subr.mxu0 0.0
        %1047 = vmatpush1.msra.mxu0 0.0
        %1048 = vmatprep.subr.mxu0 0.0
        %1049 = vmatpush1.msra.mxu0 0.0
        %1050 = vmatprep.subr.mxu0 0.0
        %1051 = vmatpush1.msra.mxu0 0.0
        %1052 = vmatprep.subr.mxu0 0.0
        %1053 = vmatpush1.msra.mxu0 0.0
        %1054 = vmatprep.subr.mxu0 0.0
        %1055 = vmatpush1.msra.mxu0 0.0
        %1056 = vmatprep.subr.mxu0 0.0
        %1057 = vmatpush1.msra.mxu0 0.0
        %1058 = vmatprep.subr.mxu0 0.0
        %1059 = vmatpush1.msra.mxu0 0.0
        %1060 = vmatprep.subr.mxu0 0.0
        %1061 = vmatpush1.msra.mxu0 0.0
        %1062 = vmatprep.subr.mxu0 0.0
        %1063 = vmatpush1.msra.mxu0 0.0
        %1064 = vmatprep.subr.mxu0 0.0
        %1065 = vmatpush1.msra.mxu0 0.0
        %1066 = vmatprep.subr.mxu0 0.0
        %1067 = vmatpush1.msra.mxu0 0.0
        %1068 = vmatprep.subr.mxu0 0.0
        %1069 = vmatpush1.msra.mxu0 0.0
        %1070 = vmatprep.subr.mxu0 0.0
        %1071 = vmatpush1.msra.mxu0 0.0
        %1072 = vmatprep.subr.mxu0 0.0
        %1073 = vmatpush1.msra.mxu0 0.0
        %1074 = vmatprep.subr.mxu0 0.0
        %1075 = vmatpush1.msra.mxu0 0.0
        %1076 = vmatprep.subr.mxu0 0.0
        %1077 = vmatpush1.msra.mxu0 0.0
        %1078 = vmatprep.subr.mxu0 0.0
        %1079 = vmatpush1.msra.mxu0 0.0
        %1080 = vmatprep.mubr.f32.mxu0 0.0
        %v1081 = vand.u32 %v621, 4294901760
        %1082 = vmatmul.mubr.f32.gmra.mrb[0].mxu0 %v1081
        %v1083 = vpop.f32.mrb[0].mxu0
        %v1084 = vadd.f32 %v1010, %v1083
        %v1085 = vpop.f32.mrb[0].mxu0
        %v1086 = vadd.f32 %v1012, %v1085
        %1087 = vdwg.mxu0
        %v1088 = vand.u32 %v617, 4294901760
        %1089 = vmatprep.subr.mxu0 %v1088
        %v1090 = vand.u32 %v616, 4294901760
        %1091 = vmatpush1.msra.mxu0 %v1090
        %1092 = vmatprep.subr.mxu0 0.0
        %1093 = vmatpush1.msra.mxu0 0.0
        %1094 = vmatprep.subr.mxu0 0.0
        %1095 = vmatpush1.msra.mxu0 0.0
        %1096 = vmatprep.subr.mxu0 0.0
        %1097 = vmatpush1.msra.mxu0 0.0
        %1098 = vmatprep.subr.mxu0 0.0
        %1099 = vmatpush1.msra.mxu0 0.0
        %1100 = vmatprep.subr.mxu0 0.0
        %1101 = vmatpush1.msra.mxu0 0.0
        %1102 = vmatprep.subr.mxu0 0.0
        %1103 = vmatpush1.msra.mxu0 0.0
        %1104 = vmatprep.subr.mxu0 0.0
        %1105 = vmatpush1.msra.mxu0 0.0
        %1106 = vmatprep.subr.mxu0 0.0
        %1107 = vmatpush1.msra.mxu0 0.0
        %1108 = vmatprep.subr.mxu0 0.0
        %1109 = vmatpush1.msra.mxu0 0.0
        %1110 = vmatprep.subr.mxu0 0.0
        %1111 = vmatpush1.msra.mxu0 0.0
        %1112 = vmatprep.subr.mxu0 0.0
        %1113 = vmatpush1.msra.mxu0 0.0
        %1114 = vmatprep.subr.mxu0 0.0
        %1115 = vmatpush1.msra.mxu0 0.0
        %1116 = vmatprep.subr.mxu0 0.0
        %1117 = vmatpush1.msra.mxu0 0.0
        %1118 = vmatprep.subr.mxu0 0.0
        %1119 = vmatpush1.msra.mxu0 0.0
        %1120 = vmatprep.subr.mxu0 0.0
        %1121 = vmatpush1.msra.mxu0 0.0
        %1122 = vmatprep.subr.mxu0 0.0
        %1123 = vmatpush1.msra.mxu0 0.0
        %1124 = vmatprep.subr.mxu0 0.0
        %1125 = vmatpush1.msra.mxu0 0.0
        %1126 = vmatprep.subr.mxu0 0.0
        %1127 = vmatpush1.msra.mxu0 0.0
        %1128 = vmatprep.subr.mxu0 0.0
        %1129 = vmatpush1.msra.mxu0 0.0
        %1130 = vmatprep.subr.mxu0 0.0
        %1131 = vmatpush1.msra.mxu0 0.0
        %1132 = vmatprep.subr.mxu0 0.0
        %1133 = vmatpush1.msra.mxu0 0.0
        %1134 = vmatprep.subr.mxu0 0.0
        %1135 = vmatpush1.msra.mxu0 0.0
        %1136 = vmatprep.subr.mxu0 0.0
        %1137 = vmatpush1.msra.mxu0 0.0
        %1138 = vmatprep.subr.mxu0 0.0
        %1139 = vmatpush1.msra.mxu0 0.0
        %1140 = vmatprep.subr.mxu0 0.0
        %1141 = vmatpush1.msra.mxu0 0.0
        %1142 = vmatprep.subr.mxu0 0.0
        %1143 = vmatpush1.msra.mxu0 0.0
        %1144 = vmatprep.subr.mxu0 0.0
        %1145 = vmatpush1.msra.mxu0 0.0
        %1146 = vmatprep.subr.mxu0 0.0
        %1147 = vmatpush1.msra.mxu0 0.0
        %1148 = vmatprep.subr.mxu0 0.0
        %1149 = vmatpush1.msra.mxu0 0.0
        %1150 = vmatprep.subr.mxu0 0.0
        %1151 = vmatpush1.msra.mxu0 0.0
        %1152 = vmatprep.subr.mxu0 0.0
        %1153 = vmatpush1.msra.mxu0 0.0
        %1154 = vmatprep.mubr.f32.mxu0 0.0
        %v1155 = vand.u32 %v621, 4294901760
        %v1156 = vsub.f32 %v621, %v1155
        %v1157 = vand.u32 %v1156, 4294901760
        %v1158 = vsub.f32 %v1156, %v1157
        %v1159 = vand.u32 %v1158, 4294901760
        %1160 = vmatmul.mubr.f32.gmra.mrb[0].mxu0 %v1159
        %v1161 = vpop.f32.mrb[0].mxu0
        %v1162 = vadd.f32 0.0, %v1161
        %v1163 = vpop.f32.mrb[0].mxu0
        %v1164 = vadd.f32 0.0, %v1163
        %1165 = vdwg.mxu0
        %v1166 = vand.u32 %v617, 4294901760
        %v1167 = vsub.f32 %v617, %v1166
        %v1168 = vand.u32 %v1167, 4294901760
        %v1169 = vsub.f32 %v1167, %v1168
        %v1170 = vand.u32 %v1169, 4294901760
        %1171 = vmatprep.subr.mxu0 %v1170
        %v1172 = vand.u32 %v616, 4294901760
        %v1173 = vsub.f32 %v616, %v1172
        %v1174 = vand.u32 %v1173, 4294901760
        %v1175 = vsub.f32 %v1173, %v1174
        %v1176 = vand.u32 %v1175, 4294901760
        %1177 = vmatpush1.msra.mxu0 %v1176
        %1178 = vmatprep.subr.mxu0 0.0
        %1179 = vmatpush1.msra.mxu0 0.0
        %1180 = vmatprep.subr.mxu0 0.0
        %1181 = vmatpush1.msra.mxu0 0.0
        %1182 = vmatprep.subr.mxu0 0.0
        %1183 = vmatpush1.msra.mxu0 0.0
        %1184 = vmatprep.subr.mxu0 0.0
        %1185 = vmatpush1.msra.mxu0 0.0
        %1186 = vmatprep.subr.mxu0 0.0
        %1187 = vmatpush1.msra.mxu0 0.0
        %1188 = vmatprep.subr.mxu0 0.0
        %1189 = vmatpush1.msra.mxu0 0.0
        %1190 = vmatprep.subr.mxu0 0.0
        %1191 = vmatpush1.msra.mxu0 0.0
        %1192 = vmatprep.subr.mxu0 0.0
        %1193 = vmatpush1.msra.mxu0 0.0
        %1194 = vmatprep.subr.mxu0 0.0
        %1195 = vmatpush1.msra.mxu0 0.0
        %1196 = vmatprep.subr.mxu0 0.0
        %1197 = vmatpush1.msra.mxu0 0.0
        %1198 = vmatprep.subr.mxu0 0.0
        %1199 = vmatpush1.msra.mxu0 0.0
        %1200 = vmatprep.subr.mxu0 0.0
        %1201 = vmatpush1.msra.mxu0 0.0
        %1202 = vmatprep.subr.mxu0 0.0
        %1203 = vmatpush1.msra.mxu0 0.0
        %1204 = vmatprep.subr.mxu0 0.0
        %1205 = vmatpush1.msra.mxu0 0.0
        %1206 = vmatprep.subr.mxu0 0.0
        %1207 = vmatpush1.msra.mxu0 0.0
        %1208 = vmatprep.subr.mxu0 0.0
        %1209 = vmatpush1.msra.mxu0 0.0
        %1210 = vmatprep.subr.mxu0 0.0
        %1211 = vmatpush1.msra.mxu0 0.0
        %1212 = vmatprep.subr.mxu0 0.0
        %1213 = vmatpush1.msra.mxu0 0.0
        %1214 = vmatprep.subr.mxu0 0.0
        %1215 = vmatpush1.msra.mxu0 0.0
        %1216 = vmatprep.subr.mxu0 0.0
        %1217 = vmatpush1.msra.mxu0 0.0
        %1218 = vmatprep.subr.mxu0 0.0
        %1219 = vmatpush1.msra.mxu0 0.0
        %1220 = vmatprep.subr.mxu0 0.0
        %1221 = vmatpush1.msra.mxu0 0.0
        %1222 = vmatprep.subr.mxu0 0.0
        %1223 = vmatpush1.msra.mxu0 0.0
        %1224 = vmatprep.subr.mxu0 0.0
        %1225 = vmatpush1.msra.mxu0 0.0
        %1226 = vmatprep.subr.mxu0 0.0
        %1227 = vmatpush1.msra.mxu0 0.0
        %1228 = vmatprep.subr.mxu0 0.0
        %1229 = vmatpush1.msra.mxu0 0.0
        %1230 = vmatprep.subr.mxu0 0.0
        %1231 = vmatpush1.msra.mxu0 0.0
        %1232 = vmatprep.subr.mxu0 0.0
        %1233 = vmatpush1.msra.mxu0 0.0
        %1234 = vmatprep.subr.mxu0 0.0
        %1235 = vmatpush1.msra.mxu0 0.0
        %1236 = vmatprep.subr.mxu0 0.0
        %1237 = vmatpush1.msra.mxu0 0.0
        %1238 = vmatprep.subr.mxu0 0.0
        %1239 = vmatpush1.msra.mxu0 0.0
        %1240 = vmatprep.mubr.f32.mxu0 0.0
        %v1241 = vand.u32 %v621, 4294901760
        %1242 = vmatmul.mubr.f32.gmra.mrb[0].mxu0 %v1241
        %v1243 = vpop.f32.mrb[0].mxu0
        %v1244 = vadd.f32 %v1162, %v1243
        %v1245 = vpop.f32.mrb[0].mxu0
        %v1246 = vadd.f32 %v1164, %v1245
        %1247 = vdwg.mxu0
        %v1248 = vand.u32 %v617, 4294901760
        %v1249 = vsub.f32 %v617, %v1248
        %1250 = vmatprep.subr.mxu0 %v1249
        %v1251 = vand.u32 %v616, 4294901760
        %v1252 = vsub.f32 %v616, %v1251
        %1253 = vmatpush1.msra.mxu0 %v1252
        %1254 = vmatprep.subr.mxu0 0.0
        %1255 = vmatpush1.msra.mxu0 0.0
        %1256 = vmatprep.subr.mxu0 0.0
        %1257 = vmatpush1.msra.mxu0 0.0
        %1258 = vmatprep.subr.mxu0 0.0
        %1259 = vmatpush1.msra.mxu0 0.0
        %1260 = vmatprep.subr.mxu0 0.0
        %1261 = vmatpush1.msra.mxu0 0.0
        %1262 = vmatprep.subr.mxu0 0.0
        %1263 = vmatpush1.msra.mxu0 0.0
        %1264 = vmatprep.subr.mxu0 0.0
        %1265 = vmatpush1.msra.mxu0 0.0
        %1266 = vmatprep.subr.mxu0 0.0
        %1267 = vmatpush1.msra.mxu0 0.0
        %1268 = vmatprep.subr.mxu0 0.0
        %1269 = vmatpush1.msra.mxu0 0.0
        %1270 = vmatprep.subr.mxu0 0.0
        %1271 = vmatpush1.msra.mxu0 0.0
        %1272 = vmatprep.subr.mxu0 0.0
        %1273 = vmatpush1.msra.mxu0 0.0
        %1274 = vmatprep.subr.mxu0 0.0
        %1275 = vmatpush1.msra.mxu0 0.0
        %1276 = vmatprep.subr.mxu0 0.0
        %1277 = vmatpush1.msra.mxu0 0.0
        %1278 = vmatprep.subr.mxu0 0.0
        %1279 = vmatpush1.msra.mxu0 0.0
        %1280 = vmatprep.subr.mxu0 0.0
        %1281 = vmatpush1.msra.mxu0 0.0
        %1282 = vmatprep.subr.mxu0 0.0
        %1283 = vmatpush1.msra.mxu0 0.0
        %1284 = vmatprep.subr.mxu0 0.0
        %1285 = vmatpush1.msra.mxu0 0.0
        %1286 = vmatprep.subr.mxu0 0.0
        %1287 = vmatpush1.msra.mxu0 0.0
        %1288 = vmatprep.subr.mxu0 0.0
        %1289 = vmatpush1.msra.mxu0 0.0
        %1290 = vmatprep.subr.mxu0 0.0
        %1291 = vmatpush1.msra.mxu0 0.0
        %1292 = vmatprep.subr.mxu0 0.0
        %1293 = vmatpush1.msra.mxu0 0.0
        %1294 = vmatprep.subr.mxu0 0.0
        %1295 = vmatpush1.msra.mxu0 0.0
        %1296 = vmatprep.subr.mxu0 0.0
        %1297 = vmatpush1.msra.mxu0 0.0
        %1298 = vmatprep.subr.mxu0 0.0
        %1299 = vmatpush1.msra.mxu0 0.0
        %1300 = vmatprep.subr.mxu0 0.0
        %1301 = vmatpush1.msra.mxu0 0.0
        %1302 = vmatprep.subr.mxu0 0.0
        %1303 = vmatpush1.msra.mxu0 0.0
        %1304 = vmatprep.subr.mxu0 0.0
        %1305 = vmatpush1.msra.mxu0 0.0
        %1306 = vmatprep.subr.mxu0 0.0
        %1307 = vmatpush1.msra.mxu0 0.0
        %1308 = vmatprep.subr.mxu0 0.0
        %1309 = vmatpush1.msra.mxu0 0.0
        %1310 = vmatprep.subr.mxu0 0.0
        %1311 = vmatpush1.msra.mxu0 0.0
        %1312 = vmatprep.subr.mxu0 0.0
        %1313 = vmatpush1.msra.mxu0 0.0
        %1314 = vmatprep.subr.mxu0 0.0
        %1315 = vmatpush1.msra.mxu0 0.0
        %1316 = vmatprep.mubr.f32.mxu0 0.0
        %v1317 = vand.u32 %v621, 4294901760
        %v1318 = vsub.f32 %v621, %v1317
        %1319 = vmatmul.mubr.f32.gmra.mrb[0].mxu0 %v1318
        %v1320 = vpop.f32.mrb[0].mxu0
        %v1321 = vadd.f32 %v1244, %v1320
        %v1322 = vpop.f32.mrb[0].mxu0
        %v1323 = vadd.f32 %v1246, %v1322
        %1324 = vdwg.mxu0
        %v1325 = vand.u32 %v617, 4294901760
        %1326 = vmatprep.subr.mxu0 %v1325
        %v1327 = vand.u32 %v616, 4294901760
        %1328 = vmatpush1.msra.mxu0 %v1327
        %1329 = vmatprep.subr.mxu0 0.0
        %1330 = vmatpush1.msra.mxu0 0.0
        %1331 = vmatprep.subr.mxu0 0.0
        %1332 = vmatpush1.msra.mxu0 0.0
        %1333 = vmatprep.subr.mxu0 0.0
        %1334 = vmatpush1.msra.mxu0 0.0
        %1335 = vmatprep.subr.mxu0 0.0
        %1336 = vmatpush1.msra.mxu0 0.0
        %1337 = vmatprep.subr.mxu0 0.0
        %1338 = vmatpush1.msra.mxu0 0.0
        %1339 = vmatprep.subr.mxu0 0.0
        %1340 = vmatpush1.msra.mxu0 0.0
        %1341 = vmatprep.subr.mxu0 0.0
        %1342 = vmatpush1.msra.mxu0 0.0
        %1343 = vmatprep.subr.mxu0 0.0
        %1344 = vmatpush1.msra.mxu0 0.0
        %1345 = vmatprep.subr.mxu0 0.0
        %1346 = vmatpush1.msra.mxu0 0.0
        %1347 = vmatprep.subr.mxu0 0.0
        %1348 = vmatpush1.msra.mxu0 0.0
        %1349 = vmatprep.subr.mxu0 0.0
        %1350 = vmatpush1.msra.mxu0 0.0
        %1351 = vmatprep.subr.mxu0 0.0
        %1352 = vmatpush1.msra.mxu0 0.0
        %1353 = vmatprep.subr.mxu0 0.0
        %1354 = vmatpush1.msra.mxu0 0.0
        %1355 = vmatprep.subr.mxu0 0.0
        %1356 = vmatpush1.msra.mxu0 0.0
        %1357 = vmatprep.subr.mxu0 0.0
        %1358 = vmatpush1.msra.mxu0 0.0
        %1359 = vmatprep.subr.mxu0 0.0
        %1360 = vmatpush1.msra.mxu0 0.0
        %1361 = vmatprep.subr.mxu0 0.0
        %1362 = vmatpush1.msra.mxu0 0.0
        %1363 = vmatprep.subr.mxu0 0.0
        %1364 = vmatpush1.msra.mxu0 0.0
        %1365 = vmatprep.subr.mxu0 0.0
        %1366 = vmatpush1.msra.mxu0 0.0
        %1367 = vmatprep.subr.mxu0 0.0
        %1368 = vmatpush1.msra.mxu0 0.0
        %1369 = vmatprep.subr.mxu0 0.0
        %1370 = vmatpush1.msra.mxu0 0.0
        %1371 = vmatprep.subr.mxu0 0.0
        %1372 = vmatpush1.msra.mxu0 0.0
        %1373 = vmatprep.subr.mxu0 0.0
        %1374 = vmatpush1.msra.mxu0 0.0
        %1375 = vmatprep.subr.mxu0 0.0
        %1376 = vmatpush1.msra.mxu0 0.0
        %1377 = vmatprep.subr.mxu0 0.0
        %1378 = vmatpush1.msra.mxu0 0.0
        %1379 = vmatprep.subr.mxu0 0.0
        %1380 = vmatpush1.msra.mxu0 0.0
        %1381 = vmatprep.subr.mxu0 0.0
        %1382 = vmatpush1.msra.mxu0 0.0
        %1383 = vmatprep.subr.mxu0 0.0
        %1384 = vmatpush1.msra.mxu0 0.0
        %1385 = vmatprep.subr.mxu0 0.0
        %1386 = vmatpush1.msra.mxu0 0.0
        %1387 = vmatprep.subr.mxu0 0.0
        %1388 = vmatpush1.msra.mxu0 0.0
        %1389 = vmatprep.subr.mxu0 0.0
        %1390 = vmatpush1.msra.mxu0 0.0
        %1391 = vmatprep.mubr.f32.mxu0 0.0
        %v1392 = vand.u32 %v621, 4294901760
        %v1393 = vsub.f32 %v621, %v1392
        %v1394 = vand.u32 %v1393, 4294901760
        %1395 = vmatmul.mubr.f32.gmra.mrb[0].mxu0 %v1394
        %v1396 = vpop.f32.mrb[0].mxu0
        %v1397 = vadd.f32 %v1321, %v1396
        %v1398 = vpop.f32.mrb[0].mxu0
        %v1399 = vadd.f32 %v1323, %v1398
        %1400 = vdwg.mxu0
        %v1401 = vand.u32 %v617, 4294901760
        %v1402 = vsub.f32 %v617, %v1401
        %v1403 = vand.u32 %v1402, 4294901760
        %1404 = vmatprep.subr.mxu0 %v1403
        %v1405 = vand.u32 %v616, 4294901760
        %v1406 = vsub.f32 %v616, %v1405
        %v1407 = vand.u32 %v1406, 4294901760
        %1408 = vmatpush1.msra.mxu0 %v1407
        %1409 = vmatprep.subr.mxu0 0.0
        %1410 = vmatpush1.msra.mxu0 0.0
        %1411 = vmatprep.subr.mxu0 0.0
        %1412 = vmatpush1.msra.mxu0 0.0
        %1413 = vmatprep.subr.mxu0 0.0
        %1414 = vmatpush1.msra.mxu0 0.0
        %1415 = vmatprep.subr.mxu0 0.0
        %1416 = vmatpush1.msra.mxu0 0.0
        %1417 = vmatprep.subr.mxu0 0.0
        %1418 = vmatpush1.msra.mxu0 0.0
        %1419 = vmatprep.subr.mxu0 0.0
        %1420 = vmatpush1.msra.mxu0 0.0
        %1421 = vmatprep.subr.mxu0 0.0
        %1422 = vmatpush1.msra.mxu0 0.0
        %1423 = vmatprep.subr.mxu0 0.0
        %1424 = vmatpush1.msra.mxu0 0.0
        %1425 = vmatprep.subr.mxu0 0.0
        %1426 = vmatpush1.msra.mxu0 0.0
        %1427 = vmatprep.subr.mxu0 0.0
        %1428 = vmatpush1.msra.mxu0 0.0
        %1429 = vmatprep.subr.mxu0 0.0
        %1430 = vmatpush1.msra.mxu0 0.0
        %1431 = vmatprep.subr.mxu0 0.0
        %1432 = vmatpush1.msra.mxu0 0.0
        %1433 = vmatprep.subr.mxu0 0.0
        %1434 = vmatpush1.msra.mxu0 0.0
        %1435 = vmatprep.subr.mxu0 0.0
        %1436 = vmatpush1.msra.mxu0 0.0
        %1437 = vmatprep.subr.mxu0 0.0
        %1438 = vmatpush1.msra.mxu0 0.0
        %1439 = vmatprep.subr.mxu0 0.0
        %1440 = vmatpush1.msra.mxu0 0.0
        %1441 = vmatprep.subr.mxu0 0.0
        %1442 = vmatpush1.msra.mxu0 0.0
        %1443 = vmatprep.subr.mxu0 0.0
        %1444 = vmatpush1.msra.mxu0 0.0
        %1445 = vmatprep.subr.mxu0 0.0
        %1446 = vmatpush1.msra.mxu0 0.0
        %1447 = vmatprep.subr.mxu0 0.0
        %1448 = vmatpush1.msra.mxu0 0.0
        %1449 = vmatprep.subr.mxu0 0.0
        %1450 = vmatpush1.msra.mxu0 0.0
        %1451 = vmatprep.subr.mxu0 0.0
        %1452 = vmatpush1.msra.mxu0 0.0
        %1453 = vmatprep.subr.mxu0 0.0
        %1454 = vmatpush1.msra.mxu0 0.0
        %1455 = vmatprep.subr.mxu0 0.0
        %1456 = vmatpush1.msra.mxu0 0.0
        %1457 = vmatprep.subr.mxu0 0.0
        %1458 = vmatpush1.msra.mxu0 0.0
        %1459 = vmatprep.subr.mxu0 0.0
        %1460 = vmatpush1.msra.mxu0 0.0
        %1461 = vmatprep.subr.mxu0 0.0
        %1462 = vmatpush1.msra.mxu0 0.0
        %1463 = vmatprep.subr.mxu0 0.0
        %1464 = vmatpush1.msra.mxu0 0.0
        %1465 = vmatprep.subr.mxu0 0.0
        %1466 = vmatpush1.msra.mxu0 0.0
        %1467 = vmatprep.subr.mxu0 0.0
        %1468 = vmatpush1.msra.mxu0 0.0
        %1469 = vmatprep.subr.mxu0 0.0
        %1470 = vmatpush1.msra.mxu0 0.0
        %1471 = vmatprep.mubr.f32.mxu0 0.0
        %v1472 = vand.u32 %v621, 4294901760
        %1473 = vmatmul.mubr.f32.gmra.mrb[0].mxu0 %v1472
        %v1474 = vpop.f32.mrb[0].mxu0
        %v1475 = vadd.f32 %v1397, %v1474
        %v1476 = vpop.f32.mrb[0].mxu0
        %v1477 = vadd.f32 %v1399, %v1476
        %1478 = vdwg.mxu0
        %v1479 = vand.u32 %v617, 4294901760
        %1480 = vmatprep.subr.mxu0 %v1479
        %v1481 = vand.u32 %v616, 4294901760
        %1482 = vmatpush1.msra.mxu0 %v1481
        %1483 = vmatprep.subr.mxu0 0.0
        %1484 = vmatpush1.msra.mxu0 0.0
        %1485 = vmatprep.subr.mxu0 0.0
        %1486 = vmatpush1.msra.mxu0 0.0
        %1487 = vmatprep.subr.mxu0 0.0
        %1488 = vmatpush1.msra.mxu0 0.0
        %1489 = vmatprep.subr.mxu0 0.0
        %1490 = vmatpush1.msra.mxu0 0.0
        %1491 = vmatprep.subr.mxu0 0.0
        %1492 = vmatpush1.msra.mxu0 0.0
        %1493 = vmatprep.subr.mxu0 0.0
        %1494 = vmatpush1.msra.mxu0 0.0
        %1495 = vmatprep.subr.mxu0 0.0
        %1496 = vmatpush1.msra.mxu0 0.0
        %1497 = vmatprep.subr.mxu0 0.0
        %1498 = vmatpush1.msra.mxu0 0.0
        %1499 = vmatprep.subr.mxu0 0.0
        %1500 = vmatpush1.msra.mxu0 0.0
        %1501 = vmatprep.subr.mxu0 0.0
        %1502 = vmatpush1.msra.mxu0 0.0
        %1503 = vmatprep.subr.mxu0 0.0
        %1504 = vmatpush1.msra.mxu0 0.0
        %1505 = vmatprep.subr.mxu0 0.0
        %1506 = vmatpush1.msra.mxu0 0.0
        %1507 = vmatprep.subr.mxu0 0.0
        %1508 = vmatpush1.msra.mxu0 0.0
        %1509 = vmatprep.subr.mxu0 0.0
        %1510 = vmatpush1.msra.mxu0 0.0
        %1511 = vmatprep.subr.mxu0 0.0
        %1512 = vmatpush1.msra.mxu0 0.0
        %1513 = vmatprep.subr.mxu0 0.0
        %1514 = vmatpush1.msra.mxu0 0.0
        %1515 = vmatprep.subr.mxu0 0.0
        %1516 = vmatpush1.msra.mxu0 0.0
        %1517 = vmatprep.subr.mxu0 0.0
        %1518 = vmatpush1.msra.mxu0 0.0
        %1519 = vmatprep.subr.mxu0 0.0
        %1520 = vmatpush1.msra.mxu0 0.0
        %1521 = vmatprep.subr.mxu0 0.0
        %1522 = vmatpush1.msra.mxu0 0.0
        %1523 = vmatprep.subr.mxu0 0.0
        %1524 = vmatpush1.msra.mxu0 0.0
        %1525 = vmatprep.subr.mxu0 0.0
        %1526 = vmatpush1.msra.mxu0 0.0
        %1527 = vmatprep.subr.mxu0 0.0
        %1528 = vmatpush1.msra.mxu0 0.0
        %1529 = vmatprep.subr.mxu0 0.0
        %1530 = vmatpush1.msra.mxu0 0.0
        %1531 = vmatprep.subr.mxu0 0.0
        %1532 = vmatpush1.msra.mxu0 0.0
        %1533 = vmatprep.subr.mxu0 0.0
        %1534 = vmatpush1.msra.mxu0 0.0
        %1535 = vmatprep.subr.mxu0 0.0
        %1536 = vmatpush1.msra.mxu0 0.0
        %1537 = vmatprep.subr.mxu0 0.0
        %1538 = vmatpush1.msra.mxu0 0.0
        %1539 = vmatprep.subr.mxu0 0.0
        %1540 = vmatpush1.msra.mxu0 0.0
        %1541 = vmatprep.subr.mxu0 0.0
        %1542 = vmatpush1.msra.mxu0 0.0
        %1543 = vmatprep.subr.mxu0 0.0
        %1544 = vmatpush1.msra.mxu0 0.0
        %1545 = vmatprep.mubr.f32.mxu0 0.0
        %v1546 = vand.u32 %v621, 4294901760
        %1547 = vmatmul.mubr.f32.gmra.mrb[0].mxu0 %v1546
        %v1548 = vpop.f32.mrb[0].mxu0
        %v1549 = vadd.f32 %v1475, %v1548
        %v1550 = vpop.f32.mrb[0].mxu0
        %v1551 = vadd.f32 %v1477, %v1550
        %1552 = vdwg.mxu0
        %v1553 = vmul.f32 %v614, %v1084
        %v1554 = vmul.f32 %v615, %v1086
        %v1555 = vmul.f32 %v616, %v1549
        %v1556 = vmul.f32 %v617, %v1551
        %v1557 = vrot.slane %v1553, 4
        %v1558 = vadd.f32 %v1553, %v1557
        %v1559 = vrot.slane %v1558, 2
        %v1560 = vadd.f32 %v1558, %v1559
        %v1561 = vrot.slane %v1560, 1
        %v1562 = vadd.f32 %v1560, %v1561
        %v1563 = vrot.slane %v1554, 4
        %v1564 = vadd.f32 %v1554, %v1563
        %v1565 = vrot.slane %v1564, 2
        %v1566 = vadd.f32 %v1564, %v1565
        %v1567 = vrot.slane %v1566, 1
        %v1568 = vadd.f32 %v1566, %v1567
        %v1569 = vrot.slane %v1555, 4
        %v1570 = vadd.f32 %v1555, %v1569
        %v1571 = vrot.slane %v1570, 2
        %v1572 = vadd.f32 %v1570, %v1571
        %v1573 = vrot.slane %v1572, 1
        %v1574 = vadd.f32 %v1572, %v1573
        %v1575 = vrot.slane %v1556, 4
        %v1576 = vadd.f32 %v1556, %v1575
        %v1577 = vrot.slane %v1576, 2
        %v1578 = vadd.f32 %v1576, %v1577
        %v1579 = vrot.slane %v1578, 1
        %v1580 = vadd.f32 %v1578, %v1579
        %v1581 = vmul.f32 %v598, %v591
        %v1582 = vmul.f32 %v599, %v593
        %v1583 = vmul.f32 %v600, %v595
        %v1584 = vmul.f32 %v601, %v597
        %v1585 = vmul.f32 %v528, %v1581
        %v1586 = vmul.f32 %v529, %v1582
        %v1587 = vmul.f32 %v530, %v1583
        %v1588 = vmul.f32 %v531, %v1584
        %v1589 = vmul.f32 %v260, %v614
        %v1590 = vmul.f32 %v261, %v615
        %v1591 = vmul.f32 %v262, %v616
        %v1592 = vmul.f32 %v263, %v617
        %1593 = vset.pattern.permute.xlu0 3
        %1594 = vperm.xlu0 %1593, %v504
        %v1595 = vpop.permute.xlu0 %1594
        %v1597 = vmul.f32 %v1595, %v1589
        %v1598 = vmul.f32 %v1595, %v1590
        %v1599 = vmul.f32 %v1595, %v1591
        %v1600 = vmul.f32 %v1595, %v1592
        %v1601 = vsub.f32 %v1585, %v1597
        %v1602 = vsub.f32 %v1586, %v1598
        %v1603 = vsub.f32 %v1587, %v1599
        %v1604 = vsub.f32 %v1588, %v1600
        %v1605 = vmul.f32 %v602, %v591
        %v1606 = vmul.f32 %v603, %v593
        %v1607 = vmul.f32 %v604, %v595
        %v1608 = vmul.f32 %v605, %v597
        %v1609 = vmul.f32 %v552, %v1605
        %v1610 = vmul.f32 %v553, %v1606
        %v1611 = vmul.f32 %v554, %v1607
        %v1612 = vmul.f32 %v555, %v1608
        %v1613 = vmul.f32 %v304, %v614
        %v1614 = vmul.f32 %v305, %v615
        %v1615 = vmul.f32 %v306, %v616
        %v1616 = vmul.f32 %v307, %v617
        %v1617 = vmul.f32 %v1595, %v1613
        %v1618 = vmul.f32 %v1595, %v1614
        %v1619 = vmul.f32 %v1595, %v1615
        %v1620 = vmul.f32 %v1595, %v1616
        %v1621 = vsub.f32 %v1609, %v1617
        %v1622 = vsub.f32 %v1610, %v1618
        %v1623 = vsub.f32 %v1611, %v1619
        %v1624 = vsub.f32 %v1612, %v1620
        %v1625 = vmul.f32 %v606, %v591
        %v1626 = vmul.f32 %v607, %v593
        %v1627 = vmul.f32 %v608, %v595
        %v1628 = vmul.f32 %v609, %v597
        %v1629 = vmul.f32 %v576, %v1625
        %v1630 = vmul.f32 %v577, %v1626
        %v1631 = vmul.f32 %v578, %v1627
        %v1632 = vmul.f32 %v579, %v1628
        %v1633 = vmul.f32 %v348, %v614
        %v1634 = vmul.f32 %v349, %v615
        %v1635 = vmul.f32 %v350, %v616
        %v1636 = vmul.f32 %v351, %v617
        %v1637 = vmul.f32 %v1595, %v1633
        %v1638 = vmul.f32 %v1595, %v1634
        %v1639 = vmul.f32 %v1595, %v1635
        %v1640 = vmul.f32 %v1595, %v1636
        %v1641 = vsub.f32 %v1629, %v1637
        %v1642 = vsub.f32 %v1630, %v1638
        %v1643 = vsub.f32 %v1631, %v1639
        %v1644 = vsub.f32 %v1632, %v1640
        %v1645 = vmul.f32 %v1084, %v1601
        %v1646 = vmul.f32 %v1086, %v1602
        %v1647 = vmul.f32 %v1549, %v1603
        %v1648 = vmul.f32 %v1551, %v1604
        %v1649 = vrot.slane %v1645, 4
        %v1650 = vadd.f32 %v1645, %v1649
        %v1651 = vrot.slane %v1650, 2
        %v1652 = vadd.f32 %v1650, %v1651
        %v1653 = vrot.slane %v1652, 1
        %v1654 = vadd.f32 %v1652, %v1653
        %v1655 = vrot.slane %v1646, 4
        %v1656 = vadd.f32 %v1646, %v1655
        %v1657 = vrot.slane %v1656, 2
        %v1658 = vadd.f32 %v1656, %v1657
        %v1659 = vrot.slane %v1658, 1
        %v1660 = vadd.f32 %v1658, %v1659
        %v1661 = vrot.slane %v1647, 4
        %v1662 = vadd.f32 %v1647, %v1661
        %v1663 = vrot.slane %v1662, 2
        %v1664 = vadd.f32 %v1662, %v1663
        %v1665 = vrot.slane %v1664, 1
        %v1666 = vadd.f32 %v1664, %v1665
        %v1667 = vrot.slane %v1648, 4
        %v1668 = vadd.f32 %v1648, %v1667
        %v1669 = vrot.slane %v1668, 2
        %v1670 = vadd.f32 %v1668, %v1669
        %v1671 = vrot.slane %v1670, 1
        %v1672 = vadd.f32 %v1670, %v1671
        %v1673 = vmul.f32 %v1084, %v1621
        %v1674 = vmul.f32 %v1086, %v1622
        %v1675 = vmul.f32 %v1549, %v1623
        %v1676 = vmul.f32 %v1551, %v1624
        %v1677 = vrot.slane %v1673, 4
        %v1678 = vadd.f32 %v1673, %v1677
        %v1679 = vrot.slane %v1678, 2
        %v1680 = vadd.f32 %v1678, %v1679
        %v1681 = vrot.slane %v1680, 1
        %v1682 = vadd.f32 %v1680, %v1681
        %v1683 = vrot.slane %v1674, 4
        %v1684 = vadd.f32 %v1674, %v1683
        %v1685 = vrot.slane %v1684, 2
        %v1686 = vadd.f32 %v1684, %v1685
        %v1687 = vrot.slane %v1686, 1
        %v1688 = vadd.f32 %v1686, %v1687
        %v1689 = vrot.slane %v1675, 4
        %v1690 = vadd.f32 %v1675, %v1689
        %v1691 = vrot.slane %v1690, 2
        %v1692 = vadd.f32 %v1690, %v1691
        %v1693 = vrot.slane %v1692, 1
        %v1694 = vadd.f32 %v1692, %v1693
        %v1695 = vrot.slane %v1676, 4
        %v1696 = vadd.f32 %v1676, %v1695
        %v1697 = vrot.slane %v1696, 2
        %v1698 = vadd.f32 %v1696, %v1697
        %v1699 = vrot.slane %v1698, 1
        %v1700 = vadd.f32 %v1698, %v1699
        %v1701 = vmul.f32 %v1084, %v1641
        %v1702 = vmul.f32 %v1086, %v1642
        %v1703 = vmul.f32 %v1549, %v1643
        %v1704 = vmul.f32 %v1551, %v1644
        %v1705 = vrot.slane %v1701, 4
        %v1706 = vadd.f32 %v1701, %v1705
        %v1707 = vrot.slane %v1706, 2
        %v1708 = vadd.f32 %v1706, %v1707
        %v1709 = vrot.slane %v1708, 1
        %v1710 = vadd.f32 %v1708, %v1709
        %v1711 = vrot.slane %v1702, 4
        %v1712 = vadd.f32 %v1702, %v1711
        %v1713 = vrot.slane %v1712, 2
        %v1714 = vadd.f32 %v1712, %v1713
        %v1715 = vrot.slane %v1714, 1
        %v1716 = vadd.f32 %v1714, %v1715
        %v1717 = vrot.slane %v1703, 4
        %v1718 = vadd.f32 %v1703, %v1717
        %v1719 = vrot.slane %v1718, 2
        %v1720 = vadd.f32 %v1718, %v1719
        %v1721 = vrot.slane %v1720, 1
        %v1722 = vadd.f32 %v1720, %v1721
        %v1723 = vrot.slane %v1704, 4
        %v1724 = vadd.f32 %v1704, %v1723
        %v1725 = vrot.slane %v1724, 2
        %v1726 = vadd.f32 %v1724, %v1725
        %v1727 = vrot.slane %v1726, 1
        %v1728 = vadd.f32 %v1726, %v1727
        %v1729 = vmul.f32 %v1654, %v1654
        %v1730 = vmul.f32 %v1660, %v1660
        %v1731 = vmul.f32 %v1666, %v1666
        %v1732 = vmul.f32 %v1672, %v1672
        %v1733 = vmul.f32 %v1682, %v1682
        %v1734 = vmul.f32 %v1688, %v1688
        %v1735 = vmul.f32 %v1694, %v1694
        %v1736 = vmul.f32 %v1700, %v1700
        %v1737 = vadd.f32 %v1729, %v1733
        %v1738 = vadd.f32 %v1730, %v1734
        %v1739 = vadd.f32 %v1731, %v1735
        %v1740 = vadd.f32 %v1732, %v1736
        %v1741 = vmul.f32 %v1710, %v1710
        %v1742 = vmul.f32 %v1716, %v1716
        %v1743 = vmul.f32 %v1722, %v1722
        %v1744 = vmul.f32 %v1728, %v1728
        %v1745 = vadd.f32 %v1737, %v1741
        %v1746 = vadd.f32 %v1738, %v1742
        %v1747 = vadd.f32 %v1739, %v1743
        %v1748 = vadd.f32 %v1740, %v1744
        %v1749 = vrsqrt.pop %v1745
        %v1750 = vmul.f32 %v1745, %v1749
        %vm1751 = vcmp.eq.f32.partialorder %v1745, inf
        %v1752 = vsel %vm1751, %v1745, %v1750
        %vm1753 = vcmp.eq.f32.partialorder %v1745, 0.0
        %v1754 = vand.u32 %v1745, 2147483648
        %v1755 = vsel %vm1753, %v1754, %v1752
        %v1756 = vrsqrt.pop %v1746
        %v1757 = vmul.f32 %v1746, %v1756
        %vm1758 = vcmp.eq.f32.partialorder %v1746, inf
        %v1759 = vsel %vm1758, %v1746, %v1757
        %vm1760 = vcmp.eq.f32.partialorder %v1746, 0.0
        %v1761 = vand.u32 %v1746, 2147483648
        %v1762 = vsel %vm1760, %v1761, %v1759
        %v1763 = vrsqrt.pop %v1747
        %v1764 = vmul.f32 %v1747, %v1763
        %vm1765 = vcmp.eq.f32.partialorder %v1747, inf
        %v1766 = vsel %vm1765, %v1747, %v1764
        %vm1767 = vcmp.eq.f32.partialorder %v1747, 0.0
        %v1768 = vand.u32 %v1747, 2147483648
        %v1769 = vsel %vm1767, %v1768, %v1766
        %v1770 = vrsqrt.pop %v1748
        %v1771 = vmul.f32 %v1748, %v1770
        %vm1772 = vcmp.eq.f32.partialorder %v1748, inf
        %v1773 = vsel %vm1772, %v1748, %v1771
        %vm1774 = vcmp.eq.f32.partialorder %v1748, 0.0
        %v1775 = vand.u32 %v1748, 2147483648
        %v1776 = vsel %vm1774, %v1775, %v1773
        %v1777 = vmul.f32 %v1755, 2.0
        %v1778 = vmul.f32 %v1762, 2.0
        %v1779 = vmul.f32 %v1769, 2.0
        %v1780 = vmul.f32 %v1776, 2.0
        %v1785 = vcombine.low %v1562, %v1568
        %v1786 = vcombine.low %v1574, %v1580
        %v1788 = vunpack.c.l.s4 1966171168
        %v1789 = vunpack.c.0.s8 %v1788
        %v1790 = vlaneseq
        %v1791 = vshrl.u32 %v1790, 7
        %v1792 = vsub.s32 %v1789, %v1791
        %v1793 = vrot.slane %v1785, %v1792
        %v1795 = vunpack.c.l.s4 1966171168
        %v1796 = vunpack.c.0.s8 %v1795
        %v1797 = vlaneseq
        %v1798 = vshrl.u32 %v1797, 7
        %v1799 = vsub.s32 %v1796, %v1798
        %v1800 = vrot.slane %v1786, %v1799
        %v1801 = vcombine.low %v1793, %v1800
        %v1803 = vunpack.c.l.s4 1966171168
        %v1804 = vunpack.c.0.s8 %v1803
        %v1805 = vlaneseq
        %v1806 = vshrl.u32 %v1805, 7
        %v1807 = vsub.s32 %v1804, %v1806
        %v1808 = vrot.slane %v1801, %v1807
        %v1810 = vlaneseq
        %vm1811 = vcmp.ge.s32.totalorder %v1810, 0
        %vm1812 = vcmp.lt.s32.totalorder %v1810, 512
        %vm1813 = vmand %vm1811, %vm1812
        %1814 = vst.msk [vmem:[%s211] ss:$2 sm:$0xf] %vm1813, %v1808
        %v1819 = vcombine.low %v1777, %v1778
        %v1820 = vcombine.low %v1779, %v1780
        %v1822 = vunpack.c.l.s4 1966171168
        %v1823 = vunpack.c.0.s8 %v1822
        %v1824 = vlaneseq
        %v1825 = vshrl.u32 %v1824, 7
        %v1826 = vsub.s32 %v1823, %v1825
        %v1827 = vrot.slane %v1819, %v1826
        %v1829 = vunpack.c.l.s4 1966171168
        %v1830 = vunpack.c.0.s8 %v1829
        %v1831 = vlaneseq
        %v1832 = vshrl.u32 %v1831, 7
        %v1833 = vsub.s32 %v1830, %v1832
        %v1834 = vrot.slane %v1820, %v1833
        %v1835 = vcombine.low %v1827, %v1834
        %v1837 = vunpack.c.l.s4 1966171168
        %v1838 = vunpack.c.0.s8 %v1837
        %v1839 = vlaneseq
        %v1840 = vshrl.u32 %v1839, 7
        %v1841 = vsub.s32 %v1838, %v1840
        %v1842 = vrot.slane %v1835, %v1841
        %s1844 = scalar_lea.vmem %s211, 1 [#allocation8]
        %1845 = vst.msk [vmem:[%s1844] ss:$2 sm:$0xf] %vm1813, %v1842
        %s1846 = sand.u32 %s97, 1
        %s1847 = scalar_lea.sflag [#allocation4], %s1846
        %s1848 = sand.u32 %s97, 1
        %s1849 = smul.addr %s1848, 8
        %s1850 = scalar_lea.vmem [#allocation8], %s1849
        // Predicated region
        $region45: #{tpu_custom_call.1} parent=31 // pred_check
          %p1851 = pneg %p107
        $region46: #{tpu_custom_call.1} parent=31 // pred_check_branch
          %1853 = sbr.rel (%p1851) target = $region48
        $region47: #{tpu_custom_call.1} parent=31 // pred_region
          %s1854 = smul.u32 4, %s21
          %s1856 = ssub.s32 128, 128
          %1857 = vsyncadd %s1847, %s1856
          %s1858 = smul.addr %s1854, 32
          %s1859 = scalar_lea.hbm %s3, %s1858
          %s1861 = sshll.u32 %s1850, 4
          %s1862 = int_to_ptr.vmem [resolvable:$true] %s1861
          %1864 = dma.vmem_to_hbm [thread:$0]  %s1862, 128, %s1859, %s1847
        $region48: #{tpu_custom_call.1} parent=31 // pred_fallthru
          _
      $region32: #{tpu_custom_call.1} parent=5 // pred_fallthru
        _
      %p1865 = scmp.le.s32.totalorder 2, %s16
      // Predicated region
      $region49: #{tpu_custom_call.1} parent=5 // pred_check
        %p1866 = pneg %p1865
      $region50: #{tpu_custom_call.1} parent=5 // pred_check_branch
        %1868 = sbr.rel (%p1866) target = $region52
      $region51: #{tpu_custom_call.1} parent=5 // pred_region
        %s1869 = ssub.s32 %s16, 2
        // Predicated region
        $region53: #{tpu_custom_call.1} parent=51 // pred_check
          %p1870 = pneg %p113
        $region54: #{tpu_custom_call.1} parent=51 // pred_check_branch
          %1872 = sbr.rel (%p1870) target = $region56
        $region55: #{tpu_custom_call.1} parent=51 // pred_region
          %s1873 = sand.u32 %s98, 1
          %s1874 = scalar_lea.sflag [#allocation4], %s1873
          %s1875 = sand.u32 %s98, 1
          %s1876 = smul.addr %s1875, 8
          %s1877 = scalar_lea.vmem [#allocation8], %s1876
          %1878 = dma.done %s1874, 128
        $region56: #{tpu_custom_call.1} parent=51 // pred_fallthru
          _
      $region52: #{tpu_custom_call.1} parent=5 // pred_fallthru
        _
    $region6: #{tpu_custom_call.1} parent=1 // loop_footer
      %s20 = sadd.s32 1, %s16
    $region7: #{tpu_custom_call.1} parent=1 // loop_footer_branch
      %15 = sbr.rel target = $region3
    $region8: #{tpu_custom_call.1} parent=1 // loop_exit
      _
    %1879 = vsyncpa [#allocation3], 1
    %s1880 = scalar_lea.sflag [#allocation3], 1
    %1881 = vsyncpa %s1880, 1
    %1882 = vsyncpa [#allocation6], 1
    %1883 = vsyncpa [#allocation4], 1
    %s1884 = scalar_lea.sflag [#allocation4], 1
    %1885 = vsyncpa %s1884, 1

// kernel: tpu_custom_call.1
$region0: #{tpu_custom_call.1}
  #allocation0 [shape = 'u32[]', space=smem, size = 0x4, offset = 0x4, fixed_abs, tag = 'smem constant byte address 0x4 - core index']
  #allocation1 [shape = 'u32[144,128]{1,0:T(1,128)}', space=vmem, size = 0x12000, scoped, tag = 'internal scratch']
  %s0 = inlined_call_operand.hbm [shape: f32[3,1024], index: 0, kind: input, shape index: {}]
  %s1 = inlined_call_operand.hbm [shape: f32[8,16], index: 1, kind: input, shape index: {}]
  %s2 = inlined_call_operand.hbm [shape: f32[8,8], index: 2, kind: input, shape index: {}]
  %s3 = inlined_call_operand.hbm [shape: f32[2,1024], index: 3, kind: output, shape index: {}]
  %s4 = sld [smem:[#allocation0]]
  $region57: #{tpu_custom_call.1} parent=0
    _
  %s6 = ssub.s32 1, %s4
  %s7 = scalar_select 0, %s6, %s4
  $region1: #{tpu_custom_call.1} parent=0
    #allocation2 [shape = 'u8[16384]{0}', space=vmem, size = 0x4000, scoped, tag = 'input window, operand 0']
    #allocation3 [shape = 's32[2]{0}', space=sflag, size = 0x8, scoped, tag = 'scoped memory for tpu_custom_call.1']
    #allocation4 [shape = 's32[2]{0}', space=sflag, size = 0x8, scoped, tag = 'scoped memory for tpu_custom_call.1']
    #allocation5 [shape = 'u8[4096]{0}', space=vmem, size = 0x1000, scoped, tag = 'input window, operand 1, single buffered']
    #allocation6 [shape = 's32[1]{0}', space=sflag, size = 0x4, scoped, tag = 'scoped memory for tpu_custom_call.1']
    #allocation7 [shape = 'u8[4096]{0}', space=vmem, size = 0x1000, scoped, tag = 'input window, operand 2, single buffered']
    #allocation8 [shape = 'u8[8192]{0}', space=vmem, size = 0x2000, scoped, tag = 'output window, operand 0']
    %8 = vsyncpa [#allocation3], 0
    %s9 = scalar_lea.sflag [#allocation3], 1
    %10 = vsyncpa %s9, 0
    %11 = vsyncpa [#allocation6], 0
    %12 = vsyncpa [#allocation4], 0
    %s13 = scalar_lea.sflag [#allocation4], 1
    %14 = vsyncpa %s13, 0
    loop: start=0, step=1, limit=4
    $region2: #{tpu_custom_call.1} parent=1 // loop_pre_header
      _
    $region3: #{tpu_custom_call.1} parent=1 // loop_header
      %s16 = sphi 0, %s20
      %p17 = scmp.ge.s32.totalorder %s16, 4
      %s26 = sphi 0, %s28
      %s29 = sphi 0, %s26
      %s30 = sphi 0, %s29
      %s46 = sphi 0, %s30
      %s50 = sphi 0, %s50
      %s52 = sphi 0, %s50
      %s53 = sphi 0, %s52
      %s67 = sphi 0, %s53
      %s71 = sphi 0, %s71
      %s73 = sphi 0, %s71
      %s74 = sphi 0, %s73
      %s88 = sphi 0, %s74
      %s94 = sphi 0, %s96
      %s97 = sphi 0, %s94
      %s98 = sphi 0, %s97
      %s114 = sphi 0, %s98
    $region4: #{tpu_custom_call.1} parent=1 // loop_header_branch
      %19 = sbr.rel (%p17) target = $region8
    $region5: #{tpu_custom_call.1} parent=1 // loop_body
      %s21 = ssub.s32 %s16, 1
      %s22 = ssub.s32 %s16, 2
      %s23 = sadd.s32 %s16, 1
      %s24 = ssub.s32 %s16, %s23
      %p25 = scmp.eq.s32.totalorder %s24, 0
      %s27 = sadd.s32 %s26, 1
      %s28 = scalar_select %p25, %s26, %s27
      %p31 = pneg %p25
      %p32 = scmp.eq.s32.totalorder %s16, 1
      %p33 = por %p31, %p32
      %p34 = scmp.ne.s32.totalorder %s26, %s29
      %p35 = scmp.eq.s32.totalorder %s16, 0
      %p36 = por %p34, %p35
      %p37 = scmp.ne.s32.totalorder %s26, %s29
      %p38 = scmp.eq.s32.totalorder %s21, 1
      %p39 = por %p37, %p38
      %p40 = scmp.ne.s32.totalorder %s29, %s30
      %p41 = scmp.eq.s32.totalorder %s21, 0
      %p42 = por %p40, %p41
      %p43 = scmp.ne.s32.totalorder %s29, %s30
      %p44 = scmp.eq.s32.totalorder %s22, 1
      %p45 = por %p43, %p44
      %p47 = scmp.ne.s32.totalorder %s30, %s46
      %p48 = scmp.eq.s32.totalorder %s22, 0
      %p49 = por %p47, %p48
      %s51 = sadd.s32 %s50, 1
      %p54 = scmp.eq.s32.totalorder %s16, 1
      %p55 = scmp.ne.s32.totalorder %s50, %s52
      %p56 = scmp.eq.s32.totalorder %s16, 0
      %p57 = por %p55, %p56
      %p58 = scmp.ne.s32.totalorder %s50, %s52
      %p59 = scmp.eq.s32.totalorder %s21, 1
      %p60 = por %p58, %p59
      %p61 = scmp.ne.s32.totalorder %s52, %s53
      %p62 = scmp.eq.s32.totalorder %s21, 0
      %p63 = por %p61, %p62
      %p64 = scmp.ne.s32.totalorder %s52, %s53
      %p65 = scmp.eq.s32.totalorder %s22, 1
      %p66 = por %p64, %p65
      %p68 = scmp.ne.s32.totalorder %s53, %s67
      %p69 = scmp.eq.s32.totalorder %s22, 0
      %p70 = por %p68, %p69
      %s72 = sadd.s32 %s71, 1
      %p75 = scmp.eq.s32.totalorder %s16, 1
      %p76 = scmp.ne.s32.totalorder %s71, %s73
      %p77 = scmp.eq.s32.totalorder %s16, 0
      %p78 = por %p76, %p77
      %p79 = scmp.ne.s32.totalorder %s71, %s73
      %p80 = scmp.eq.s32.totalorder %s21, 1
      %p81 = por %p79, %p80
      %p82 = scmp.ne.s32.totalorder %s73, %s74
      %p83 = scmp.eq.s32.totalorder %s21, 0
      %p84 = por %p82, %p83
      %p85 = scmp.ne.s32.totalorder %s73, %s74
      %p86 = scmp.eq.s32.totalorder %s22, 1
      %p87 = por %p85, %p86
      %p89 = scmp.ne.s32.totalorder %s74, %s88
      %p90 = scmp.eq.s32.totalorder %s22, 0
      %p91 = por %p89, %p90
      %s92 = ssub.s32 %s16, %s23
      %p93 = scmp.eq.s32.totalorder %s92, 0
      %s95 = sadd.s32 %s94, 1
      %s96 = scalar_select %p93, %s94, %s95
      %p99 = pneg %p93
      %p100 = scmp.eq.s32.totalorder %s16, 1
      %p101 = por %p99, %p100
      %p102 = scmp.ne.s32.totalorder %s94, %s97
      %p103 = scmp.eq.s32.totalorder %s16, 0
      %p104 = por %p102, %p103
      %p105 = scmp.ne.s32.totalorder %s94, %s97
      %p106 = scmp.eq.s32.totalorder %s21, 1
      %p107 = por %p105, %p106
      %p108 = scmp.ne.s32.totalorder %s97, %s98
      %p109 = scmp.eq.s32.totalorder %s21, 0
      %p110 = por %p108, %p109
      %p111 = scmp.ne.s32.totalorder %s97, %s98
      %p112 = scmp.eq.s32.totalorder %s22, 1
      %p113 = por %p111, %p112
      %p115 = scmp.ne.s32.totalorder %s98, %s114
      %p116 = scmp.eq.s32.totalorder %s22, 0
      %p117 = por %p115, %p116
      %p118 = scmp.le.s32.totalorder 1, %s16
      %p119 = scmp.lt.s32.totalorder %s16, 3
      %p120 = pnand %p118, %p119
      %p121 = pneg %p120
      // Predicated region
      $region9: #{tpu_custom_call.1} parent=5 // pred_check
        _
      $region10: #{tpu_custom_call.1} parent=5 // pred_check_branch
        %123 = sbr.rel (%p120) target = $region12
      $region11: #{tpu_custom_call.1} parent=5 // pred_region
        %s124 = ssub.s32 %s16, 1
        // Predicated region
        $region13: #{tpu_custom_call.1} parent=11 // pred_check
          %p125 = pneg %p63
        $region14: #{tpu_custom_call.1} parent=11 // pred_check_branch
          %127 = sbr.rel (%p125) target = $region16
        $region15: #{tpu_custom_call.1} parent=11 // pred_region
          %s129 = ssub.s32 128, 128
          %130 = vsyncadd [#allocation6], %s129
          %s132 = sshll.u32 [#allocation5], 4
          %s133 = int_to_ptr.vmem [resolvable:$true] %s132
          %135 = dma.hbm_to_vmem [thread:$0]  %s1, 128, %s133, [#allocation6]
        $region16: #{tpu_custom_call.1} parent=11 // pred_fallthru
          _
        // Predicated region
        $region17: #{tpu_custom_call.1} parent=11 // pred_check
          %p136 = pneg %p84
        $region18: #{tpu_custom_call.1} parent=11 // pred_check_branch
          %138 = sbr.rel (%p136) target = $region20
        $region19: #{tpu_custom_call.1} parent=11 // pred_region
          %s140 = ssub.s32 128, 128
          %141 = vsyncadd [#allocation6], %s140
          %s143 = sshll.u32 [#allocation7], 4
          %s144 = int_to_ptr.vmem [resolvable:$true] %s143
          %146 = dma.hbm_to_vmem [thread:$0]  %s2, 128, %s144, [#allocation6]
        $region20: #{tpu_custom_call.1} parent=11 // pred_fallthru
          _
      $region12: #{tpu_custom_call.1} parent=5 // pred_fallthru
        _
      %p147 = scmp.lt.s32.totalorder %s16, 2
      // Predicated region
      $region21: #{tpu_custom_call.1} parent=5 // pred_check
        %p148 = pneg %p147
      $region22: #{tpu_custom_call.1} parent=5 // pred_check_branch
        %150 = sbr.rel (%p148) target = $region24
      $region23: #{tpu_custom_call.1} parent=5 // pred_region
        // Predicated region
        $region25: #{tpu_custom_call.1} parent=23 // pred_check
          %p151 = pneg %p36
        $region26: #{tpu_custom_call.1} parent=23 // pred_check_branch
          %153 = sbr.rel (%p151) target = $region28
        $region27: #{tpu_custom_call.1} parent=23 // pred_region
          %s154 = sand.u32 %s26, 1
          %s155 = scalar_lea.sflag [#allocation3], %s154
          %s156 = sand.u32 %s26, 1
          %s157 = smul.addr %s156, 16
          %s158 = scalar_lea.vmem [#allocation2], %s157
          %s159 = smul.u32 4, %s16
          %s161 = ssub.s32 256, 256
          %162 = vsyncadd %s155, %s161
          %s163 = smul.addr %s159, 64
          %s164 = scalar_lea.hbm %s0, %s163
          %s166 = sshll.u32 %s158, 4
          %s167 = int_to_ptr.vmem [resolvable:$true] %s166
          %169 = dma.hbm_to_vmem [thread:$0]  %s164, 256, %s167, %s155
        $region28: #{tpu_custom_call.1} parent=23 // pred_fallthru
          _
      $region24: #{tpu_custom_call.1} parent=5 // pred_fallthru
        _
      %p170 = scmp.le.s32.totalorder 1, %s16
      %p171 = scmp.lt.s32.totalorder %s16, 3
      %p172 = pnand %p170, %p171
      %p173 = pneg %p172
      // Predicated region
      $region29: #{tpu_custom_call.1} parent=5 // pred_check
        _
      $region30: #{tpu_custom_call.1} parent=5 // pred_check_branch
        %175 = sbr.rel (%p172) target = $region32
      $region31: #{tpu_custom_call.1} parent=5 // pred_region
        %s176 = ssub.s32 %s16, 1
        %s177 = sand.u32 %s29, 1
        %s178 = scalar_lea.sflag [#allocation3], %s177
        %s179 = sand.u32 %s29, 1
        %s180 = smul.addr %s179, 16
        %s181 = scalar_lea.vmem [#allocation2], %s180
        // Predicated region
        $region33: #{tpu_custom_call.1} parent=31 // pred_check
          %p182 = pneg %p42
        $region34: #{tpu_custom_call.1} parent=31 // pred_check_branch
          %184 = sbr.rel (%p182) target = $region36
        $region35: #{tpu_custom_call.1} parent=31 // pred_region
          %185 = dma.done %s178, 256
        $region36: #{tpu_custom_call.1} parent=31 // pred_fallthru
          _
        // Predicated region
        $region37: #{tpu_custom_call.1} parent=31 // pred_check
          %p186 = pneg %p63
        $region38: #{tpu_custom_call.1} parent=31 // pred_check_branch
          %188 = sbr.rel (%p186) target = $region40
        $region39: #{tpu_custom_call.1} parent=31 // pred_region
          %189 = dma.done [#allocation6], 128
        $region40: #{tpu_custom_call.1} parent=31 // pred_fallthru
          _
        // Predicated region
        $region41: #{tpu_custom_call.1} parent=31 // pred_check
          %p190 = pneg %p84
        $region42: #{tpu_custom_call.1} parent=31 // pred_check_branch
          %192 = sbr.rel (%p190) target = $region44
        $region43: #{tpu_custom_call.1} parent=31 // pred_region
          %193 = dma.done [#allocation6], 128
        $region44: #{tpu_custom_call.1} parent=31 // pred_fallthru
          _
        %s194 = sand.u32 %s29, 1
        %s195 = scalar_lea.sflag [#allocation3], %s194
        %s196 = sand.u32 %s29, 1
        %s197 = smul.addr %s196, 16
        %s198 = scalar_lea.vmem [#allocation2], %s197
        %p199 = pneg %p42
        %p200 = pneg %p39
        %p201 = pneg %p63
        %p202 = pneg %p60
        %p203 = pneg %p84
        %p204 = pneg %p81
        %p205 = pneg %p110
        %p206 = pneg %p107
        %s207 = sand.u32 %s97, 1
        %s208 = scalar_lea.sflag [#allocation4], %s207
        %s209 = sand.u32 %s97, 1
        %s210 = smul.addr %s209, 8
        %s211 = scalar_lea.vmem [#allocation8], %s210
        %s212 = smul.u32 4, %s21
        %s213 = smul.u32 4, %s21
        %v214 = vld [vmem:[%s181] sm:$0x77]
        %v215 = vld [vmem:[%s181 + $0x8] sm:$0x77]
        %v216 = vld [vmem:[#allocation5] sm:$0xff]
        %v219 = vlaneseq
        %v220 = vshrl.u32 %v219, 7
        %v221 = vsub.s32 0, %v220
        %v222 = vrot.slane %v214, %v221
        %v223 = vlaneseq
        %v224 = vshrl.u32 %v223, 7
        %v225 = vsub.s32 4, %v224
        %v226 = vrot.slane %v214, %v225
        %v227 = vlaneseq
        %v228 = vshrl.u32 %v227, 7
        %v229 = vsub.s32 0, %v228
        %v230 = vrot.slane %v215, %v229
        %v231 = vlaneseq
        %v232 = vshrl.u32 %v231, 7
        %v233 = vsub.s32 4, %v232
        %v234 = vrot.slane %v215, %v233
        %v239 = vlaneseq
        %v240 = vshrl.u32 %v239, 7
        %v241 = vsub.s32 0, %v240
        %v242 = vrot.slane %v222, %v241
        %v243 = vlaneseq
        %v244 = vshrl.u32 %v243, 7
        %v245 = vsub.s32 0, %v244
        %v246 = vrot.slane %v226, %v245
        %v247 = vlaneseq
        %v248 = vshrl.u32 %v247, 7
        %v249 = vsub.s32 0, %v248
        %v250 = vrot.slane %v230, %v249
        %v251 = vlaneseq
        %v252 = vshrl.u32 %v251, 7
        %v253 = vsub.s32 0, %v252
        %v254 = vrot.slane %v234, %v253
        %256 = vset.pattern.permute.xlu0 0
        %257 = vperm.xlu0 %256, %v216
        %v258 = vpop.permute.xlu0 %257
        %v260 = vsub.f32 %v242, %v258
        %v261 = vsub.f32 %v246, %v258
        %v262 = vsub.f32 %v250, %v258
        %v263 = vsub.f32 %v254, %v258
        %v264 = vlaneseq
        %v265 = vshrl.u32 %v264, 7
        %v266 = vsub.s32 1, %v265
        %v267 = vrot.slane %v214, %v266
        %v268 = vlaneseq
        %v269 = vshrl.u32 %v268, 7
        %v270 = vsub.s32 5, %v269
        %v271 = vrot.slane %v214, %v270
        %v272 = vlaneseq
        %v273 = vshrl.u32 %v272, 7
        %v274 = vsub.s32 1, %v273
        %v275 = vrot.slane %v215, %v274
        %v276 = vlaneseq
        %v277 = vshrl.u32 %v276, 7
        %v278 = vsub.s32 5, %v277
        %v279 = vrot.slane %v215, %v278
        %v284 = vlaneseq
        %v285 = vshrl.u32 %v284, 7
        %v286 = vsub.s32 1, %v285
        %v287 = vrot.slane %v267, %v286
        %v288 = vlaneseq
        %v289 = vshrl.u32 %v288, 7
        %v290 = vsub.s32 1, %v289
        %v291 = vrot.slane %v271, %v290
        %v292 = vlaneseq
        %v293 = vshrl.u32 %v292, 7
        %v294 = vsub.s32 1, %v293
        %v295 = vrot.slane %v275, %v294
        %v296 = vlaneseq
        %v297 = vshrl.u32 %v296, 7
        %v298 = vsub.s32 1, %v297
        %v299 = vrot.slane %v279, %v298
        %300 = vset.pattern.permute.xlu0 1
        %301 = vperm.xlu0 %300, %v216
        %v302 = vpop.permute.xlu0 %301
        %v304 = vsub.f32 %v287, %v302
        %v305 = vsub.f32 %v291, %v302
        %v306 = vsub.f32 %v295, %v302
        %v307 = vsub.f32 %v299, %v302
        %v308 = vlaneseq
        %v309 = vshrl.u32 %v308, 7
        %v310 = vsub.s32 2, %v309
        %v311 = vrot.slane %v214, %v310
        %v312 = vlaneseq
        %v313 = vshrl.u32 %v312, 7
        %v314 = vsub.s32 6, %v313
        %v315 = vrot.slane %v214, %v314
        %v316 = vlaneseq
        %v317 = vshrl.u32 %v316, 7
        %v318 = vsub.s32 2, %v317
        %v319 = vrot.slane %v215, %v318
        %v320 = vlaneseq
        %v321 = vshrl.u32 %v320, 7
        %v322 = vsub.s32 6, %v321
        %v323 = vrot.slane %v215, %v322
        %v328 = vlaneseq
        %v329 = vshrl.u32 %v328, 7
        %v330 = vsub.s32 2, %v329
        %v331 = vrot.slane %v311, %v330
        %v332 = vlaneseq
        %v333 = vshrl.u32 %v332, 7
        %v334 = vsub.s32 2, %v333
        %v335 = vrot.slane %v315, %v334
        %v336 = vlaneseq
        %v337 = vshrl.u32 %v336, 7
        %v338 = vsub.s32 2, %v337
        %v339 = vrot.slane %v319, %v338
        %v340 = vlaneseq
        %v341 = vshrl.u32 %v340, 7
        %v342 = vsub.s32 2, %v341
        %v343 = vrot.slane %v323, %v342
        %344 = vset.pattern.permute.xlu0 2
        %345 = vperm.xlu0 %344, %v216
        %v346 = vpop.permute.xlu0 %345
        %v348 = vsub.f32 %v331, %v346
        %v349 = vsub.f32 %v335, %v346
        %v350 = vsub.f32 %v339, %v346
        %v351 = vsub.f32 %v343, %v346
        %v352 = vmul.f32 %v260, %v260
        %v353 = vmul.f32 %v261, %v261
        %v354 = vmul.f32 %v262, %v262
        %v355 = vmul.f32 %v263, %v263
        %v356 = vmul.f32 %v304, %v304
        %v357 = vmul.f32 %v305, %v305
        %v358 = vmul.f32 %v306, %v306
        %v359 = vmul.f32 %v307, %v307
        %v360 = vmul.f32 %v348, %v348
        %v361 = vmul.f32 %v349, %v349
        %v362 = vmul.f32 %v350, %v350
        %v363 = vmul.f32 %v351, %v351
        %v364 = vadd.f32 %v352, %v356
        %v365 = vadd.f32 %v353, %v357
        %v366 = vadd.f32 %v354, %v358
        %v367 = vadd.f32 %v355, %v359
        %v368 = vadd.f32 %v364, %v360
        %v369 = vadd.f32 %v365, %v361
        %v370 = vadd.f32 %v366, %v362
        %v371 = vadd.f32 %v367, %v363
        %372 = vset.pattern.permute.xlu0 5
        %373 = vperm.xlu0 %372, %v216
        %v374 = vpop.permute.xlu0 %373
        %v376 = vmul.f32 %v374, %v260
        %v377 = vmul.f32 %v374, %v261
        %v378 = vmul.f32 %v374, %v262
        %v379 = vmul.f32 %v374, %v263
        %380 = vset.pattern.permute.xlu0 4
        %381 = vperm.xlu0 %380, %v216
        %v382 = vpop.permute.xlu0 %381
        %v384 = vadd.f32 %v382, %v376
        %v385 = vadd.f32 %v382, %v377
        %v386 = vadd.f32 %v382, %v378
        %v387 = vadd.f32 %v382, %v379
        %388 = vset.pattern.permute.xlu0 6
        %389 = vperm.xlu0 %388, %v216
        %v390 = vpop.permute.xlu0 %389
        %v392 = vmul.f32 %v390, %v352
        %v393 = vmul.f32 %v390, %v353
        %v394 = vmul.f32 %v390, %v354
        %v395 = vmul.f32 %v390, %v355
        %v396 = vadd.f32 %v384, %v392
        %v397 = vadd.f32 %v385, %v393
        %v398 = vadd.f32 %v386, %v394
        %v399 = vadd.f32 %v387, %v395
        %v400 = vmul.f32 %v352, %v260
        %v401 = vmul.f32 %v353, %v261
        %v402 = vmul.f32 %v354, %v262
        %v403 = vmul.f32 %v355, %v263
        %404 = vset.pattern.permute.xlu0 7
        %405 = vperm.xlu0 %404, %v216
        %v406 = vpop.permute.xlu0 %405
        %v408 = vmul.f32 %v406, %v400
        %v409 = vmul.f32 %v406, %v401
        %v410 = vmul.f32 %v406, %v402
        %v411 = vmul.f32 %v406, %v403
        %v412 = vadd.f32 %v396, %v408
        %v413 = vadd.f32 %v397, %v409
        %v414 = vadd.f32 %v398, %v410
        %v415 = vadd.f32 %v399, %v411
        %416 = vset.pattern.permute.xlu0 9
        %417 = vperm.xlu0 %416, %v216
        %v418 = vpop.permute.xlu0 %417
        %v420 = vmul.f32 %v418, %v304
        %v421 = vmul.f32 %v418, %v305
        %v422 = vmul.f32 %v418, %v306
        %v423 = vmul.f32 %v418, %v307
        %424 = vset.pattern.permute.xlu0 8
        %425 = vperm.xlu0 %424, %v216
        %v426 = vpop.permute.xlu0 %425
        %v428 = vadd.f32 %v426, %v420
        %v429 = vadd.f32 %v426, %v421
        %v430 = vadd.f32 %v426, %v422
        %v431 = vadd.f32 %v426, %v423
        %432 = vset.pattern.permute.xlu0 10
        %433 = vperm.xlu0 %432, %v216
        %v434 = vpop.permute.xlu0 %433
        %v436 = vmul.f32 %v434, %v356
        %v437 = vmul.f32 %v434, %v357
        %v438 = vmul.f32 %v434, %v358
        %v439 = vmul.f32 %v434, %v359
        %v440 = vadd.f32 %v428, %v436
        %v441 = vadd.f32 %v429, %v437
        %v442 = vadd.f32 %v430, %v438
        %v443 = vadd.f32 %v431, %v439
        %v444 = vmul.f32 %v356, %v304
        %v445 = vmul.f32 %v357, %v305
        %v446 = vmul.f32 %v358, %v306
        %v447 = vmul.f32 %v359, %v307
        %448 = vset.pattern.permute.xlu0 11
        %449 = vperm.xlu0 %448, %v216
        %v450 = vpop.permute.xlu0 %449
        %v452 = vmul.f32 %v450, %v444
        %v453 = vmul.f32 %v450, %v445
        %v454 = vmul.f32 %v450, %v446
        %v455 = vmul.f32 %v450, %v447
        %v456 = vadd.f32 %v440, %v452
        %v457 = vadd.f32 %v441, %v453
        %v458 = vadd.f32 %v442, %v454
        %v459 = vadd.f32 %v443, %v455
        %460 = vset.pattern.permute.xlu0 13
        %461 = vperm.xlu0 %460, %v216
        %v462 = vpop.permute.xlu0 %461
        %v464 = vmul.f32 %v462, %v348
        %v465 = vmul.f32 %v462, %v349
        %v466 = vmul.f32 %v462, %v350
        %v467 = vmul.f32 %v462, %v351
        %468 = vset.pattern.permute.xlu0 12
        %469 = vperm.xlu0 %468, %v216
        %v470 = vpop.permute.xlu0 %469
        %v472 = vadd.f32 %v470, %v464
        %v473 = vadd.f32 %v470, %v465
        %v474 = vadd.f32 %v470, %v466
        %v475 = vadd.f32 %v470, %v467
        %476 = vset.pattern.permute.xlu0 14
        %477 = vperm.xlu0 %476, %v216
        %v478 = vpop.permute.xlu0 %477
        %v480 = vmul.f32 %v478, %v360
        %v481 = vmul.f32 %v478, %v361
        %v482 = vmul.f32 %v478, %v362
        %v483 = vmul.f32 %v478, %v363
        %v484 = vadd.f32 %v472, %v480
        %v485 = vadd.f32 %v473, %v481
        %v486 = vadd.f32 %v474, %v482
        %v487 = vadd.f32 %v475, %v483
        %v488 = vmul.f32 %v360, %v348
        %v489 = vmul.f32 %v361, %v349
        %v490 = vmul.f32 %v362, %v350
        %v491 = vmul.f32 %v363, %v351
        %492 = vset.pattern.permute.xlu0 15
        %493 = vperm.xlu0 %492, %v216
        %v494 = vpop.permute.xlu0 %493
        %v496 = vmul.f32 %v494, %v488
        %v497 = vmul.f32 %v494, %v489
        %v498 = vmul.f32 %v494, %v490
        %v499 = vmul.f32 %v494, %v491
        %v500 = vadd.f32 %v484, %v496
        %v501 = vadd.f32 %v485, %v497
        %v502 = vadd.f32 %v486, %v498
        %v503 = vadd.f32 %v487, %v499
        %v504 = vmul.f32 %v216, 2.0
        %506 = vset.pattern.permute.xlu0 6
        %507 = vperm.xlu0 %506, %v504
        %v508 = vpop.permute.xlu0 %507
        %v510 = vmul.f32 %v508, %v260
        %v511 = vmul.f32 %v508, %v261
        %v512 = vmul.f32 %v508, %v262
        %v513 = vmul.f32 %v508, %v263
        %v514 = vadd.f32 %v374, %v510
        %v515 = vadd.f32 %v374, %v511
        %v516 = vadd.f32 %v374, %v512
        %v517 = vadd.f32 %v374, %v513
        %v518 = vmul.f32 %v216, 3.0
        %520 = vset.pattern.permute.xlu0 7
        %521 = vperm.xlu0 %520, %v518
        %v522 = vpop.permute.xlu0 %521
        %v524 = vmul.f32 %v522, %v352
        %v525 = vmul.f32 %v522, %v353
        %v526 = vmul.f32 %v522, %v354
        %v527 = vmul.f32 %v522, %v355
        %v528 = vadd.f32 %v514, %v524
        %v529 = vadd.f32 %v515, %v525
        %v530 = vadd.f32 %v516, %v526
        %v531 = vadd.f32 %v517, %v527
        %532 = vset.pattern.permute.xlu0 10
        %533 = vperm.xlu0 %532, %v504
        %v534 = vpop.permute.xlu0 %533
        %v536 = vmul.f32 %v534, %v304
        %v537 = vmul.f32 %v534, %v305
        %v538 = vmul.f32 %v534, %v306
        %v539 = vmul.f32 %v534, %v307
        %v540 = vadd.f32 %v418, %v536
        %v541 = vadd.f32 %v418, %v537
        %v542 = vadd.f32 %v418, %v538
        %v543 = vadd.f32 %v418, %v539
        %544 = vset.pattern.permute.xlu0 11
        %545 = vperm.xlu0 %544, %v518
        %v546 = vpop.permute.xlu0 %545
        %v548 = vmul.f32 %v546, %v356
        %v549 = vmul.f32 %v546, %v357
        %v550 = vmul.f32 %v546, %v358
        %v551 = vmul.f32 %v546, %v359
        %v552 = vadd.f32 %v540, %v548
        %v553 = vadd.f32 %v541, %v549
        %v554 = vadd.f32 %v542, %v550
        %v555 = vadd.f32 %v543, %v551
        %556 = vset.pattern.permute.xlu0 14
        %557 = vperm.xlu0 %556, %v504
        %v558 = vpop.permute.xlu0 %557
        %v560 = vmul.f32 %v558, %v348
        %v561 = vmul.f32 %v558, %v349
        %v562 = vmul.f32 %v558, %v350
        %v563 = vmul.f32 %v558, %v351
        %v564 = vadd.f32 %v462, %v560
        %v565 = vadd.f32 %v462, %v561
        %v566 = vadd.f32 %v462, %v562
        %v567 = vadd.f32 %v462, %v563
        %568 = vset.pattern.permute.xlu0 15
        %569 = vperm.xlu0 %568, %v518
        %v570 = vpop.permute.xlu0 %569
        %v572 = vmul.f32 %v570, %v360
        %v573 = vmul.f32 %v570, %v361
        %v574 = vmul.f32 %v570, %v362
        %v575 = vmul.f32 %v570, %v363
        %v576 = vadd.f32 %v564, %v572
        %v577 = vadd.f32 %v565, %v573
        %v578 = vadd.f32 %v566, %v574
        %v579 = vadd.f32 %v567, %v575
        %v580 = vsub.f32 0.0, %v216
        %582 = vset.pattern.permute.xlu0 3
        %583 = vperm.xlu0 %582, %v580
        %v584 = vpop.permute.xlu0 %583
        %v586 = vmul.f32 %v584, %v368
        %v587 = vmul.f32 %v584, %v369
        %v588 = vmul.f32 %v584, %v370
        %v589 = vmul.f32 %v584, %v371
        %v590 = vmul.f32 %v586, 1.442695
        %v591 = vpow.pop %v590
        %v592 = vmul.f32 %v587, 1.442695
        %v593 = vpow.pop %v592
        %v594 = vmul.f32 %v588, 1.442695
        %v595 = vpow.pop %v594
        %v596 = vmul.f32 %v589, 1.442695
        %v597 = vpow.pop %v596
        %v598 = vmul.f32 %v456, %v500
        %v599 = vmul.f32 %v457, %v501
        %v600 = vmul.f32 %v458, %v502
        %v601 = vmul.f32 %v459, %v503
        %v602 = vmul.f32 %v412, %v500
        %v603 = vmul.f32 %v413, %v501
        %v604 = vmul.f32 %v414, %v502
        %v605 = vmul.f32 %v415, %v503
        %v606 = vmul.f32 %v412, %v456
        %v607 = vmul.f32 %v413, %v457
        %v608 = vmul.f32 %v414, %v458
        %v609 = vmul.f32 %v415, %v459
        %v610 = vmul.f32 %v412, %v598
        %v611 = vmul.f32 %v413, %v599
        %v612 = vmul.f32 %v414, %v600
        %v613 = vmul.f32 %v415, %v601
        %v614 = vmul.f32 %v610, %v591
        %v615 = vmul.f32 %v611, %v593
        %v616 = vmul.f32 %v612, %v595
        %v617 = vmul.f32 %v613, %v597
        %v618 = vld [vmem:[#allocation7] sm:$0xff]
        %620 = vset.pattern.permute.xlu0 0
        %621 = vperm.xlu0 %620, %v618
        %v622 = vpop.permute.xlu0 %621
        %v624 = vlaneseq
        %v625 = vshrl.u32 %v624, 7
        %v626 = vsub.s32 0, %v625
        %v627 = vrot.slane %v614, %v626
        %v628 = vlaneseq
        %v629 = vshrl.u32 %v628, 7
        %v630 = vsub.s32 0, %v629
        %v631 = vrot.slane %v615, %v630
        %v632 = vlaneseq
        %v633 = vshrl.u32 %v632, 7
        %v634 = vsub.s32 0, %v633
        %v635 = vrot.slane %v616, %v634
        %v636 = vlaneseq
        %v637 = vshrl.u32 %v636, 7
        %v638 = vsub.s32 0, %v637
        %v639 = vrot.slane %v617, %v638
        %v640 = vmul.f32 %v622, %v627
        %v641 = vmul.f32 %v622, %v631
        %v642 = vmul.f32 %v622, %v635
        %v643 = vmul.f32 %v622, %v639
        %644 = vset.pattern.permute.xlu0 1
        %645 = vperm.xlu0 %644, %v618
        %v646 = vpop.permute.xlu0 %645
        %v648 = vlaneseq
        %v649 = vshrl.u32 %v648, 7
        %v650 = vsub.s32 1, %v649
        %v651 = vrot.slane %v614, %v650
        %v652 = vlaneseq
        %v653 = vshrl.u32 %v652, 7
        %v654 = vsub.s32 1, %v653
        %v655 = vrot.slane %v615, %v654
        %v656 = vlaneseq
        %v657 = vshrl.u32 %v656, 7
        %v658 = vsub.s32 1, %v657
        %v659 = vrot.slane %v616, %v658
        %v660 = vlaneseq
        %v661 = vshrl.u32 %v660, 7
        %v662 = vsub.s32 1, %v661
        %v663 = vrot.slane %v617, %v662
        %v664 = vmul.f32 %v646, %v651
        %v665 = vmul.f32 %v646, %v655
        %v666 = vmul.f32 %v646, %v659
        %v667 = vmul.f32 %v646, %v663
        %v668 = vadd.f32 %v640, %v664
        %v669 = vadd.f32 %v641, %v665
        %v670 = vadd.f32 %v642, %v666
        %v671 = vadd.f32 %v643, %v667
        %672 = vset.pattern.permute.xlu0 2
        %673 = vperm.xlu0 %672, %v618
        %v674 = vpop.permute.xlu0 %673
        %v676 = vlaneseq
        %v677 = vshrl.u32 %v676, 7
        %v678 = vsub.s32 2, %v677
        %v679 = vrot.slane %v614, %v678
        %v680 = vlaneseq
        %v681 = vshrl.u32 %v680, 7
        %v682 = vsub.s32 2, %v681
        %v683 = vrot.slane %v615, %v682
        %v684 = vlaneseq
        %v685 = vshrl.u32 %v684, 7
        %v686 = vsub.s32 2, %v685
        %v687 = vrot.slane %v616, %v686
        %v688 = vlaneseq
        %v689 = vshrl.u32 %v688, 7
        %v690 = vsub.s32 2, %v689
        %v691 = vrot.slane %v617, %v690
        %v692 = vmul.f32 %v674, %v679
        %v693 = vmul.f32 %v674, %v683
        %v694 = vmul.f32 %v674, %v687
        %v695 = vmul.f32 %v674, %v691
        %v696 = vadd.f32 %v668, %v692
        %v697 = vadd.f32 %v669, %v693
        %v698 = vadd.f32 %v670, %v694
        %v699 = vadd.f32 %v671, %v695
        %700 = vset.pattern.permute.xlu0 3
        %701 = vperm.xlu0 %700, %v618
        %v702 = vpop.permute.xlu0 %701
        %v704 = vlaneseq
        %v705 = vshrl.u32 %v704, 7
        %v706 = vsub.s32 3, %v705
        %v707 = vrot.slane %v614, %v706
        %v708 = vlaneseq
        %v709 = vshrl.u32 %v708, 7
        %v710 = vsub.s32 3, %v709
        %v711 = vrot.slane %v615, %v710
        %v712 = vlaneseq
        %v713 = vshrl.u32 %v712, 7
        %v714 = vsub.s32 3, %v713
        %v715 = vrot.slane %v616, %v714
        %v716 = vlaneseq
        %v717 = vshrl.u32 %v716, 7
        %v718 = vsub.s32 3, %v717
        %v719 = vrot.slane %v617, %v718
        %v720 = vmul.f32 %v702, %v707
        %v721 = vmul.f32 %v702, %v711
        %v722 = vmul.f32 %v702, %v715
        %v723 = vmul.f32 %v702, %v719
        %v724 = vadd.f32 %v696, %v720
        %v725 = vadd.f32 %v697, %v721
        %v726 = vadd.f32 %v698, %v722
        %v727 = vadd.f32 %v699, %v723
        %728 = vset.pattern.permute.xlu0 4
        %729 = vperm.xlu0 %728, %v618
        %v730 = vpop.permute.xlu0 %729
        %v732 = vlaneseq
        %v733 = vshrl.u32 %v732, 7
        %v734 = vsub.s32 4, %v733
        %v735 = vrot.slane %v614, %v734
        %v736 = vlaneseq
        %v737 = vshrl.u32 %v736, 7
        %v738 = vsub.s32 4, %v737
        %v739 = vrot.slane %v615, %v738
        %v740 = vlaneseq
        %v741 = vshrl.u32 %v740, 7
        %v742 = vsub.s32 4, %v741
        %v743 = vrot.slane %v616, %v742
        %v744 = vlaneseq
        %v745 = vshrl.u32 %v744, 7
        %v746 = vsub.s32 4, %v745
        %v747 = vrot.slane %v617, %v746
        %v748 = vmul.f32 %v730, %v735
        %v749 = vmul.f32 %v730, %v739
        %v750 = vmul.f32 %v730, %v743
        %v751 = vmul.f32 %v730, %v747
        %v752 = vadd.f32 %v724, %v748
        %v753 = vadd.f32 %v725, %v749
        %v754 = vadd.f32 %v726, %v750
        %v755 = vadd.f32 %v727, %v751
        %756 = vset.pattern.permute.xlu0 5
        %757 = vperm.xlu0 %756, %v618
        %v758 = vpop.permute.xlu0 %757
        %v760 = vlaneseq
        %v761 = vshrl.u32 %v760, 7
        %v762 = vsub.s32 5, %v761
        %v763 = vrot.slane %v614, %v762
        %v764 = vlaneseq
        %v765 = vshrl.u32 %v764, 7
        %v766 = vsub.s32 5, %v765
        %v767 = vrot.slane %v615, %v766
        %v768 = vlaneseq
        %v769 = vshrl.u32 %v768, 7
        %v770 = vsub.s32 5, %v769
        %v771 = vrot.slane %v616, %v770
        %v772 = vlaneseq
        %v773 = vshrl.u32 %v772, 7
        %v774 = vsub.s32 5, %v773
        %v775 = vrot.slane %v617, %v774
        %v776 = vmul.f32 %v758, %v763
        %v777 = vmul.f32 %v758, %v767
        %v778 = vmul.f32 %v758, %v771
        %v779 = vmul.f32 %v758, %v775
        %v780 = vadd.f32 %v752, %v776
        %v781 = vadd.f32 %v753, %v777
        %v782 = vadd.f32 %v754, %v778
        %v783 = vadd.f32 %v755, %v779
        %784 = vset.pattern.permute.xlu0 6
        %785 = vperm.xlu0 %784, %v618
        %v786 = vpop.permute.xlu0 %785
        %v788 = vlaneseq
        %v789 = vshrl.u32 %v788, 7
        %v790 = vsub.s32 6, %v789
        %v791 = vrot.slane %v614, %v790
        %v792 = vlaneseq
        %v793 = vshrl.u32 %v792, 7
        %v794 = vsub.s32 6, %v793
        %v795 = vrot.slane %v615, %v794
        %v796 = vlaneseq
        %v797 = vshrl.u32 %v796, 7
        %v798 = vsub.s32 6, %v797
        %v799 = vrot.slane %v616, %v798
        %v800 = vlaneseq
        %v801 = vshrl.u32 %v800, 7
        %v802 = vsub.s32 6, %v801
        %v803 = vrot.slane %v617, %v802
        %v804 = vmul.f32 %v786, %v791
        %v805 = vmul.f32 %v786, %v795
        %v806 = vmul.f32 %v786, %v799
        %v807 = vmul.f32 %v786, %v803
        %v808 = vadd.f32 %v780, %v804
        %v809 = vadd.f32 %v781, %v805
        %v810 = vadd.f32 %v782, %v806
        %v811 = vadd.f32 %v783, %v807
        %812 = vset.pattern.permute.xlu0 7
        %813 = vperm.xlu0 %812, %v618
        %v814 = vpop.permute.xlu0 %813
        %v816 = vlaneseq
        %v817 = vshrl.u32 %v816, 7
        %v818 = vsub.s32 7, %v817
        %v819 = vrot.slane %v614, %v818
        %v820 = vlaneseq
        %v821 = vshrl.u32 %v820, 7
        %v822 = vsub.s32 7, %v821
        %v823 = vrot.slane %v615, %v822
        %v824 = vlaneseq
        %v825 = vshrl.u32 %v824, 7
        %v826 = vsub.s32 7, %v825
        %v827 = vrot.slane %v616, %v826
        %v828 = vlaneseq
        %v829 = vshrl.u32 %v828, 7
        %v830 = vsub.s32 7, %v829
        %v831 = vrot.slane %v617, %v830
        %v832 = vmul.f32 %v814, %v819
        %v833 = vmul.f32 %v814, %v823
        %v834 = vmul.f32 %v814, %v827
        %v835 = vmul.f32 %v814, %v831
        %v836 = vadd.f32 %v808, %v832
        %v837 = vadd.f32 %v809, %v833
        %v838 = vadd.f32 %v810, %v834
        %v839 = vadd.f32 %v811, %v835
        %v840 = vmul.f32 %v614, %v836
        %v841 = vmul.f32 %v615, %v837
        %v842 = vmul.f32 %v616, %v838
        %v843 = vmul.f32 %v617, %v839
        %v844 = vrot.slane %v840, 4
        %v845 = vadd.f32 %v840, %v844
        %v846 = vrot.slane %v845, 2
        %v847 = vadd.f32 %v845, %v846
        %v848 = vrot.slane %v847, 1
        %v849 = vadd.f32 %v847, %v848
        %v850 = vrot.slane %v841, 4
        %v851 = vadd.f32 %v841, %v850
        %v852 = vrot.slane %v851, 2
        %v853 = vadd.f32 %v851, %v852
        %v854 = vrot.slane %v853, 1
        %v855 = vadd.f32 %v853, %v854
        %v856 = vrot.slane %v842, 4
        %v857 = vadd.f32 %v842, %v856
        %v858 = vrot.slane %v857, 2
        %v859 = vadd.f32 %v857, %v858
        %v860 = vrot.slane %v859, 1
        %v861 = vadd.f32 %v859, %v860
        %v862 = vrot.slane %v843, 4
        %v863 = vadd.f32 %v843, %v862
        %v864 = vrot.slane %v863, 2
        %v865 = vadd.f32 %v863, %v864
        %v866 = vrot.slane %v865, 1
        %v867 = vadd.f32 %v865, %v866
        %v868 = vmul.f32 %v598, %v591
        %v869 = vmul.f32 %v599, %v593
        %v870 = vmul.f32 %v600, %v595
        %v871 = vmul.f32 %v601, %v597
        %v872 = vmul.f32 %v528, %v868
        %v873 = vmul.f32 %v529, %v869
        %v874 = vmul.f32 %v530, %v870
        %v875 = vmul.f32 %v531, %v871
        %v876 = vmul.f32 %v260, %v614
        %v877 = vmul.f32 %v261, %v615
        %v878 = vmul.f32 %v262, %v616
        %v879 = vmul.f32 %v263, %v617
        %880 = vset.pattern.permute.xlu0 3
        %881 = vperm.xlu0 %880, %v504
        %v882 = vpop.permute.xlu0 %881
        %v884 = vmul.f32 %v882, %v876
        %v885 = vmul.f32 %v882, %v877
        %v886 = vmul.f32 %v882, %v878
        %v887 = vmul.f32 %v882, %v879
        %v888 = vsub.f32 %v872, %v884
        %v889 = vsub.f32 %v873, %v885
        %v890 = vsub.f32 %v874, %v886
        %v891 = vsub.f32 %v875, %v887
        %v892 = vmul.f32 %v602, %v591
        %v893 = vmul.f32 %v603, %v593
        %v894 = vmul.f32 %v604, %v595
        %v895 = vmul.f32 %v605, %v597
        %v896 = vmul.f32 %v552, %v892
        %v897 = vmul.f32 %v553, %v893
        %v898 = vmul.f32 %v554, %v894
        %v899 = vmul.f32 %v555, %v895
        %v900 = vmul.f32 %v304, %v614
        %v901 = vmul.f32 %v305, %v615
        %v902 = vmul.f32 %v306, %v616
        %v903 = vmul.f32 %v307, %v617
        %v904 = vmul.f32 %v882, %v900
        %v905 = vmul.f32 %v882, %v901
        %v906 = vmul.f32 %v882, %v902
        %v907 = vmul.f32 %v882, %v903
        %v908 = vsub.f32 %v896, %v904
        %v909 = vsub.f32 %v897, %v905
        %v910 = vsub.f32 %v898, %v906
        %v911 = vsub.f32 %v899, %v907
        %v912 = vmul.f32 %v606, %v591
        %v913 = vmul.f32 %v607, %v593
        %v914 = vmul.f32 %v608, %v595
        %v915 = vmul.f32 %v609, %v597
        %v916 = vmul.f32 %v576, %v912
        %v917 = vmul.f32 %v577, %v913
        %v918 = vmul.f32 %v578, %v914
        %v919 = vmul.f32 %v579, %v915
        %v920 = vmul.f32 %v348, %v614
        %v921 = vmul.f32 %v349, %v615
        %v922 = vmul.f32 %v350, %v616
        %v923 = vmul.f32 %v351, %v617
        %v924 = vmul.f32 %v882, %v920
        %v925 = vmul.f32 %v882, %v921
        %v926 = vmul.f32 %v882, %v922
        %v927 = vmul.f32 %v882, %v923
        %v928 = vsub.f32 %v916, %v924
        %v929 = vsub.f32 %v917, %v925
        %v930 = vsub.f32 %v918, %v926
        %v931 = vsub.f32 %v919, %v927
        %v932 = vmul.f32 %v836, %v888
        %v933 = vmul.f32 %v837, %v889
        %v934 = vmul.f32 %v838, %v890
        %v935 = vmul.f32 %v839, %v891
        %v936 = vrot.slane %v932, 4
        %v937 = vadd.f32 %v932, %v936
        %v938 = vrot.slane %v937, 2
        %v939 = vadd.f32 %v937, %v938
        %v940 = vrot.slane %v939, 1
        %v941 = vadd.f32 %v939, %v940
        %v942 = vrot.slane %v933, 4
        %v943 = vadd.f32 %v933, %v942
        %v944 = vrot.slane %v943, 2
        %v945 = vadd.f32 %v943, %v944
        %v946 = vrot.slane %v945, 1
        %v947 = vadd.f32 %v945, %v946
        %v948 = vrot.slane %v934, 4
        %v949 = vadd.f32 %v934, %v948
        %v950 = vrot.slane %v949, 2
        %v951 = vadd.f32 %v949, %v950
        %v952 = vrot.slane %v951, 1
        %v953 = vadd.f32 %v951, %v952
        %v954 = vrot.slane %v935, 4
        %v955 = vadd.f32 %v935, %v954
        %v956 = vrot.slane %v955, 2
        %v957 = vadd.f32 %v955, %v956
        %v958 = vrot.slane %v957, 1
        %v959 = vadd.f32 %v957, %v958
        %v960 = vmul.f32 %v836, %v908
        %v961 = vmul.f32 %v837, %v909
        %v962 = vmul.f32 %v838, %v910
        %v963 = vmul.f32 %v839, %v911
        %v964 = vrot.slane %v960, 4
        %v965 = vadd.f32 %v960, %v964
        %v966 = vrot.slane %v965, 2
        %v967 = vadd.f32 %v965, %v966
        %v968 = vrot.slane %v967, 1
        %v969 = vadd.f32 %v967, %v968
        %v970 = vrot.slane %v961, 4
        %v971 = vadd.f32 %v961, %v970
        %v972 = vrot.slane %v971, 2
        %v973 = vadd.f32 %v971, %v972
        %v974 = vrot.slane %v973, 1
        %v975 = vadd.f32 %v973, %v974
        %v976 = vrot.slane %v962, 4
        %v977 = vadd.f32 %v962, %v976
        %v978 = vrot.slane %v977, 2
        %v979 = vadd.f32 %v977, %v978
        %v980 = vrot.slane %v979, 1
        %v981 = vadd.f32 %v979, %v980
        %v982 = vrot.slane %v963, 4
        %v983 = vadd.f32 %v963, %v982
        %v984 = vrot.slane %v983, 2
        %v985 = vadd.f32 %v983, %v984
        %v986 = vrot.slane %v985, 1
        %v987 = vadd.f32 %v985, %v986
        %v988 = vmul.f32 %v836, %v928
        %v989 = vmul.f32 %v837, %v929
        %v990 = vmul.f32 %v838, %v930
        %v991 = vmul.f32 %v839, %v931
        %v992 = vrot.slane %v988, 4
        %v993 = vadd.f32 %v988, %v992
        %v994 = vrot.slane %v993, 2
        %v995 = vadd.f32 %v993, %v994
        %v996 = vrot.slane %v995, 1
        %v997 = vadd.f32 %v995, %v996
        %v998 = vrot.slane %v989, 4
        %v999 = vadd.f32 %v989, %v998
        %v1000 = vrot.slane %v999, 2
        %v1001 = vadd.f32 %v999, %v1000
        %v1002 = vrot.slane %v1001, 1
        %v1003 = vadd.f32 %v1001, %v1002
        %v1004 = vrot.slane %v990, 4
        %v1005 = vadd.f32 %v990, %v1004
        %v1006 = vrot.slane %v1005, 2
        %v1007 = vadd.f32 %v1005, %v1006
        %v1008 = vrot.slane %v1007, 1
        %v1009 = vadd.f32 %v1007, %v1008
        %v1010 = vrot.slane %v991, 4
        %v1011 = vadd.f32 %v991, %v1010
        %v1012 = vrot.slane %v1011, 2
        %v1013 = vadd.f32 %v1011, %v1012
        %v1014 = vrot.slane %v1013, 1
        %v1015 = vadd.f32 %v1013, %v1014
        %v1016 = vmul.f32 %v941, %v941
        %v1017 = vmul.f32 %v947, %v947
        %v1018 = vmul.f32 %v953, %v953
        %v1019 = vmul.f32 %v959, %v959
        %v1020 = vmul.f32 %v969, %v969
        %v1021 = vmul.f32 %v975, %v975
        %v1022 = vmul.f32 %v981, %v981
        %v1023 = vmul.f32 %v987, %v987
        %v1024 = vadd.f32 %v1016, %v1020
        %v1025 = vadd.f32 %v1017, %v1021
        %v1026 = vadd.f32 %v1018, %v1022
        %v1027 = vadd.f32 %v1019, %v1023
        %v1028 = vmul.f32 %v997, %v997
        %v1029 = vmul.f32 %v1003, %v1003
        %v1030 = vmul.f32 %v1009, %v1009
        %v1031 = vmul.f32 %v1015, %v1015
        %v1032 = vadd.f32 %v1024, %v1028
        %v1033 = vadd.f32 %v1025, %v1029
        %v1034 = vadd.f32 %v1026, %v1030
        %v1035 = vadd.f32 %v1027, %v1031
        %v1036 = vrsqrt.pop %v1032
        %v1037 = vmul.f32 %v1032, %v1036
        %vm1038 = vcmp.eq.f32.partialorder %v1032, inf
        %v1039 = vsel %vm1038, %v1032, %v1037
        %vm1040 = vcmp.eq.f32.partialorder %v1032, 0.0
        %v1041 = vand.u32 %v1032, 2147483648
        %v1042 = vsel %vm1040, %v1041, %v1039
        %v1043 = vrsqrt.pop %v1033
        %v1044 = vmul.f32 %v1033, %v1043
        %vm1045 = vcmp.eq.f32.partialorder %v1033, inf
        %v1046 = vsel %vm1045, %v1033, %v1044
        %vm1047 = vcmp.eq.f32.partialorder %v1033, 0.0
        %v1048 = vand.u32 %v1033, 2147483648
        %v1049 = vsel %vm1047, %v1048, %v1046
        %v1050 = vrsqrt.pop %v1034
        %v1051 = vmul.f32 %v1034, %v1050
        %vm1052 = vcmp.eq.f32.partialorder %v1034, inf
        %v1053 = vsel %vm1052, %v1034, %v1051
        %vm1054 = vcmp.eq.f32.partialorder %v1034, 0.0
        %v1055 = vand.u32 %v1034, 2147483648
        %v1056 = vsel %vm1054, %v1055, %v1053
        %v1057 = vrsqrt.pop %v1035
        %v1058 = vmul.f32 %v1035, %v1057
        %vm1059 = vcmp.eq.f32.partialorder %v1035, inf
        %v1060 = vsel %vm1059, %v1035, %v1058
        %vm1061 = vcmp.eq.f32.partialorder %v1035, 0.0
        %v1062 = vand.u32 %v1035, 2147483648
        %v1063 = vsel %vm1061, %v1062, %v1060
        %v1064 = vmul.f32 %v1042, 2.0
        %v1065 = vmul.f32 %v1049, 2.0
        %v1066 = vmul.f32 %v1056, 2.0
        %v1067 = vmul.f32 %v1063, 2.0
        %v1072 = vcombine.low %v849, %v855
        %v1073 = vcombine.low %v861, %v867
        %v1075 = vunpack.c.l.s4 1966171168
        %v1076 = vunpack.c.0.s8 %v1075
        %v1077 = vlaneseq
        %v1078 = vshrl.u32 %v1077, 7
        %v1079 = vsub.s32 %v1076, %v1078
        %v1080 = vrot.slane %v1072, %v1079
        %v1082 = vunpack.c.l.s4 1966171168
        %v1083 = vunpack.c.0.s8 %v1082
        %v1084 = vlaneseq
        %v1085 = vshrl.u32 %v1084, 7
        %v1086 = vsub.s32 %v1083, %v1085
        %v1087 = vrot.slane %v1073, %v1086
        %v1088 = vcombine.low %v1080, %v1087
        %v1090 = vunpack.c.l.s4 1966171168
        %v1091 = vunpack.c.0.s8 %v1090
        %v1092 = vlaneseq
        %v1093 = vshrl.u32 %v1092, 7
        %v1094 = vsub.s32 %v1091, %v1093
        %v1095 = vrot.slane %v1088, %v1094
        %v1097 = vlaneseq
        %vm1098 = vcmp.ge.s32.totalorder %v1097, 0
        %vm1099 = vcmp.lt.s32.totalorder %v1097, 512
        %vm1100 = vmand %vm1098, %vm1099
        %1101 = vst.msk [vmem:[%s211] ss:$2 sm:$0xf] %vm1100, %v1095
        %v1106 = vcombine.low %v1064, %v1065
        %v1107 = vcombine.low %v1066, %v1067
        %v1109 = vunpack.c.l.s4 1966171168
        %v1110 = vunpack.c.0.s8 %v1109
        %v1111 = vlaneseq
        %v1112 = vshrl.u32 %v1111, 7
        %v1113 = vsub.s32 %v1110, %v1112
        %v1114 = vrot.slane %v1106, %v1113
        %v1116 = vunpack.c.l.s4 1966171168
        %v1117 = vunpack.c.0.s8 %v1116
        %v1118 = vlaneseq
        %v1119 = vshrl.u32 %v1118, 7
        %v1120 = vsub.s32 %v1117, %v1119
        %v1121 = vrot.slane %v1107, %v1120
        %v1122 = vcombine.low %v1114, %v1121
        %v1124 = vunpack.c.l.s4 1966171168
        %v1125 = vunpack.c.0.s8 %v1124
        %v1126 = vlaneseq
        %v1127 = vshrl.u32 %v1126, 7
        %v1128 = vsub.s32 %v1125, %v1127
        %v1129 = vrot.slane %v1122, %v1128
        %s1131 = scalar_lea.vmem %s211, 1 [#allocation8]
        %1132 = vst.msk [vmem:[%s1131] ss:$2 sm:$0xf] %vm1100, %v1129
        %s1133 = sand.u32 %s97, 1
        %s1134 = scalar_lea.sflag [#allocation4], %s1133
        %s1135 = sand.u32 %s97, 1
        %s1136 = smul.addr %s1135, 8
        %s1137 = scalar_lea.vmem [#allocation8], %s1136
        // Predicated region
        $region45: #{tpu_custom_call.1} parent=31 // pred_check
          %p1138 = pneg %p107
        $region46: #{tpu_custom_call.1} parent=31 // pred_check_branch
          %1140 = sbr.rel (%p1138) target = $region48
        $region47: #{tpu_custom_call.1} parent=31 // pred_region
          %s1141 = smul.u32 4, %s21
          %s1143 = ssub.s32 128, 128
          %1144 = vsyncadd %s1134, %s1143
          %s1145 = smul.addr %s1141, 32
          %s1146 = scalar_lea.hbm %s3, %s1145
          %s1148 = sshll.u32 %s1137, 4
          %s1149 = int_to_ptr.vmem [resolvable:$true] %s1148
          %1151 = dma.vmem_to_hbm [thread:$0]  %s1149, 128, %s1146, %s1134
        $region48: #{tpu_custom_call.1} parent=31 // pred_fallthru
          _
      $region32: #{tpu_custom_call.1} parent=5 // pred_fallthru
        _
      %p1152 = scmp.le.s32.totalorder 2, %s16
      // Predicated region
      $region49: #{tpu_custom_call.1} parent=5 // pred_check
        %p1153 = pneg %p1152
      $region50: #{tpu_custom_call.1} parent=5 // pred_check_branch
        %1155 = sbr.rel (%p1153) target = $region52
      $region51: #{tpu_custom_call.1} parent=5 // pred_region
        %s1156 = ssub.s32 %s16, 2
        // Predicated region
        $region53: #{tpu_custom_call.1} parent=51 // pred_check
          %p1157 = pneg %p113
        $region54: #{tpu_custom_call.1} parent=51 // pred_check_branch
          %1159 = sbr.rel (%p1157) target = $region56
        $region55: #{tpu_custom_call.1} parent=51 // pred_region
          %s1160 = sand.u32 %s98, 1
          %s1161 = scalar_lea.sflag [#allocation4], %s1160
          %s1162 = sand.u32 %s98, 1
          %s1163 = smul.addr %s1162, 8
          %s1164 = scalar_lea.vmem [#allocation8], %s1163
          %1165 = dma.done %s1161, 128
        $region56: #{tpu_custom_call.1} parent=51 // pred_fallthru
          _
      $region52: #{tpu_custom_call.1} parent=5 // pred_fallthru
        _
    $region6: #{tpu_custom_call.1} parent=1 // loop_footer
      %s20 = sadd.s32 1, %s16
    $region7: #{tpu_custom_call.1} parent=1 // loop_footer_branch
      %15 = sbr.rel target = $region3
    $region8: #{tpu_custom_call.1} parent=1 // loop_exit
      _
    %1166 = vsyncpa [#allocation3], 1
    %s1167 = scalar_lea.sflag [#allocation3], 1
    %1168 = vsyncpa %s1167, 1
    %1169 = vsyncpa [#allocation6], 1
    %1170 = vsyncpa [#allocation4], 1
    %s1171 = scalar_lea.sflag [#allocation4], 1
    %1172 = vsyncpa %s1171, 1

</llo_original>
